<compile_context>
chip_gen: v7x
topology: tpu7x:2x2x1
jax: 0.10.0
libtpu: 0.0.40
codegen_flags: <defaults>
</compile_context>

<pallas_src>
import functools

import jax
import jax.numpy as jnp
from jax.experimental import pallas as pl
from jax.experimental.pallas import tpu as pltpu

LANE = 128     # vreg lane width
SUBLANE = 8    # f32 sublane count


def _ceil_to(x, m):
    return ((x + m - 1) // m) * m


# ---------------------------------------------------------------------------
# Fused multi-layer GRU kernel (single invocation, everything resident in VMEM).
#
# refs layout:
#   refs[0]                x2d      (T*B_pad, D)       time-major, batch padded
#   refs[1+4l : 5+4l]      layer l: w_ih (D_l, 3*H_pad), w_hh (H_pad, 3*H_pad),
#                                   b_proj (1, 3*H_pad), b_hn (1, H_pad)
#   refs[1+4L]             out      (T*B_pad, H_pad)
#   refs[2+4L]             gi scratch  (T*B_pad, 3*H_pad)
#   refs[3+4L]             seq scratch (T*B_pad, H_pad)  inter-layer activations
# Gate column order within the 3*H_pad axis: [ r | z | n ], each H_pad wide.
# ---------------------------------------------------------------------------
def _fused_gru_kernel(n_layers, seq_len, b_pad, h_pad, *refs):
    out_ref = refs[1 + 4 * n_layers]
    gi_ref = refs[2 + 4 * n_layers]
    seq_ref = refs[3 + 4 * n_layers]

    lhs = refs[0][...]                                    # (T*B_pad, D)

    for layer in range(n_layers):
        w_ih_ref, w_hh_ref, b_proj_ref, b_hn_ref = refs[1 + 4 * layer: 5 + 4 * layer]

        # Phase 1: hoisted input projection for ALL time steps (one MXU matmul).
        gi_ref[...] = (
            jnp.dot(lhs, w_ih_ref[...], preferred_element_type=jnp.float32)
            + b_proj_ref[...]
        )

        w_hh = w_hh_ref[...]                              # (H_pad, 3*H_pad)
        b_hn = b_hn_ref[...]                              # (1, H_pad)
        dst_ref = out_ref if layer == n_layers - 1 else seq_ref

        # Phase 2: sequential time recurrence; only h @ W_hh per step.
        def step(t, h_prev):
            row = t * b_pad
            if not isinstance(t, int):                    # dynamic trip count
                row = pl.multiple_of(row, b_pad)
            gi = gi_ref[pl.ds(row, b_pad), :]             # (B_pad, 3*H_pad)
            gh = jnp.dot(h_prev, w_hh, preferred_element_type=jnp.float32)
            r = jax.nn.sigmoid(gi[:, 0:h_pad] + gh[:, 0:h_pad])
            z = jax.nn.sigmoid(gi[:, h_pad:2 * h_pad] + gh[:, h_pad:2 * h_pad])
            n = jnp.tanh(gi[:, 2 * h_pad:3 * h_pad]
                         + r * (gh[:, 2 * h_pad:3 * h_pad] + b_hn))
            h_new = (1.0 - z) * n + z * h_prev
            dst_ref[pl.ds(row, b_pad), :] = h_new         # lane-dense, tile-aligned
            return h_new

        h = jnp.zeros((b_pad, h_pad), jnp.float32)        # PyTorch zero init h0
        if seq_len <= 32:
            # Short sequences: full unroll with static tile offsets.
            for t in range(seq_len):
                h = step(t, h)
        else:
            h = jax.lax.fori_loop(0, seq_len, step, h)

        if layer < n_layers - 1:
            lhs = seq_ref[...]                            # stays in VMEM


# ---------------------------------------------------------------------------
# Wrapper: layout plumbing + pallas_call.
# ---------------------------------------------------------------------------
@functools.partial(jax.jit, static_argnames=("hidden_size",))
def decoder_forward(x, packed_params, *, hidden_size):
    """x: (B, T, input_size) -> (B, hidden_size, T), matching Decoder.forward."""
    B, T, D = x.shape
    n_layers = len(packed_params)
    H_pad = packed_params[0][1].shape[0]
    B_pad = _ceil_to(B, SUBLANE)

    # Time-major, batch-padded (to 8 sublanes), flattened input: (T*B_pad, D).
    x_t = jnp.transpose(x.astype(jnp.float32), (1, 0, 2))           # (T, B, D)
    x_t = jnp.pad(x_t, ((0, 0), (0, B_pad - B), (0, 0)))
    x2d = x_t.reshape(T * B_pad, D)

    flat_inputs = [x2d]
    for layer_params in packed_params:
        flat_inputs.extend(layer_params)

    kernel = functools.partial(_fused_gru_kernel, n_layers, T, B_pad, H_pad)

    out2d = pl.pallas_call(
        kernel,
        out_shape=jax.ShapeDtypeStruct((T * B_pad, H_pad), jnp.float32),
        in_specs=[pl.BlockSpec(memory_space=pltpu.MemorySpace.VMEM)] * len(flat_inputs),
        out_specs=pl.BlockSpec(memory_space=pltpu.MemorySpace.VMEM),
        scratch_shapes=[
            pltpu.VMEM((T * B_pad, 3 * H_pad), jnp.float32),  # precomputed gates
            pltpu.VMEM((T * B_pad, H_pad), jnp.float32),      # inter-layer acts
        ],
    )(*flat_inputs)

    out_tbh = out2d.reshape(T, B_pad, H_pad)[:, :B, :hidden_size]   # (T, B, H)
    # nn.GRU(batch_first) output (B, T, H) .permute([0, 2, 1]) == (B, H, T):
    return jnp.transpose(out_tbh, (1, 2, 0))


# ---------------------------------------------------------------------------
# Parameter init (PyTorch-style) and packing into the kernel's padded layout.
# ---------------------------------------------------------------------------
def init_decoder_params(key, input_size, hidden_size, n_layers):
    """PyTorch nn.GRU init: U(-1/sqrt(H), 1/sqrt(H)); weights stored transposed
    for x @ W; gate order (r, z, n) as in PyTorch."""
    bound = 1.0 / float(hidden_size) ** 0.5
    params = []
    for layer in range(n_layers):
        d_in = input_size if layer == 0 else hidden_size
        key, k1, k2, k3, k4 = jax.random.split(key, 5)
        w_ih = jax.random.uniform(k1, (d_in, 3 * hidden_size), jnp.float32, -bound, bound)
        w_hh = jax.random.uniform(k2, (hidden_size, 3 * hidden_size), jnp.float32, -bound, bound)
        b_ih = jax.random.uniform(k3, (3 * hidden_size,), jnp.float32, -bound, bound)
        b_hh = jax.random.uniform(k4, (3 * hidden_size,), jnp.float32, -bound, bound)
        params.append((w_ih, w_hh, b_ih, b_hh))
    return params


def _pad_gate_cols(a, H, H_pad):
    """(d, 3H) -> (d, 3*H_pad): pad each gate block independently to H_pad lanes."""
    d = a.shape[0]
    a3 = a.reshape(d, 3, H)
    a3 = jnp.pad(a3, ((0, 0), (0, 0), (0, H_pad - H)))
    return a3.reshape(d, 3 * H_pad)


def pack_params_for_kernel(params, hidden_size):
    """Pad / fold PyTorch-layout GRU params into the fused-kernel layout."""
    H = hidden_size
    H_pad = _ceil_to(H, LANE)
    packed = []
    for layer, (w_ih, w_hh, b_ih, b_hh) in enumerate(params):
        w_ih_p = _pad_gate_cols(w_ih, H, H_pad)
        if layer > 0:
            # Layer >0 consumes the H_pad-wide padded hidden state.
            w_ih_p = jnp.pad(w_ih_p, ((0, H_pad - H), (0, 0)))
        w_hh_p = jnp.pad(_pad_gate_cols(w_hh, H, H_pad), ((0, H_pad - H), (0, 0)))
        # Fold b_ih (all gates) + b_hh (r and z gates) into the hoisted projection.
        b_proj = b_ih + jnp.concatenate([b_hh[:2 * H], jnp.zeros((H,), jnp.float32)])
        b_proj_p = _pad_gate_cols(b_proj[None, :], H, H_pad)              # (1, 3*H_pad)
        b_hn_p = jnp.pad(b_hh[2 * H:][None, :], ((0, 0), (0, H_pad - H)))  # (1, H_pad)
        packed.append((w_ih_p, w_hh_p, b_proj_p, b_hn_p))
    return tuple(packed)


# ---------------------------------------------------------------------------
# Pure-JAX reference (lax.scan GRU, PyTorch eval semantics) for correctness.
# ---------------------------------------------------------------------------
def decoder_forward_ref(x, params):
    h_seq = jnp.transpose(x.astype(jnp.float32), (1, 0, 2))     # (T, B, D)
    for (w_ih, w_hh, b_ih, b_hh) in params:
        H = w_hh.shape[0]
        B = h_seq.shape[1]

        def step(h_prev, x_t):
            gi = x_t @ w_ih + b_ih
            gh = h_prev @ w_hh + b_hh
            r = jax.nn.sigmoid(gi[:, :H] + gh[:, :H])
            z = jax.nn.sigmoid(gi[:, H:2 * H] + gh[:, H:2 * H])
            n = jnp.tanh(gi[:, 2 * H:] + r * gh[:, 2 * H:])
            h_new = (1.0 - z) * n + z * h_prev
            return h_new, h_new

        _, h_seq = jax.lax.scan(step, jnp.zeros((B, H), jnp.float32), h_seq)
    return jnp.transpose(h_seq, (1, 2, 0))                      # (B, H, T)


if __name__ == "__main__":
    # Small shapes consistent with the module's forward.
    B, T = 2, 8
    input_size, hidden_size, n_layers = 16, 32, 2
    dropout_rate = 0.1  # training-only; unused at inference

    key = jax.random.PRNGKey(0)
    key, kx = jax.random.split(key)
    x = jax.random.normal(kx, (B, T, input_size), dtype=jnp.float32)

    params = init_decoder_params(key, input_size, hidden_size, n_layers)
    packed = pack_params_for_kernel(params, hidden_size)

    out = jax.block_until_ready(decoder_forward(x, packed, hidden_size=hidden_size))
    ref = jax.block_until_ready(decoder_forward_ref(x, params))

    assert out.shape == (B, hidden_size, T), out.shape
    max_err = float(jnp.max(jnp.abs(out - ref)))
    assert jnp.allclose(out, ref, atol=1e-4, rtol=1e-4), max_err

    print("KERNEL_OK")
</pallas_src>

<mosaic_0001>
module attributes {stable_mosaic.version = 11 : i64} {
  func.func @_fused_gru_kernel(%arg0: memref<64x16xf32, #tpu.memory_space<vmem>>, %arg1: memref<16x384xf32, #tpu.memory_space<vmem>>, %arg2: memref<128x384xf32, #tpu.memory_space<vmem>>, %arg3: memref<1x384xf32, #tpu.memory_space<vmem>>, %arg4: memref<1x128xf32, #tpu.memory_space<vmem>>, %arg5: memref<128x384xf32, #tpu.memory_space<vmem>>, %arg6: memref<128x384xf32, #tpu.memory_space<vmem>>, %arg7: memref<1x384xf32, #tpu.memory_space<vmem>>, %arg8: memref<1x128xf32, #tpu.memory_space<vmem>>, %arg9: memref<64x128xf32, #tpu.memory_space<vmem>>, %arg10: memref<64x384xf32, #tpu.memory_space<vmem>>, %arg11: memref<64x128xf32, #tpu.memory_space<vmem>>) attributes {dimension_semantics = [], scalar_prefetch = 0 : i64, scratch_operands = 2 : i64, tpu.core_type = #tpu.core_type<tc>} {
    %c0 = arith.constant 0 : index
    %c0_0 = arith.constant 0 : index
    %0 = vector.load %arg0[%c0, %c0_0] : memref<64x16xf32, #tpu.memory_space<vmem>>, vector<64x16xf32>
    %c0_1 = arith.constant 0 : index
    %c0_2 = arith.constant 0 : index
    %1 = vector.load %arg1[%c0_1, %c0_2] : memref<16x384xf32, #tpu.memory_space<vmem>>, vector<16x384xf32>
    %cst = arith.constant dense<0.000000e+00> : vector<64x384xf32>
    %2 = tpu.matmul %0, %1, %cst {dimension_numbers = #tpu.dot_dimension_numbers<[1], [0], [0], [1], [0, 0, 1, 1], [], []>} : vector<64x16xf32>, vector<16x384xf32>, vector<64x384xf32> -> vector<64x384xf32>
    %c0_3 = arith.constant 0 : index
    %c0_4 = arith.constant 0 : index
    %3 = vector.load %arg3[%c0_3, %c0_4] : memref<1x384xf32, #tpu.memory_space<vmem>>, vector<1x384xf32>
    %4 = vector.broadcast %3 : vector<1x384xf32> to vector<64x384xf32>
    %5 = arith.addf %2, %4 : vector<64x384xf32>
    %c0_5 = arith.constant 0 : index
    %c0_6 = arith.constant 0 : index
    %6 = vector.load %arg10[%c0_5, %c0_6] : memref<64x384xf32, #tpu.memory_space<vmem>>, vector<64x384xf32>
    tpu.vector_store %arg10[%c0_5, %c0_6], %5 {strides = array<i32>} : memref<64x384xf32, #tpu.memory_space<vmem>>, vector<64x384xf32>,
    %c0_7 = arith.constant 0 : index
    %c0_8 = arith.constant 0 : index
    %7 = vector.load %arg2[%c0_7, %c0_8] : memref<128x384xf32, #tpu.memory_space<vmem>>, vector<128x384xf32>
    %c0_9 = arith.constant 0 : index
    %c0_10 = arith.constant 0 : index
    %8 = vector.load %arg4[%c0_9, %c0_10] : memref<1x128xf32, #tpu.memory_space<vmem>>, vector<1x128xf32>
    %cst_11 = arith.constant 0.000000e+00 : f32
    %9 = vector.broadcast %cst_11 : f32 to vector<8x128xf32>
    %c0_12 = arith.constant 0 : index
    %c0_13 = arith.constant 0 : index
    %10 = vector.load %arg10[%c0_12, %c0_13] : memref<64x384xf32, #tpu.memory_space<vmem>>, vector<8x384xf32>
    %cst_14 = arith.constant dense<0.000000e+00> : vector<8x384xf32>
    %11 = tpu.matmul %9, %7, %cst_14 {dimension_numbers = #tpu.dot_dimension_numbers<[1], [0], [0], [1], [0, 0, 1, 1], [], []>} : vector<8x128xf32>, vector<128x384xf32>, vector<8x384xf32> -> vector<8x384xf32>
    %12 = vector.extract_strided_slice %10 {offsets = [0, 0], sizes = [8, 128], strides = [1, 1]} : vector<8x384xf32> to vector<8x128xf32>
    %13 = vector.extract_strided_slice %11 {offsets = [0, 0], sizes = [8, 128], strides = [1, 1]} : vector<8x384xf32> to vector<8x128xf32>
    %14 = arith.addf %12, %13 : vector<8x128xf32>
    %15 = arith.negf %14 : vector<8x128xf32>
    %16 = math.exp %15 : vector<8x128xf32>
    %cst_15 = arith.constant 1.000000e+00 : f32
    %17 = vector.broadcast %cst_15 : f32 to vector<8x128xf32>
    %18 = arith.addf %17, %16 : vector<8x128xf32>
    %19 = arith.divf %17, %18 : vector<8x128xf32>
    %20 = vector.extract_strided_slice %10 {offsets = [0, 128], sizes = [8, 128], strides = [1, 1]} : vector<8x384xf32> to vector<8x128xf32>
    %21 = vector.extract_strided_slice %11 {offsets = [0, 128], sizes = [8, 128], strides = [1, 1]} : vector<8x384xf32> to vector<8x128xf32>
    %22 = arith.addf %20, %21 : vector<8x128xf32>
    %23 = arith.negf %22 : vector<8x128xf32>
    %24 = math.exp %23 : vector<8x128xf32>
    %cst_16 = arith.constant 1.000000e+00 : f32
    %25 = vector.broadcast %cst_16 : f32 to vector<8x128xf32>
    %26 = arith.addf %25, %24 : vector<8x128xf32>
    %27 = arith.divf %25, %26 : vector<8x128xf32>
    %28 = vector.extract_strided_slice %10 {offsets = [0, 256], sizes = [8, 128], strides = [1, 1]} : vector<8x384xf32> to vector<8x128xf32>
    %29 = vector.extract_strided_slice %11 {offsets = [0, 256], sizes = [8, 128], strides = [1, 1]} : vector<8x384xf32> to vector<8x128xf32>
    %30 = vector.broadcast %8 : vector<1x128xf32> to vector<8x128xf32>
    %31 = arith.addf %29, %30 : vector<8x128xf32>
    %32 = arith.mulf %19, %31 : vector<8x128xf32>
    %33 = arith.addf %28, %32 : vector<8x128xf32>
    %34 = math.tanh %33 : vector<8x128xf32>
    %cst_17 = arith.constant 1.000000e+00 : f32
    %35 = vector.broadcast %cst_17 : f32 to vector<8x128xf32>
    %36 = arith.subf %35, %27 : vector<8x128xf32>
    %37 = arith.mulf %36, %34 : vector<8x128xf32>
    %38 = arith.mulf %27, %9 : vector<8x128xf32>
    %39 = arith.addf %37, %38 : vector<8x128xf32>
    %c0_18 = arith.constant 0 : index
    %c0_19 = arith.constant 0 : index
    %40 = vector.load %arg11[%c0_18, %c0_19] : memref<64x128xf32, #tpu.memory_space<vmem>>, vector<8x128xf32>
    tpu.vector_store %arg11[%c0_18, %c0_19], %39 {strides = array<i32>} : memref<64x128xf32, #tpu.memory_space<vmem>>, vector<8x128xf32>,
    %c8 = arith.constant 8 : index
    %c0_20 = arith.constant 0 : index
    %41 = vector.load %arg10[%c8, %c0_20] : memref<64x384xf32, #tpu.memory_space<vmem>>, vector<8x384xf32>
    %cst_21 = arith.constant dense<0.000000e+00> : vector<8x384xf32>
    %42 = tpu.matmul %39, %7, %cst_21 {dimension_numbers = #tpu.dot_dimension_numbers<[1], [0], [0], [1], [0, 0, 1, 1], [], []>} : vector<8x128xf32>, vector<128x384xf32>, vector<8x384xf32> -> vector<8x384xf32>
    %43 = vector.extract_strided_slice %41 {offsets = [0, 0], sizes = [8, 128], strides = [1, 1]} : vector<8x384xf32> to vector<8x128xf32>
    %44 = vector.extract_strided_slice %42 {offsets = [0, 0], sizes = [8, 128], strides = [1, 1]} : vector<8x384xf32> to vector<8x128xf32>
    %45 = arith.addf %43, %44 : vector<8x128xf32>
    %46 = arith.negf %45 : vector<8x128xf32>
    %47 = math.exp %46 : vector<8x128xf32>
    %cst_22 = arith.constant 1.000000e+00 : f32
    %48 = vector.broadcast %cst_22 : f32 to vector<8x128xf32>
    %49 = arith.addf %48, %47 : vector<8x128xf32>
    %50 = arith.divf %48, %49 : vector<8x128xf32>
    %51 = vector.extract_strided_slice %41 {offsets = [0, 128], sizes = [8, 128], strides = [1, 1]} : vector<8x384xf32> to vector<8x128xf32>
    %52 = vector.extract_strided_slice %42 {offsets = [0, 128], sizes = [8, 128], strides = [1, 1]} : vector<8x384xf32> to vector<8x128xf32>
    %53 = arith.addf %51, %52 : vector<8x128xf32>
    %54 = arith.negf %53 : vector<8x128xf32>
    %55 = math.exp %54 : vector<8x128xf32>
    %cst_23 = arith.constant 1.000000e+00 : f32
    %56 = vector.broadcast %cst_23 : f32 to vector<8x128xf32>
    %57 = arith.addf %56, %55 : vector<8x128xf32>
    %58 = arith.divf %56, %57 : vector<8x128xf32>
    %59 = vector.extract_strided_slice %41 {offsets = [0, 256], sizes = [8, 128], strides = [1, 1]} : vector<8x384xf32> to vector<8x128xf32>
    %60 = vector.extract_strided_slice %42 {offsets = [0, 256], sizes = [8, 128], strides = [1, 1]} : vector<8x384xf32> to vector<8x128xf32>
    %61 = vector.broadcast %8 : vector<1x128xf32> to vector<8x128xf32>
    %62 = arith.addf %60, %61 : vector<8x128xf32>
    %63 = arith.mulf %50, %62 : vector<8x128xf32>
    %64 = arith.addf %59, %63 : vector<8x128xf32>
    %65 = math.tanh %64 : vector<8x128xf32>
    %cst_24 = arith.constant 1.000000e+00 : f32
    %66 = vector.broadcast %cst_24 : f32 to vector<8x128xf32>
    %67 = arith.subf %66, %58 : vector<8x128xf32>
    %68 = arith.mulf %67, %65 : vector<8x128xf32>
    %69 = arith.mulf %58, %39 : vector<8x128xf32>
    %70 = arith.addf %68, %69 : vector<8x128xf32>
    %c8_25 = arith.constant 8 : index
    %c0_26 = arith.constant 0 : index
    %71 = vector.load %arg11[%c8_25, %c0_26] : memref<64x128xf32, #tpu.memory_space<vmem>>, vector<8x128xf32>
    tpu.vector_store %arg11[%c8_25, %c0_26], %70 {strides = array<i32>} : memref<64x128xf32, #tpu.memory_space<vmem>>, vector<8x128xf32>,
    %c16 = arith.constant 16 : index
    %c0_27 = arith.constant 0 : index
    %72 = vector.load %arg10[%c16, %c0_27] : memref<64x384xf32, #tpu.memory_space<vmem>>, vector<8x384xf32>
    %cst_28 = arith.constant dense<0.000000e+00> : vector<8x384xf32>
    %73 = tpu.matmul %70, %7, %cst_28 {dimension_numbers = #tpu.dot_dimension_numbers<[1], [0], [0], [1], [0, 0, 1, 1], [], []>} : vector<8x128xf32>, vector<128x384xf32>, vector<8x384xf32> -> vector<8x384xf32>
    %74 = vector.extract_strided_slice %72 {offsets = [0, 0], sizes = [8, 128], strides = [1, 1]} : vector<8x384xf32> to vector<8x128xf32>
    %75 = vector.extract_strided_slice %73 {offsets = [0, 0], sizes = [8, 128], strides = [1, 1]} : vector<8x384xf32> to vector<8x128xf32>
    %76 = arith.addf %74, %75 : vector<8x128xf32>
    %77 = arith.negf %76 : vector<8x128xf32>
    %78 = math.exp %77 : vector<8x128xf32>
    %cst_29 = arith.constant 1.000000e+00 : f32
    %79 = vector.broadcast %cst_29 : f32 to vector<8x128xf32>
    %80 = arith.addf %79, %78 : vector<8x128xf32>
    %81 = arith.divf %79, %80 : vector<8x128xf32>
    %82 = vector.extract_strided_slice %72 {offsets = [0, 128], sizes = [8, 128], strides = [1, 1]} : vector<8x384xf32> to vector<8x128xf32>
    %83 = vector.extract_strided_slice %73 {offsets = [0, 128], sizes = [8, 128], strides = [1, 1]} : vector<8x384xf32> to vector<8x128xf32>
    %84 = arith.addf %82, %83 : vector<8x128xf32>
    %85 = arith.negf %84 : vector<8x128xf32>
    %86 = math.exp %85 : vector<8x128xf32>
    %cst_30 = arith.constant 1.000000e+00 : f32
    %87 = vector.broadcast %cst_30 : f32 to vector<8x128xf32>
    %88 = arith.addf %87, %86 : vector<8x128xf32>
    %89 = arith.divf %87, %88 : vector<8x128xf32>
    %90 = vector.extract_strided_slice %72 {offsets = [0, 256], sizes = [8, 128], strides = [1, 1]} : vector<8x384xf32> to vector<8x128xf32>
    %91 = vector.extract_strided_slice %73 {offsets = [0, 256], sizes = [8, 128], strides = [1, 1]} : vector<8x384xf32> to vector<8x128xf32>
    %92 = vector.broadcast %8 : vector<1x128xf32> to vector<8x128xf32>
    %93 = arith.addf %91, %92 : vector<8x128xf32>
    %94 = arith.mulf %81, %93 : vector<8x128xf32>
    %95 = arith.addf %90, %94 : vector<8x128xf32>
    %96 = math.tanh %95 : vector<8x128xf32>
    %cst_31 = arith.constant 1.000000e+00 : f32
    %97 = vector.broadcast %cst_31 : f32 to vector<8x128xf32>
    %98 = arith.subf %97, %89 : vector<8x128xf32>
    %99 = arith.mulf %98, %96 : vector<8x128xf32>
    %100 = arith.mulf %89, %70 : vector<8x128xf32>
    %101 = arith.addf %99, %100 : vector<8x128xf32>
    %c16_32 = arith.constant 16 : index
    %c0_33 = arith.constant 0 : index
    %102 = vector.load %arg11[%c16_32, %c0_33] : memref<64x128xf32, #tpu.memory_space<vmem>>, vector<8x128xf32>
    tpu.vector_store %arg11[%c16_32, %c0_33], %101 {strides = array<i32>} : memref<64x128xf32, #tpu.memory_space<vmem>>, vector<8x128xf32>,
    %c24 = arith.constant 24 : index
    %c0_34 = arith.constant 0 : index
    %103 = vector.load %arg10[%c24, %c0_34] : memref<64x384xf32, #tpu.memory_space<vmem>>, vector<8x384xf32>
    %cst_35 = arith.constant dense<0.000000e+00> : vector<8x384xf32>
    %104 = tpu.matmul %101, %7, %cst_35 {dimension_numbers = #tpu.dot_dimension_numbers<[1], [0], [0], [1], [0, 0, 1, 1], [], []>} : vector<8x128xf32>, vector<128x384xf32>, vector<8x384xf32> -> vector<8x384xf32>
    %105 = vector.extract_strided_slice %103 {offsets = [0, 0], sizes = [8, 128], strides = [1, 1]} : vector<8x384xf32> to vector<8x128xf32>
    %106 = vector.extract_strided_slice %104 {offsets = [0, 0], sizes = [8, 128], strides = [1, 1]} : vector<8x384xf32> to vector<8x128xf32>
    %107 = arith.addf %105, %106 : vector<8x128xf32>
    %108 = arith.negf %107 : vector<8x128xf32>
    %109 = math.exp %108 : vector<8x128xf32>
    %cst_36 = arith.constant 1.000000e+00 : f32
    %110 = vector.broadcast %cst_36 : f32 to vector<8x128xf32>
    %111 = arith.addf %110, %109 : vector<8x128xf32>
    %112 = arith.divf %110, %111 : vector<8x128xf32>
    %113 = vector.extract_strided_slice %103 {offsets = [0, 128], sizes = [8, 128], strides = [1, 1]} : vector<8x384xf32> to vector<8x128xf32>
    %114 = vector.extract_strided_slice %104 {offsets = [0, 128], sizes = [8, 128], strides = [1, 1]} : vector<8x384xf32> to vector<8x128xf32>
    %115 = arith.addf %113, %114 : vector<8x128xf32>
    %116 = arith.negf %115 : vector<8x128xf32>
    %117 = math.exp %116 : vector<8x128xf32>
    %cst_37 = arith.constant 1.000000e+00 : f32
    %118 = vector.broadcast %cst_37 : f32 to vector<8x128xf32>
    %119 = arith.addf %118, %117 : vector<8x128xf32>
    %120 = arith.divf %118, %119 : vector<8x128xf32>
    %121 = vector.extract_strided_slice %103 {offsets = [0, 256], sizes = [8, 128], strides = [1, 1]} : vector<8x384xf32> to vector<8x128xf32>
    %122 = vector.extract_strided_slice %104 {offsets = [0, 256], sizes = [8, 128], strides = [1, 1]} : vector<8x384xf32> to vector<8x128xf32>
    %123 = vector.broadcast %8 : vector<1x128xf32> to vector<8x128xf32>
    %124 = arith.addf %122, %123 : vector<8x128xf32>
    %125 = arith.mulf %112, %124 : vector<8x128xf32>
    %126 = arith.addf %121, %125 : vector<8x128xf32>
    %127 = math.tanh %126 : vector<8x128xf32>
    %cst_38 = arith.constant 1.000000e+00 : f32
    %128 = vector.broadcast %cst_38 : f32 to vector<8x128xf32>
    %129 = arith.subf %128, %120 : vector<8x128xf32>
    %130 = arith.mulf %129, %127 : vector<8x128xf32>
    %131 = arith.mulf %120, %101 : vector<8x128xf32>
    %132 = arith.addf %130, %131 : vector<8x128xf32>
    %c24_39 = arith.constant 24 : index
    %c0_40 = arith.constant 0 : index
    %133 = vector.load %arg11[%c24_39, %c0_40] : memref<64x128xf32, #tpu.memory_space<vmem>>, vector<8x128xf32>
    tpu.vector_store %arg11[%c24_39, %c0_40], %132 {strides = array<i32>} : memref<64x128xf32, #tpu.memory_space<vmem>>, vector<8x128xf32>,
    %c32 = arith.constant 32 : index
    %c0_41 = arith.constant 0 : index
    %134 = vector.load %arg10[%c32, %c0_41] : memref<64x384xf32, #tpu.memory_space<vmem>>, vector<8x384xf32>
    %cst_42 = arith.constant dense<0.000000e+00> : vector<8x384xf32>
    %135 = tpu.matmul %132, %7, %cst_42 {dimension_numbers = #tpu.dot_dimension_numbers<[1], [0], [0], [1], [0, 0, 1, 1], [], []>} : vector<8x128xf32>, vector<128x384xf32>, vector<8x384xf32> -> vector<8x384xf32>
    %136 = vector.extract_strided_slice %134 {offsets = [0, 0], sizes = [8, 128], strides = [1, 1]} : vector<8x384xf32> to vector<8x128xf32>
    %137 = vector.extract_strided_slice %135 {offsets = [0, 0], sizes = [8, 128], strides = [1, 1]} : vector<8x384xf32> to vector<8x128xf32>
    %138 = arith.addf %136, %137 : vector<8x128xf32>
    %139 = arith.negf %138 : vector<8x128xf32>
    %140 = math.exp %139 : vector<8x128xf32>
    %cst_43 = arith.constant 1.000000e+00 : f32
    %141 = vector.broadcast %cst_43 : f32 to vector<8x128xf32>
    %142 = arith.addf %141, %140 : vector<8x128xf32>
    %143 = arith.divf %141, %142 : vector<8x128xf32>
    %144 = vector.extract_strided_slice %134 {offsets = [0, 128], sizes = [8, 128], strides = [1, 1]} : vector<8x384xf32> to vector<8x128xf32>
    %145 = vector.extract_strided_slice %135 {offsets = [0, 128], sizes = [8, 128], strides = [1, 1]} : vector<8x384xf32> to vector<8x128xf32>
    %146 = arith.addf %144, %145 : vector<8x128xf32>
    %147 = arith.negf %146 : vector<8x128xf32>
    %148 = math.exp %147 : vector<8x128xf32>
    %cst_44 = arith.constant 1.000000e+00 : f32
    %149 = vector.broadcast %cst_44 : f32 to vector<8x128xf32>
    %150 = arith.addf %149, %148 : vector<8x128xf32>
    %151 = arith.divf %149, %150 : vector<8x128xf32>
    %152 = vector.extract_strided_slice %134 {offsets = [0, 256], sizes = [8, 128], strides = [1, 1]} : vector<8x384xf32> to vector<8x128xf32>
    %153 = vector.extract_strided_slice %135 {offsets = [0, 256], sizes = [8, 128], strides = [1, 1]} : vector<8x384xf32> to vector<8x128xf32>
    %154 = vector.broadcast %8 : vector<1x128xf32> to vector<8x128xf32>
    %155 = arith.addf %153, %154 : vector<8x128xf32>
    %156 = arith.mulf %143, %155 : vector<8x128xf32>
    %157 = arith.addf %152, %156 : vector<8x128xf32>
    %158 = math.tanh %157 : vector<8x128xf32>
    %cst_45 = arith.constant 1.000000e+00 : f32
    %159 = vector.broadcast %cst_45 : f32 to vector<8x128xf32>
    %160 = arith.subf %159, %151 : vector<8x128xf32>
    %161 = arith.mulf %160, %158 : vector<8x128xf32>
    %162 = arith.mulf %151, %132 : vector<8x128xf32>
    %163 = arith.addf %161, %162 : vector<8x128xf32>
    %c32_46 = arith.constant 32 : index
    %c0_47 = arith.constant 0 : index
    %164 = vector.load %arg11[%c32_46, %c0_47] : memref<64x128xf32, #tpu.memory_space<vmem>>, vector<8x128xf32>
    tpu.vector_store %arg11[%c32_46, %c0_47], %163 {strides = array<i32>} : memref<64x128xf32, #tpu.memory_space<vmem>>, vector<8x128xf32>,
    %c40 = arith.constant 40 : index
    %c0_48 = arith.constant 0 : index
    %165 = vector.load %arg10[%c40, %c0_48] : memref<64x384xf32, #tpu.memory_space<vmem>>, vector<8x384xf32>
    %cst_49 = arith.constant dense<0.000000e+00> : vector<8x384xf32>
    %166 = tpu.matmul %163, %7, %cst_49 {dimension_numbers = #tpu.dot_dimension_numbers<[1], [0], [0], [1], [0, 0, 1, 1], [], []>} : vector<8x128xf32>, vector<128x384xf32>, vector<8x384xf32> -> vector<8x384xf32>
    %167 = vector.extract_strided_slice %165 {offsets = [0, 0], sizes = [8, 128], strides = [1, 1]} : vector<8x384xf32> to vector<8x128xf32>
    %168 = vector.extract_strided_slice %166 {offsets = [0, 0], sizes = [8, 128], strides = [1, 1]} : vector<8x384xf32> to vector<8x128xf32>
    %169 = arith.addf %167, %168 : vector<8x128xf32>
    %170 = arith.negf %169 : vector<8x128xf32>
    %171 = math.exp %170 : vector<8x128xf32>
    %cst_50 = arith.constant 1.000000e+00 : f32
    %172 = vector.broadcast %cst_50 : f32 to vector<8x128xf32>
    %173 = arith.addf %172, %171 : vector<8x128xf32>
    %174 = arith.divf %172, %173 : vector<8x128xf32>
    %175 = vector.extract_strided_slice %165 {offsets = [0, 128], sizes = [8, 128], strides = [1, 1]} : vector<8x384xf32> to vector<8x128xf32>
    %176 = vector.extract_strided_slice %166 {offsets = [0, 128], sizes = [8, 128], strides = [1, 1]} : vector<8x384xf32> to vector<8x128xf32>
    %177 = arith.addf %175, %176 : vector<8x128xf32>
    %178 = arith.negf %177 : vector<8x128xf32>
    %179 = math.exp %178 : vector<8x128xf32>
    %cst_51 = arith.constant 1.000000e+00 : f32
    %180 = vector.broadcast %cst_51 : f32 to vector<8x128xf32>
    %181 = arith.addf %180, %179 : vector<8x128xf32>
    %182 = arith.divf %180, %181 : vector<8x128xf32>
    %183 = vector.extract_strided_slice %165 {offsets = [0, 256], sizes = [8, 128], strides = [1, 1]} : vector<8x384xf32> to vector<8x128xf32>
    %184 = vector.extract_strided_slice %166 {offsets = [0, 256], sizes = [8, 128], strides = [1, 1]} : vector<8x384xf32> to vector<8x128xf32>
    %185 = vector.broadcast %8 : vector<1x128xf32> to vector<8x128xf32>
    %186 = arith.addf %184, %185 : vector<8x128xf32>
    %187 = arith.mulf %174, %186 : vector<8x128xf32>
    %188 = arith.addf %183, %187 : vector<8x128xf32>
    %189 = math.tanh %188 : vector<8x128xf32>
    %cst_52 = arith.constant 1.000000e+00 : f32
    %190 = vector.broadcast %cst_52 : f32 to vector<8x128xf32>
    %191 = arith.subf %190, %182 : vector<8x128xf32>
    %192 = arith.mulf %191, %189 : vector<8x128xf32>
    %193 = arith.mulf %182, %163 : vector<8x128xf32>
    %194 = arith.addf %192, %193 : vector<8x128xf32>
    %c40_53 = arith.constant 40 : index
    %c0_54 = arith.constant 0 : index
    %195 = vector.load %arg11[%c40_53, %c0_54] : memref<64x128xf32, #tpu.memory_space<vmem>>, vector<8x128xf32>
    tpu.vector_store %arg11[%c40_53, %c0_54], %194 {strides = array<i32>} : memref<64x128xf32, #tpu.memory_space<vmem>>, vector<8x128xf32>,
    %c48 = arith.constant 48 : index
    %c0_55 = arith.constant 0 : index
    %196 = vector.load %arg10[%c48, %c0_55] : memref<64x384xf32, #tpu.memory_space<vmem>>, vector<8x384xf32>
    %cst_56 = arith.constant dense<0.000000e+00> : vector<8x384xf32>
    %197 = tpu.matmul %194, %7, %cst_56 {dimension_numbers = #tpu.dot_dimension_numbers<[1], [0], [0], [1], [0, 0, 1, 1], [], []>} : vector<8x128xf32>, vector<128x384xf32>, vector<8x384xf32> -> vector<8x384xf32>
    %198 = vector.extract_strided_slice %196 {offsets = [0, 0], sizes = [8, 128], strides = [1, 1]} : vector<8x384xf32> to vector<8x128xf32>
    %199 = vector.extract_strided_slice %197 {offsets = [0, 0], sizes = [8, 128], strides = [1, 1]} : vector<8x384xf32> to vector<8x128xf32>
    %200 = arith.addf %198, %199 : vector<8x128xf32>
    %201 = arith.negf %200 : vector<8x128xf32>
    %202 = math.exp %201 : vector<8x128xf32>
    %cst_57 = arith.constant 1.000000e+00 : f32
    %203 = vector.broadcast %cst_57 : f32 to vector<8x128xf32>
    %204 = arith.addf %203, %202 : vector<8x128xf32>
    %205 = arith.divf %203, %204 : vector<8x128xf32>
    %206 = vector.extract_strided_slice %196 {offsets = [0, 128], sizes = [8, 128], strides = [1, 1]} : vector<8x384xf32> to vector<8x128xf32>
    %207 = vector.extract_strided_slice %197 {offsets = [0, 128], sizes = [8, 128], strides = [1, 1]} : vector<8x384xf32> to vector<8x128xf32>
    %208 = arith.addf %206, %207 : vector<8x128xf32>
    %209 = arith.negf %208 : vector<8x128xf32>
    %210 = math.exp %209 : vector<8x128xf32>
    %cst_58 = arith.constant 1.000000e+00 : f32
    %211 = vector.broadcast %cst_58 : f32 to vector<8x128xf32>
    %212 = arith.addf %211, %210 : vector<8x128xf32>
    %213 = arith.divf %211, %212 : vector<8x128xf32>
    %214 = vector.extract_strided_slice %196 {offsets = [0, 256], sizes = [8, 128], strides = [1, 1]} : vector<8x384xf32> to vector<8x128xf32>
    %215 = vector.extract_strided_slice %197 {offsets = [0, 256], sizes = [8, 128], strides = [1, 1]} : vector<8x384xf32> to vector<8x128xf32>
    %216 = vector.broadcast %8 : vector<1x128xf32> to vector<8x128xf32>
    %217 = arith.addf %215, %216 : vector<8x128xf32>
    %218 = arith.mulf %205, %217 : vector<8x128xf32>
    %219 = arith.addf %214, %218 : vector<8x128xf32>
    %220 = math.tanh %219 : vector<8x128xf32>
    %cst_59 = arith.constant 1.000000e+00 : f32
    %221 = vector.broadcast %cst_59 : f32 to vector<8x128xf32>
    %222 = arith.subf %221, %213 : vector<8x128xf32>
    %223 = arith.mulf %222, %220 : vector<8x128xf32>
    %224 = arith.mulf %213, %194 : vector<8x128xf32>
    %225 = arith.addf %223, %224 : vector<8x128xf32>
    %c48_60 = arith.constant 48 : index
    %c0_61 = arith.constant 0 : index
    %226 = vector.load %arg11[%c48_60, %c0_61] : memref<64x128xf32, #tpu.memory_space<vmem>>, vector<8x128xf32>
    tpu.vector_store %arg11[%c48_60, %c0_61], %225 {strides = array<i32>} : memref<64x128xf32, #tpu.memory_space<vmem>>, vector<8x128xf32>,
    %c56 = arith.constant 56 : index
    %c0_62 = arith.constant 0 : index
    %227 = vector.load %arg10[%c56, %c0_62] : memref<64x384xf32, #tpu.memory_space<vmem>>, vector<8x384xf32>
    %cst_63 = arith.constant dense<0.000000e+00> : vector<8x384xf32>
    %228 = tpu.matmul %225, %7, %cst_63 {dimension_numbers = #tpu.dot_dimension_numbers<[1], [0], [0], [1], [0, 0, 1, 1], [], []>} : vector<8x128xf32>, vector<128x384xf32>, vector<8x384xf32> -> vector<8x384xf32>
    %229 = vector.extract_strided_slice %227 {offsets = [0, 0], sizes = [8, 128], strides = [1, 1]} : vector<8x384xf32> to vector<8x128xf32>
    %230 = vector.extract_strided_slice %228 {offsets = [0, 0], sizes = [8, 128], strides = [1, 1]} : vector<8x384xf32> to vector<8x128xf32>
    %231 = arith.addf %229, %230 : vector<8x128xf32>
    %232 = arith.negf %231 : vector<8x128xf32>
    %233 = math.exp %232 : vector<8x128xf32>
    %cst_64 = arith.constant 1.000000e+00 : f32
    %234 = vector.broadcast %cst_64 : f32 to vector<8x128xf32>
    %235 = arith.addf %234, %233 : vector<8x128xf32>
    %236 = arith.divf %234, %235 : vector<8x128xf32>
    %237 = vector.extract_strided_slice %227 {offsets = [0, 128], sizes = [8, 128], strides = [1, 1]} : vector<8x384xf32> to vector<8x128xf32>
    %238 = vector.extract_strided_slice %228 {offsets = [0, 128], sizes = [8, 128], strides = [1, 1]} : vector<8x384xf32> to vector<8x128xf32>
    %239 = arith.addf %237, %238 : vector<8x128xf32>
    %240 = arith.negf %239 : vector<8x128xf32>
    %241 = math.exp %240 : vector<8x128xf32>
    %cst_65 = arith.constant 1.000000e+00 : f32
    %242 = vector.broadcast %cst_65 : f32 to vector<8x128xf32>
    %243 = arith.addf %242, %241 : vector<8x128xf32>
    %244 = arith.divf %242, %243 : vector<8x128xf32>
    %245 = vector.extract_strided_slice %227 {offsets = [0, 256], sizes = [8, 128], strides = [1, 1]} : vector<8x384xf32> to vector<8x128xf32>
    %246 = vector.extract_strided_slice %228 {offsets = [0, 256], sizes = [8, 128], strides = [1, 1]} : vector<8x384xf32> to vector<8x128xf32>
    %247 = vector.broadcast %8 : vector<1x128xf32> to vector<8x128xf32>
    %248 = arith.addf %246, %247 : vector<8x128xf32>
    %249 = arith.mulf %236, %248 : vector<8x128xf32>
    %250 = arith.addf %245, %249 : vector<8x128xf32>
    %251 = math.tanh %250 : vector<8x128xf32>
    %cst_66 = arith.constant 1.000000e+00 : f32
    %252 = vector.broadcast %cst_66 : f32 to vector<8x128xf32>
    %253 = arith.subf %252, %244 : vector<8x128xf32>
    %254 = arith.mulf %253, %251 : vector<8x128xf32>
    %255 = arith.mulf %244, %225 : vector<8x128xf32>
    %256 = arith.addf %254, %255 : vector<8x128xf32>
    %c56_67 = arith.constant 56 : index
    %c0_68 = arith.constant 0 : index
    %257 = vector.load %arg11[%c56_67, %c0_68] : memref<64x128xf32, #tpu.memory_space<vmem>>, vector<8x128xf32>
    tpu.vector_store %arg11[%c56_67, %c0_68], %256 {strides = array<i32>} : memref<64x128xf32, #tpu.memory_space<vmem>>, vector<8x128xf32>,
    %c0_69 = arith.constant 0 : index
    %c0_70 = arith.constant 0 : index
    %258 = vector.load %arg11[%c0_69, %c0_70] : memref<64x128xf32, #tpu.memory_space<vmem>>, vector<64x128xf32>
    %c0_71 = arith.constant 0 : index
    %c0_72 = arith.constant 0 : index
    %259 = vector.load %arg5[%c0_71, %c0_72] : memref<128x384xf32, #tpu.memory_space<vmem>>, vector<128x384xf32>
    %cst_73 = arith.constant dense<0.000000e+00> : vector<64x384xf32>
    %260 = tpu.matmul %258, %259, %cst_73 {dimension_numbers = #tpu.dot_dimension_numbers<[1], [0], [0], [1], [0, 0, 1, 1], [], []>} : vector<64x128xf32>, vector<128x384xf32>, vector<64x384xf32> -> vector<64x384xf32>
    %c0_74 = arith.constant 0 : index
    %c0_75 = arith.constant 0 : index
    %261 = vector.load %arg7[%c0_74, %c0_75] : memref<1x384xf32, #tpu.memory_space<vmem>>, vector<1x384xf32>
    %262 = vector.broadcast %261 : vector<1x384xf32> to vector<64x384xf32>
    %263 = arith.addf %260, %262 : vector<64x384xf32>
    %c0_76 = arith.constant 0 : index
    %c0_77 = arith.constant 0 : index
    %264 = vector.load %arg10[%c0_76, %c0_77] : memref<64x384xf32, #tpu.memory_space<vmem>>, vector<64x384xf32>
    tpu.vector_store %arg10[%c0_76, %c0_77], %263 {strides = array<i32>} : memref<64x384xf32, #tpu.memory_space<vmem>>, vector<64x384xf32>,
    %c0_78 = arith.constant 0 : index
    %c0_79 = arith.constant 0 : index
    %265 = vector.load %arg6[%c0_78, %c0_79] : memref<128x384xf32, #tpu.memory_space<vmem>>, vector<128x384xf32>
    %c0_80 = arith.constant 0 : index
    %c0_81 = arith.constant 0 : index
    %266 = vector.load %arg8[%c0_80, %c0_81] : memref<1x128xf32, #tpu.memory_space<vmem>>, vector<1x128xf32>
    %cst_82 = arith.constant 0.000000e+00 : f32
    %267 = vector.broadcast %cst_82 : f32 to vector<8x128xf32>
    %c0_83 = arith.constant 0 : index
    %c0_84 = arith.constant 0 : index
    %268 = vector.load %arg10[%c0_83, %c0_84] : memref<64x384xf32, #tpu.memory_space<vmem>>, vector<8x384xf32>
    %cst_85 = arith.constant dense<0.000000e+00> : vector<8x384xf32>
    %269 = tpu.matmul %267, %265, %cst_85 {dimension_numbers = #tpu.dot_dimension_numbers<[1], [0], [0], [1], [0, 0, 1, 1], [], []>} : vector<8x128xf32>, vector<128x384xf32>, vector<8x384xf32> -> vector<8x384xf32>
    %270 = vector.extract_strided_slice %268 {offsets = [0, 0], sizes = [8, 128], strides = [1, 1]} : vector<8x384xf32> to vector<8x128xf32>
    %271 = vector.extract_strided_slice %269 {offsets = [0, 0], sizes = [8, 128], strides = [1, 1]} : vector<8x384xf32> to vector<8x128xf32>
    %272 = arith.addf %270, %271 : vector<8x128xf32>
    %273 = arith.negf %272 : vector<8x128xf32>
    %274 = math.exp %273 : vector<8x128xf32>
    %cst_86 = arith.constant 1.000000e+00 : f32
    %275 = vector.broadcast %cst_86 : f32 to vector<8x128xf32>
    %276 = arith.addf %275, %274 : vector<8x128xf32>
    %277 = arith.divf %275, %276 : vector<8x128xf32>
    %278 = vector.extract_strided_slice %268 {offsets = [0, 128], sizes = [8, 128], strides = [1, 1]} : vector<8x384xf32> to vector<8x128xf32>
    %279 = vector.extract_strided_slice %269 {offsets = [0, 128], sizes = [8, 128], strides = [1, 1]} : vector<8x384xf32> to vector<8x128xf32>
    %280 = arith.addf %278, %279 : vector<8x128xf32>
    %281 = arith.negf %280 : vector<8x128xf32>
    %282 = math.exp %281 : vector<8x128xf32>
    %cst_87 = arith.constant 1.000000e+00 : f32
    %283 = vector.broadcast %cst_87 : f32 to vector<8x128xf32>
    %284 = arith.addf %283, %282 : vector<8x128xf32>
    %285 = arith.divf %283, %284 : vector<8x128xf32>
    %286 = vector.extract_strided_slice %268 {offsets = [0, 256], sizes = [8, 128], strides = [1, 1]} : vector<8x384xf32> to vector<8x128xf32>
    %287 = vector.extract_strided_slice %269 {offsets = [0, 256], sizes = [8, 128], strides = [1, 1]} : vector<8x384xf32> to vector<8x128xf32>
    %288 = vector.broadcast %266 : vector<1x128xf32> to vector<8x128xf32>
    %289 = arith.addf %287, %288 : vector<8x128xf32>
    %290 = arith.mulf %277, %289 : vector<8x128xf32>
    %291 = arith.addf %286, %290 : vector<8x128xf32>
    %292 = math.tanh %291 : vector<8x128xf32>
    %cst_88 = arith.constant 1.000000e+00 : f32
    %293 = vector.broadcast %cst_88 : f32 to vector<8x128xf32>
    %294 = arith.subf %293, %285 : vector<8x128xf32>
    %295 = arith.mulf %294, %292 : vector<8x128xf32>
    %296 = arith.mulf %285, %267 : vector<8x128xf32>
    %297 = arith.addf %295, %296 : vector<8x128xf32>
    %c0_89 = arith.constant 0 : index
    %c0_90 = arith.constant 0 : index
    %298 = vector.load %arg9[%c0_89, %c0_90] : memref<64x128xf32, #tpu.memory_space<vmem>>, vector<8x128xf32>
    tpu.vector_store %arg9[%c0_89, %c0_90], %297 {strides = array<i32>} : memref<64x128xf32, #tpu.memory_space<vmem>>, vector<8x128xf32>,
    %c8_91 = arith.constant 8 : index
    %c0_92 = arith.constant 0 : index
    %299 = vector.load %arg10[%c8_91, %c0_92] : memref<64x384xf32, #tpu.memory_space<vmem>>, vector<8x384xf32>
    %cst_93 = arith.constant dense<0.000000e+00> : vector<8x384xf32>
    %300 = tpu.matmul %297, %265, %cst_93 {dimension_numbers = #tpu.dot_dimension_numbers<[1], [0], [0], [1], [0, 0, 1, 1], [], []>} : vector<8x128xf32>, vector<128x384xf32>, vector<8x384xf32> -> vector<8x384xf32>
    %301 = vector.extract_strided_slice %299 {offsets = [0, 0], sizes = [8, 128], strides = [1, 1]} : vector<8x384xf32> to vector<8x128xf32>
    %302 = vector.extract_strided_slice %300 {offsets = [0, 0], sizes = [8, 128], strides = [1, 1]} : vector<8x384xf32> to vector<8x128xf32>
    %303 = arith.addf %301, %302 : vector<8x128xf32>
    %304 = arith.negf %303 : vector<8x128xf32>
    %305 = math.exp %304 : vector<8x128xf32>
    %cst_94 = arith.constant 1.000000e+00 : f32
    %306 = vector.broadcast %cst_94 : f32 to vector<8x128xf32>
    %307 = arith.addf %306, %305 : vector<8x128xf32>
    %308 = arith.divf %306, %307 : vector<8x128xf32>
    %309 = vector.extract_strided_slice %299 {offsets = [0, 128], sizes = [8, 128], strides = [1, 1]} : vector<8x384xf32> to vector<8x128xf32>
    %310 = vector.extract_strided_slice %300 {offsets = [0, 128], sizes = [8, 128], strides = [1, 1]} : vector<8x384xf32> to vector<8x128xf32>
    %311 = arith.addf %309, %310 : vector<8x128xf32>
    %312 = arith.negf %311 : vector<8x128xf32>
    %313 = math.exp %312 : vector<8x128xf32>
    %cst_95 = arith.constant 1.000000e+00 : f32
    %314 = vector.broadcast %cst_95 : f32 to vector<8x128xf32>
    %315 = arith.addf %314, %313 : vector<8x128xf32>
    %316 = arith.divf %314, %315 : vector<8x128xf32>
    %317 = vector.extract_strided_slice %299 {offsets = [0, 256], sizes = [8, 128], strides = [1, 1]} : vector<8x384xf32> to vector<8x128xf32>
    %318 = vector.extract_strided_slice %300 {offsets = [0, 256], sizes = [8, 128], strides = [1, 1]} : vector<8x384xf32> to vector<8x128xf32>
    %319 = vector.broadcast %266 : vector<1x128xf32> to vector<8x128xf32>
    %320 = arith.addf %318, %319 : vector<8x128xf32>
    %321 = arith.mulf %308, %320 : vector<8x128xf32>
    %322 = arith.addf %317, %321 : vector<8x128xf32>
    %323 = math.tanh %322 : vector<8x128xf32>
    %cst_96 = arith.constant 1.000000e+00 : f32
    %324 = vector.broadcast %cst_96 : f32 to vector<8x128xf32>
    %325 = arith.subf %324, %316 : vector<8x128xf32>
    %326 = arith.mulf %325, %323 : vector<8x128xf32>
    %327 = arith.mulf %316, %297 : vector<8x128xf32>
    %328 = arith.addf %326, %327 : vector<8x128xf32>
    %c8_97 = arith.constant 8 : index
    %c0_98 = arith.constant 0 : index
    %329 = vector.load %arg9[%c8_97, %c0_98] : memref<64x128xf32, #tpu.memory_space<vmem>>, vector<8x128xf32>
    tpu.vector_store %arg9[%c8_97, %c0_98], %328 {strides = array<i32>} : memref<64x128xf32, #tpu.memory_space<vmem>>, vector<8x128xf32>,
    %c16_99 = arith.constant 16 : index
    %c0_100 = arith.constant 0 : index
    %330 = vector.load %arg10[%c16_99, %c0_100] : memref<64x384xf32, #tpu.memory_space<vmem>>, vector<8x384xf32>
    %cst_101 = arith.constant dense<0.000000e+00> : vector<8x384xf32>
    %331 = tpu.matmul %328, %265, %cst_101 {dimension_numbers = #tpu.dot_dimension_numbers<[1], [0], [0], [1], [0, 0, 1, 1], [], []>} : vector<8x128xf32>, vector<128x384xf32>, vector<8x384xf32> -> vector<8x384xf32>
    %332 = vector.extract_strided_slice %330 {offsets = [0, 0], sizes = [8, 128], strides = [1, 1]} : vector<8x384xf32> to vector<8x128xf32>
    %333 = vector.extract_strided_slice %331 {offsets = [0, 0], sizes = [8, 128], strides = [1, 1]} : vector<8x384xf32> to vector<8x128xf32>
    %334 = arith.addf %332, %333 : vector<8x128xf32>
    %335 = arith.negf %334 : vector<8x128xf32>
    %336 = math.exp %335 : vector<8x128xf32>
    %cst_102 = arith.constant 1.000000e+00 : f32
    %337 = vector.broadcast %cst_102 : f32 to vector<8x128xf32>
    %338 = arith.addf %337, %336 : vector<8x128xf32>
    %339 = arith.divf %337, %338 : vector<8x128xf32>
    %340 = vector.extract_strided_slice %330 {offsets = [0, 128], sizes = [8, 128], strides = [1, 1]} : vector<8x384xf32> to vector<8x128xf32>
    %341 = vector.extract_strided_slice %331 {offsets = [0, 128], sizes = [8, 128], strides = [1, 1]} : vector<8x384xf32> to vector<8x128xf32>
    %342 = arith.addf %340, %341 : vector<8x128xf32>
    %343 = arith.negf %342 : vector<8x128xf32>
    %344 = math.exp %343 : vector<8x128xf32>
    %cst_103 = arith.constant 1.000000e+00 : f32
    %345 = vector.broadcast %cst_103 : f32 to vector<8x128xf32>
    %346 = arith.addf %345, %344 : vector<8x128xf32>
    %347 = arith.divf %345, %346 : vector<8x128xf32>
    %348 = vector.extract_strided_slice %330 {offsets = [0, 256], sizes = [8, 128], strides = [1, 1]} : vector<8x384xf32> to vector<8x128xf32>
    %349 = vector.extract_strided_slice %331 {offsets = [0, 256], sizes = [8, 128], strides = [1, 1]} : vector<8x384xf32> to vector<8x128xf32>
    %350 = vector.broadcast %266 : vector<1x128xf32> to vector<8x128xf32>
    %351 = arith.addf %349, %350 : vector<8x128xf32>
    %352 = arith.mulf %339, %351 : vector<8x128xf32>
    %353 = arith.addf %348, %352 : vector<8x128xf32>
    %354 = math.tanh %353 : vector<8x128xf32>
    %cst_104 = arith.constant 1.000000e+00 : f32
    %355 = vector.broadcast %cst_104 : f32 to vector<8x128xf32>
    %356 = arith.subf %355, %347 : vector<8x128xf32>
    %357 = arith.mulf %356, %354 : vector<8x128xf32>
    %358 = arith.mulf %347, %328 : vector<8x128xf32>
    %359 = arith.addf %357, %358 : vector<8x128xf32>
    %c16_105 = arith.constant 16 : index
    %c0_106 = arith.constant 0 : index
    %360 = vector.load %arg9[%c16_105, %c0_106] : memref<64x128xf32, #tpu.memory_space<vmem>>, vector<8x128xf32>
    tpu.vector_store %arg9[%c16_105, %c0_106], %359 {strides = array<i32>} : memref<64x128xf32, #tpu.memory_space<vmem>>, vector<8x128xf32>,
    %c24_107 = arith.constant 24 : index
    %c0_108 = arith.constant 0 : index
    %361 = vector.load %arg10[%c24_107, %c0_108] : memref<64x384xf32, #tpu.memory_space<vmem>>, vector<8x384xf32>
    %cst_109 = arith.constant dense<0.000000e+00> : vector<8x384xf32>
    %362 = tpu.matmul %359, %265, %cst_109 {dimension_numbers = #tpu.dot_dimension_numbers<[1], [0], [0], [1], [0, 0, 1, 1], [], []>} : vector<8x128xf32>, vector<128x384xf32>, vector<8x384xf32> -> vector<8x384xf32>
    %363 = vector.extract_strided_slice %361 {offsets = [0, 0], sizes = [8, 128], strides = [1, 1]} : vector<8x384xf32> to vector<8x128xf32>
    %364 = vector.extract_strided_slice %362 {offsets = [0, 0], sizes = [8, 128], strides = [1, 1]} : vector<8x384xf32> to vector<8x128xf32>
    %365 = arith.addf %363, %364 : vector<8x128xf32>
    %366 = arith.negf %365 : vector<8x128xf32>
    %367 = math.exp %366 : vector<8x128xf32>
    %cst_110 = arith.constant 1.000000e+00 : f32
    %368 = vector.broadcast %cst_110 : f32 to vector<8x128xf32>
    %369 = arith.addf %368, %367 : vector<8x128xf32>
    %370 = arith.divf %368, %369 : vector<8x128xf32>
    %371 = vector.extract_strided_slice %361 {offsets = [0, 128], sizes = [8, 128], strides = [1, 1]} : vector<8x384xf32> to vector<8x128xf32>
    %372 = vector.extract_strided_slice %362 {offsets = [0, 128], sizes = [8, 128], strides = [1, 1]} : vector<8x384xf32> to vector<8x128xf32>
    %373 = arith.addf %371, %372 : vector<8x128xf32>
    %374 = arith.negf %373 : vector<8x128xf32>
    %375 = math.exp %374 : vector<8x128xf32>
    %cst_111 = arith.constant 1.000000e+00 : f32
    %376 = vector.broadcast %cst_111 : f32 to vector<8x128xf32>
    %377 = arith.addf %376, %375 : vector<8x128xf32>
    %378 = arith.divf %376, %377 : vector<8x128xf32>
    %379 = vector.extract_strided_slice %361 {offsets = [0, 256], sizes = [8, 128], strides = [1, 1]} : vector<8x384xf32> to vector<8x128xf32>
    %380 = vector.extract_strided_slice %362 {offsets = [0, 256], sizes = [8, 128], strides = [1, 1]} : vector<8x384xf32> to vector<8x128xf32>
    %381 = vector.broadcast %266 : vector<1x128xf32> to vector<8x128xf32>
    %382 = arith.addf %380, %381 : vector<8x128xf32>
    %383 = arith.mulf %370, %382 : vector<8x128xf32>
    %384 = arith.addf %379, %383 : vector<8x128xf32>
    %385 = math.tanh %384 : vector<8x128xf32>
    %cst_112 = arith.constant 1.000000e+00 : f32
    %386 = vector.broadcast %cst_112 : f32 to vector<8x128xf32>
    %387 = arith.subf %386, %378 : vector<8x128xf32>
    %388 = arith.mulf %387, %385 : vector<8x128xf32>
    %389 = arith.mulf %378, %359 : vector<8x128xf32>
    %390 = arith.addf %388, %389 : vector<8x128xf32>
    %c24_113 = arith.constant 24 : index
    %c0_114 = arith.constant 0 : index
    %391 = vector.load %arg9[%c24_113, %c0_114] : memref<64x128xf32, #tpu.memory_space<vmem>>, vector<8x128xf32>
    tpu.vector_store %arg9[%c24_113, %c0_114], %390 {strides = array<i32>} : memref<64x128xf32, #tpu.memory_space<vmem>>, vector<8x128xf32>,
    %c32_115 = arith.constant 32 : index
    %c0_116 = arith.constant 0 : index
    %392 = vector.load %arg10[%c32_115, %c0_116] : memref<64x384xf32, #tpu.memory_space<vmem>>, vector<8x384xf32>
    %cst_117 = arith.constant dense<0.000000e+00> : vector<8x384xf32>
    %393 = tpu.matmul %390, %265, %cst_117 {dimension_numbers = #tpu.dot_dimension_numbers<[1], [0], [0], [1], [0, 0, 1, 1], [], []>} : vector<8x128xf32>, vector<128x384xf32>, vector<8x384xf32> -> vector<8x384xf32>
    %394 = vector.extract_strided_slice %392 {offsets = [0, 0], sizes = [8, 128], strides = [1, 1]} : vector<8x384xf32> to vector<8x128xf32>
    %395 = vector.extract_strided_slice %393 {offsets = [0, 0], sizes = [8, 128], strides = [1, 1]} : vector<8x384xf32> to vector<8x128xf32>
    %396 = arith.addf %394, %395 : vector<8x128xf32>
    %397 = arith.negf %396 : vector<8x128xf32>
    %398 = math.exp %397 : vector<8x128xf32>
    %cst_118 = arith.constant 1.000000e+00 : f32
    %399 = vector.broadcast %cst_118 : f32 to vector<8x128xf32>
    %400 = arith.addf %399, %398 : vector<8x128xf32>
    %401 = arith.divf %399, %400 : vector<8x128xf32>
    %402 = vector.extract_strided_slice %392 {offsets = [0, 128], sizes = [8, 128], strides = [1, 1]} : vector<8x384xf32> to vector<8x128xf32>
    %403 = vector.extract_strided_slice %393 {offsets = [0, 128], sizes = [8, 128], strides = [1, 1]} : vector<8x384xf32> to vector<8x128xf32>
    %404 = arith.addf %402, %403 : vector<8x128xf32>
    %405 = arith.negf %404 : vector<8x128xf32>
    %406 = math.exp %405 : vector<8x128xf32>
    %cst_119 = arith.constant 1.000000e+00 : f32
    %407 = vector.broadcast %cst_119 : f32 to vector<8x128xf32>
    %408 = arith.addf %407, %406 : vector<8x128xf32>
    %409 = arith.divf %407, %408 : vector<8x128xf32>
    %410 = vector.extract_strided_slice %392 {offsets = [0, 256], sizes = [8, 128], strides = [1, 1]} : vector<8x384xf32> to vector<8x128xf32>
    %411 = vector.extract_strided_slice %393 {offsets = [0, 256], sizes = [8, 128], strides = [1, 1]} : vector<8x384xf32> to vector<8x128xf32>
    %412 = vector.broadcast %266 : vector<1x128xf32> to vector<8x128xf32>
    %413 = arith.addf %411, %412 : vector<8x128xf32>
    %414 = arith.mulf %401, %413 : vector<8x128xf32>
    %415 = arith.addf %410, %414 : vector<8x128xf32>
    %416 = math.tanh %415 : vector<8x128xf32>
    %cst_120 = arith.constant 1.000000e+00 : f32
    %417 = vector.broadcast %cst_120 : f32 to vector<8x128xf32>
    %418 = arith.subf %417, %409 : vector<8x128xf32>
    %419 = arith.mulf %418, %416 : vector<8x128xf32>
    %420 = arith.mulf %409, %390 : vector<8x128xf32>
    %421 = arith.addf %419, %420 : vector<8x128xf32>
    %c32_121 = arith.constant 32 : index
    %c0_122 = arith.constant 0 : index
    %422 = vector.load %arg9[%c32_121, %c0_122] : memref<64x128xf32, #tpu.memory_space<vmem>>, vector<8x128xf32>
    tpu.vector_store %arg9[%c32_121, %c0_122], %421 {strides = array<i32>} : memref<64x128xf32, #tpu.memory_space<vmem>>, vector<8x128xf32>,
    %c40_123 = arith.constant 40 : index
    %c0_124 = arith.constant 0 : index
    %423 = vector.load %arg10[%c40_123, %c0_124] : memref<64x384xf32, #tpu.memory_space<vmem>>, vector<8x384xf32>
    %cst_125 = arith.constant dense<0.000000e+00> : vector<8x384xf32>
    %424 = tpu.matmul %421, %265, %cst_125 {dimension_numbers = #tpu.dot_dimension_numbers<[1], [0], [0], [1], [0, 0, 1, 1], [], []>} : vector<8x128xf32>, vector<128x384xf32>, vector<8x384xf32> -> vector<8x384xf32>
    %425 = vector.extract_strided_slice %423 {offsets = [0, 0], sizes = [8, 128], strides = [1, 1]} : vector<8x384xf32> to vector<8x128xf32>
    %426 = vector.extract_strided_slice %424 {offsets = [0, 0], sizes = [8, 128], strides = [1, 1]} : vector<8x384xf32> to vector<8x128xf32>
    %427 = arith.addf %425, %426 : vector<8x128xf32>
    %428 = arith.negf %427 : vector<8x128xf32>
    %429 = math.exp %428 : vector<8x128xf32>
    %cst_126 = arith.constant 1.000000e+00 : f32
    %430 = vector.broadcast %cst_126 : f32 to vector<8x128xf32>
    %431 = arith.addf %430, %429 : vector<8x128xf32>
    %432 = arith.divf %430, %431 : vector<8x128xf32>
    %433 = vector.extract_strided_slice %423 {offsets = [0, 128], sizes = [8, 128], strides = [1, 1]} : vector<8x384xf32> to vector<8x128xf32>
    %434 = vector.extract_strided_slice %424 {offsets = [0, 128], sizes = [8, 128], strides = [1, 1]} : vector<8x384xf32> to vector<8x128xf32>
    %435 = arith.addf %433, %434 : vector<8x128xf32>
    %436 = arith.negf %435 : vector<8x128xf32>
    %437 = math.exp %436 : vector<8x128xf32>
    %cst_127 = arith.constant 1.000000e+00 : f32
    %438 = vector.broadcast %cst_127 : f32 to vector<8x128xf32>
    %439 = arith.addf %438, %437 : vector<8x128xf32>
    %440 = arith.divf %438, %439 : vector<8x128xf32>
    %441 = vector.extract_strided_slice %423 {offsets = [0, 256], sizes = [8, 128], strides = [1, 1]} : vector<8x384xf32> to vector<8x128xf32>
    %442 = vector.extract_strided_slice %424 {offsets = [0, 256], sizes = [8, 128], strides = [1, 1]} : vector<8x384xf32> to vector<8x128xf32>
    %443 = vector.broadcast %266 : vector<1x128xf32> to vector<8x128xf32>
    %444 = arith.addf %442, %443 : vector<8x128xf32>
    %445 = arith.mulf %432, %444 : vector<8x128xf32>
    %446 = arith.addf %441, %445 : vector<8x128xf32>
    %447 = math.tanh %446 : vector<8x128xf32>
    %cst_128 = arith.constant 1.000000e+00 : f32
    %448 = vector.broadcast %cst_128 : f32 to vector<8x128xf32>
    %449 = arith.subf %448, %440 : vector<8x128xf32>
    %450 = arith.mulf %449, %447 : vector<8x128xf32>
    %451 = arith.mulf %440, %421 : vector<8x128xf32>
    %452 = arith.addf %450, %451 : vector<8x128xf32>
    %c40_129 = arith.constant 40 : index
    %c0_130 = arith.constant 0 : index
    %453 = vector.load %arg9[%c40_129, %c0_130] : memref<64x128xf32, #tpu.memory_space<vmem>>, vector<8x128xf32>
    tpu.vector_store %arg9[%c40_129, %c0_130], %452 {strides = array<i32>} : memref<64x128xf32, #tpu.memory_space<vmem>>, vector<8x128xf32>,
    %c48_131 = arith.constant 48 : index
    %c0_132 = arith.constant 0 : index
    %454 = vector.load %arg10[%c48_131, %c0_132] : memref<64x384xf32, #tpu.memory_space<vmem>>, vector<8x384xf32>
    %cst_133 = arith.constant dense<0.000000e+00> : vector<8x384xf32>
    %455 = tpu.matmul %452, %265, %cst_133 {dimension_numbers = #tpu.dot_dimension_numbers<[1], [0], [0], [1], [0, 0, 1, 1], [], []>} : vector<8x128xf32>, vector<128x384xf32>, vector<8x384xf32> -> vector<8x384xf32>
    %456 = vector.extract_strided_slice %454 {offsets = [0, 0], sizes = [8, 128], strides = [1, 1]} : vector<8x384xf32> to vector<8x128xf32>
    %457 = vector.extract_strided_slice %455 {offsets = [0, 0], sizes = [8, 128], strides = [1, 1]} : vector<8x384xf32> to vector<8x128xf32>
    %458 = arith.addf %456, %457 : vector<8x128xf32>
    %459 = arith.negf %458 : vector<8x128xf32>
    %460 = math.exp %459 : vector<8x128xf32>
    %cst_134 = arith.constant 1.000000e+00 : f32
    %461 = vector.broadcast %cst_134 : f32 to vector<8x128xf32>
    %462 = arith.addf %461, %460 : vector<8x128xf32>
    %463 = arith.divf %461, %462 : vector<8x128xf32>
    %464 = vector.extract_strided_slice %454 {offsets = [0, 128], sizes = [8, 128], strides = [1, 1]} : vector<8x384xf32> to vector<8x128xf32>
    %465 = vector.extract_strided_slice %455 {offsets = [0, 128], sizes = [8, 128], strides = [1, 1]} : vector<8x384xf32> to vector<8x128xf32>
    %466 = arith.addf %464, %465 : vector<8x128xf32>
    %467 = arith.negf %466 : vector<8x128xf32>
    %468 = math.exp %467 : vector<8x128xf32>
    %cst_135 = arith.constant 1.000000e+00 : f32
    %469 = vector.broadcast %cst_135 : f32 to vector<8x128xf32>
    %470 = arith.addf %469, %468 : vector<8x128xf32>
    %471 = arith.divf %469, %470 : vector<8x128xf32>
    %472 = vector.extract_strided_slice %454 {offsets = [0, 256], sizes = [8, 128], strides = [1, 1]} : vector<8x384xf32> to vector<8x128xf32>
    %473 = vector.extract_strided_slice %455 {offsets = [0, 256], sizes = [8, 128], strides = [1, 1]} : vector<8x384xf32> to vector<8x128xf32>
    %474 = vector.broadcast %266 : vector<1x128xf32> to vector<8x128xf32>
    %475 = arith.addf %473, %474 : vector<8x128xf32>
    %476 = arith.mulf %463, %475 : vector<8x128xf32>
    %477 = arith.addf %472, %476 : vector<8x128xf32>
    %478 = math.tanh %477 : vector<8x128xf32>
    %cst_136 = arith.constant 1.000000e+00 : f32
    %479 = vector.broadcast %cst_136 : f32 to vector<8x128xf32>
    %480 = arith.subf %479, %471 : vector<8x128xf32>
    %481 = arith.mulf %480, %478 : vector<8x128xf32>
    %482 = arith.mulf %471, %452 : vector<8x128xf32>
    %483 = arith.addf %481, %482 : vector<8x128xf32>
    %c48_137 = arith.constant 48 : index
    %c0_138 = arith.constant 0 : index
    %484 = vector.load %arg9[%c48_137, %c0_138] : memref<64x128xf32, #tpu.memory_space<vmem>>, vector<8x128xf32>
    tpu.vector_store %arg9[%c48_137, %c0_138], %483 {strides = array<i32>} : memref<64x128xf32, #tpu.memory_space<vmem>>, vector<8x128xf32>,
    %c56_139 = arith.constant 56 : index
    %c0_140 = arith.constant 0 : index
    %485 = vector.load %arg10[%c56_139, %c0_140] : memref<64x384xf32, #tpu.memory_space<vmem>>, vector<8x384xf32>
    %cst_141 = arith.constant dense<0.000000e+00> : vector<8x384xf32>
    %486 = tpu.matmul %483, %265, %cst_141 {dimension_numbers = #tpu.dot_dimension_numbers<[1], [0], [0], [1], [0, 0, 1, 1], [], []>} : vector<8x128xf32>, vector<128x384xf32>, vector<8x384xf32> -> vector<8x384xf32>
    %487 = vector.extract_strided_slice %485 {offsets = [0, 0], sizes = [8, 128], strides = [1, 1]} : vector<8x384xf32> to vector<8x128xf32>
    %488 = vector.extract_strided_slice %486 {offsets = [0, 0], sizes = [8, 128], strides = [1, 1]} : vector<8x384xf32> to vector<8x128xf32>
    %489 = arith.addf %487, %488 : vector<8x128xf32>
    %490 = arith.negf %489 : vector<8x128xf32>
    %491 = math.exp %490 : vector<8x128xf32>
    %cst_142 = arith.constant 1.000000e+00 : f32
    %492 = vector.broadcast %cst_142 : f32 to vector<8x128xf32>
    %493 = arith.addf %492, %491 : vector<8x128xf32>
    %494 = arith.divf %492, %493 : vector<8x128xf32>
    %495 = vector.extract_strided_slice %485 {offsets = [0, 128], sizes = [8, 128], strides = [1, 1]} : vector<8x384xf32> to vector<8x128xf32>
    %496 = vector.extract_strided_slice %486 {offsets = [0, 128], sizes = [8, 128], strides = [1, 1]} : vector<8x384xf32> to vector<8x128xf32>
    %497 = arith.addf %495, %496 : vector<8x128xf32>
    %498 = arith.negf %497 : vector<8x128xf32>
    %499 = math.exp %498 : vector<8x128xf32>
    %cst_143 = arith.constant 1.000000e+00 : f32
    %500 = vector.broadcast %cst_143 : f32 to vector<8x128xf32>
    %501 = arith.addf %500, %499 : vector<8x128xf32>
    %502 = arith.divf %500, %501 : vector<8x128xf32>
    %503 = vector.extract_strided_slice %485 {offsets = [0, 256], sizes = [8, 128], strides = [1, 1]} : vector<8x384xf32> to vector<8x128xf32>
    %504 = vector.extract_strided_slice %486 {offsets = [0, 256], sizes = [8, 128], strides = [1, 1]} : vector<8x384xf32> to vector<8x128xf32>
    %505 = vector.broadcast %266 : vector<1x128xf32> to vector<8x128xf32>
    %506 = arith.addf %504, %505 : vector<8x128xf32>
    %507 = arith.mulf %494, %506 : vector<8x128xf32>
    %508 = arith.addf %503, %507 : vector<8x128xf32>
    %509 = math.tanh %508 : vector<8x128xf32>
    %cst_144 = arith.constant 1.000000e+00 : f32
    %510 = vector.broadcast %cst_144 : f32 to vector<8x128xf32>
    %511 = arith.subf %510, %502 : vector<8x128xf32>
    %512 = arith.mulf %511, %509 : vector<8x128xf32>
    %513 = arith.mulf %502, %483 : vector<8x128xf32>
    %514 = arith.addf %512, %513 : vector<8x128xf32>
    %c56_145 = arith.constant 56 : index
    %c0_146 = arith.constant 0 : index
    %515 = vector.load %arg9[%c56_145, %c0_146] : memref<64x128xf32, #tpu.memory_space<vmem>>, vector<8x128xf32>
    tpu.vector_store %arg9[%c56_145, %c0_146], %514 {strides = array<i32>} : memref<64x128xf32, #tpu.memory_space<vmem>>, vector<8x128xf32>,
    return
  }
}

</mosaic_0001>

<llo_original>
// kernel: decoder_forward.1
$region0: #{decoder_forward.1}
  #allocation0 [shape = 'u32[]', space=smem, size = 0x4, offset = 0x4, fixed_abs, tag = 'smem constant byte address 0x4 - core index']
  #allocation1 [shape = 'u32[144,128]{1,0:T(1,128)}', space=vmem, size = 0x12000, scoped, tag = 'internal scratch']
  #allocation2 [shape = 'f32[64,384]{1,0:T(8,128)}', space=vmem, size = 0x18000, scoped, tag = 'scratch operand']
  #allocation3 [shape = 'f32[64,128]{1,0:T(8,128)}', space=vmem, size = 0x8000, scoped, tag = 'scratch operand']
  %s0 = inlined_call_operand.vmem [shape: f32[64,16], index: 0, kind: input, shape index: {}]
  %s1 = inlined_call_operand.vmem [shape: f32[16,384], index: 1, kind: input, shape index: {}]
  %s2 = inlined_call_operand.hbm [shape: f32[128,384], index: 2, kind: input, shape index: {}]
  %s3 = inlined_call_operand.vmem [shape: f32[1,384], index: 3, kind: input, shape index: {}]
  %s4 = inlined_call_operand.vmem [shape: f32[1,128], index: 4, kind: input, shape index: {}]
  %s5 = inlined_call_operand.hbm [shape: f32[128,384], index: 5, kind: input, shape index: {}]
  %s6 = inlined_call_operand.hbm [shape: f32[128,384], index: 6, kind: input, shape index: {}]
  %s7 = inlined_call_operand.vmem [shape: f32[1,384], index: 7, kind: input, shape index: {}]
  %s8 = inlined_call_operand.vmem [shape: f32[1,128], index: 8, kind: input, shape index: {}]
  %s9 = inlined_call_operand.vmem [shape: f32[64,128], index: 9, kind: output, shape index: {}]
  %s10 = sld [smem:[#allocation0]]
  $region58: #{decoder_forward.1} parent=0
    _
  %s12 = ssub.s32 1, %s10
  %s13 = scalar_select 0, %s12, %s10
  $region1: #{decoder_forward.1} parent=0
    #allocation4 [shape = 'u8[196608]{0}', space=vmem, size = 0x30000, scoped, tag = 'input window, operand 2, single buffered']
    #allocation5 [shape = 's32[1]{0}', space=sflag, size = 0x4, scoped, tag = 'scoped memory for decoder_forward.1']
    #allocation6 [shape = 'u8[196608]{0}', space=vmem, size = 0x30000, scoped, tag = 'input window, operand 5, single buffered']
    #allocation7 [shape = 's32[1]{0}', space=sflag, size = 0x4, scoped, tag = 'scoped memory for decoder_forward.1']
    #allocation8 [shape = 'u8[196608]{0}', space=vmem, size = 0x30000, scoped, tag = 'input window, operand 6, single buffered']
    %14 = vsyncpa [#allocation5], 0
    %15 = vsyncpa [#allocation7], 0
    // Predicated region
    $region2: #{decoder_forward.1} parent=1 // pred_check
      _
    $region3: #{decoder_forward.1} parent=1 // pred_check_branch
      %17 = sbr.rel (0) target = $region5
    $region4: #{decoder_forward.1} parent=1 // pred_region
      _
    $region5: #{decoder_forward.1} parent=1 // pred_fallthru
      _
    // Predicated region
    $region6: #{decoder_forward.1} parent=1 // pred_check
      _
    $region7: #{decoder_forward.1} parent=1 // pred_check_branch
      %19 = sbr.rel (0) target = $region9
    $region8: #{decoder_forward.1} parent=1 // pred_region
      _
    $region9: #{decoder_forward.1} parent=1 // pred_fallthru
      _
    // Predicated region
    $region10: #{decoder_forward.1} parent=1 // pred_check
      _
    $region11: #{decoder_forward.1} parent=1 // pred_check_branch
      %21 = sbr.rel (0) target = $region13
    $region12: #{decoder_forward.1} parent=1 // pred_region
      %s23 = ssub.s32 6144, 6144
      %24 = vsyncadd [#allocation5], %s23
      %s25 = sshll.u32 [#allocation4], 4
      %s26 = int_to_ptr.vmem [resolvable:$true] %s25
      %31 = dma.hbm_to_vmem [thread:$0]  %s2, 6144, %s26, [#allocation5], 384, 384, 24
    $region13: #{decoder_forward.1} parent=1 // pred_fallthru
      _
    // Predicated region
    $region14: #{decoder_forward.1} parent=1 // pred_check
      _
    $region15: #{decoder_forward.1} parent=1 // pred_check_branch
      %33 = sbr.rel (0) target = $region17
    $region16: #{decoder_forward.1} parent=1 // pred_region
      _
    $region17: #{decoder_forward.1} parent=1 // pred_fallthru
      _
    // Predicated region
    $region18: #{decoder_forward.1} parent=1 // pred_check
      _
    $region19: #{decoder_forward.1} parent=1 // pred_check_branch
      %35 = sbr.rel (0) target = $region21
    $region20: #{decoder_forward.1} parent=1 // pred_region
      _
    $region21: #{decoder_forward.1} parent=1 // pred_fallthru
      _
    // Predicated region
    $region22: #{decoder_forward.1} parent=1 // pred_check
      _
    $region23: #{decoder_forward.1} parent=1 // pred_check_branch
      %37 = sbr.rel (0) target = $region25
    $region24: #{decoder_forward.1} parent=1 // pred_region
      %s39 = ssub.s32 6144, 6144
      %40 = vsyncadd [#allocation7], %s39
      %s41 = sshll.u32 [#allocation6], 4
      %s42 = int_to_ptr.vmem [resolvable:$true] %s41
      %47 = dma.hbm_to_vmem [thread:$0]  %s5, 6144, %s42, [#allocation7], 384, 384, 24
    $region25: #{decoder_forward.1} parent=1 // pred_fallthru
      _
    // Predicated region
    $region26: #{decoder_forward.1} parent=1 // pred_check
      _
    $region27: #{decoder_forward.1} parent=1 // pred_check_branch
      %49 = sbr.rel (0) target = $region29
    $region28: #{decoder_forward.1} parent=1 // pred_region
      %s51 = ssub.s32 6144, 6144
      %52 = vsyncadd [#allocation7], %s51
      %s53 = sshll.u32 [#allocation8], 4
      %s54 = int_to_ptr.vmem [resolvable:$true] %s53
      %59 = dma.hbm_to_vmem [thread:$0]  %s6, 6144, %s54, [#allocation7], 384, 384, 24
    $region29: #{decoder_forward.1} parent=1 // pred_fallthru
      _
    // Predicated region
    $region30: #{decoder_forward.1} parent=1 // pred_check
      _
    $region31: #{decoder_forward.1} parent=1 // pred_check_branch
      %61 = sbr.rel (0) target = $region33
    $region32: #{decoder_forward.1} parent=1 // pred_region
      _
    $region33: #{decoder_forward.1} parent=1 // pred_fallthru
      _
    // Predicated region
    $region34: #{decoder_forward.1} parent=1 // pred_check
      _
    $region35: #{decoder_forward.1} parent=1 // pred_check_branch
      %63 = sbr.rel (0) target = $region37
    $region36: #{decoder_forward.1} parent=1 // pred_region
      _
    $region37: #{decoder_forward.1} parent=1 // pred_fallthru
      _
    // Predicated region
    $region38: #{decoder_forward.1} parent=1 // pred_check
      _
    $region39: #{decoder_forward.1} parent=1 // pred_check_branch
      %65 = sbr.rel (0) target = $region41
    $region40: #{decoder_forward.1} parent=1 // pred_region
      %66 = dma.done [#allocation5], 6144
    $region41: #{decoder_forward.1} parent=1 // pred_fallthru
      _
    // Predicated region
    $region42: #{decoder_forward.1} parent=1 // pred_check
      _
    $region43: #{decoder_forward.1} parent=1 // pred_check_branch
      %68 = sbr.rel (0) target = $region45
    $region44: #{decoder_forward.1} parent=1 // pred_region
      %69 = dma.done [#allocation7], 6144
    $region45: #{decoder_forward.1} parent=1 // pred_fallthru
      _
    // Predicated region
    $region46: #{decoder_forward.1} parent=1 // pred_check
      _
    $region47: #{decoder_forward.1} parent=1 // pred_check_branch
      %71 = sbr.rel (0) target = $region49
    $region48: #{decoder_forward.1} parent=1 // pred_region
      %72 = dma.done [#allocation7], 6144
    $region49: #{decoder_forward.1} parent=1 // pred_fallthru
      _
    %v73 = vld [vmem:[%s0] sm:$0xff]
    %v74 = vld [vmem:[%s0 + $0x8] sm:$0xff]
    %v75 = vld [vmem:[%s0 + $0x10] sm:$0xff]
    %v76 = vld [vmem:[%s0 + $0x18] sm:$0xff]
    %v77 = vld [vmem:[%s0 + $0x20] sm:$0xff]
    %v78 = vld [vmem:[%s0 + $0x28] sm:$0xff]
    %v79 = vld [vmem:[%s0 + $0x30] sm:$0xff]
    %v80 = vld [vmem:[%s0 + $0x38] sm:$0xff]
    %v81 = vld [vmem:[%s1] sm:$0xff]
    %v82 = vld [vmem:[%s1 + $0x8] sm:$0xff]
    %v83 = vld [vmem:[%s1 + $0x10] sm:$0xff]
    %v84 = vld [vmem:[%s1 + $0x18] sm:$0xff]
    %v85 = vld [vmem:[%s1 + $0x20] sm:$0xff]
    %v86 = vld [vmem:[%s1 + $0x28] sm:$0xff]
    %v87 = vld [vmem:[%s3] sm:$0x7]
    %v89 = vlaneseq
    %v90 = vshrl.u32 %v89, 7
    %v91 = vsub.s32 0, %v90
    %v92 = vrot.slane %v87, %v91
    %v93 = vlaneseq
    %v94 = vshrl.u32 %v93, 7
    %v95 = vsub.s32 1, %v94
    %v96 = vrot.slane %v87, %v95
    %v97 = vlaneseq
    %v98 = vshrl.u32 %v97, 7
    %v99 = vsub.s32 2, %v98
    %v100 = vrot.slane %v87, %v99
    %vm104 = vcmask 130048
    %v106 = vsel %vm104, %v73, 0
    %v109 = vsel %vm104, %v74, 0
    %v112 = vsel %vm104, %v75, 0
    %v115 = vsel %vm104, %v76, 0
    %v118 = vsel %vm104, %v77, 0
    %v121 = vsel %vm104, %v78, 0
    %v124 = vsel %vm104, %v79, 0
    %v127 = vsel %vm104, %v80, 0
    %129 = vmatprep.subr.mxu0 %v82
    %130 = vmatpush1.msra.mxu0 %v81
    %131 = vmatprep.subr.mxu0 %v85
    %132 = vmatpush1.msra.mxu0 %v84
    %133 = vmatprep.subr.mxu0 0.0
    %134 = vmatpush1.msra.mxu0 0.0
    %135 = vmatprep.subr.mxu0 0.0
    %136 = vmatpush1.msra.mxu0 0.0
    %137 = vmatprep.subr.mxu0 0.0
    %138 = vmatpush1.msra.mxu0 0.0
    %139 = vmatprep.subr.mxu0 0.0
    %140 = vmatpush1.msra.mxu0 0.0
    %141 = vmatprep.subr.mxu0 0.0
    %142 = vmatpush1.msra.mxu0 0.0
    %143 = vmatprep.subr.mxu0 0.0
    %144 = vmatpush1.msra.mxu0 0.0
    %145 = vmatprep.subr.mxu0 0.0
    %146 = vmatpush1.msra.mxu0 0.0
    %147 = vmatprep.subr.mxu0 0.0
    %148 = vmatpush1.msra.mxu0 0.0
    %149 = vmatprep.subr.mxu0 0.0
    %150 = vmatpush1.msra.mxu0 0.0
    %151 = vmatprep.subr.mxu0 0.0
    %152 = vmatpush1.msra.mxu0 0.0
    %153 = vmatprep.subr.mxu0 0.0
    %154 = vmatpush1.msra.mxu0 0.0
    %155 = vmatprep.subr.mxu0 0.0
    %156 = vmatpush1.msra.mxu0 0.0
    %157 = vmatprep.subr.mxu0 0.0
    %158 = vmatpush1.msra.mxu0 0.0
    %159 = vmatprep.subr.mxu0 0.0
    %160 = vmatpush1.msra.mxu0 0.0
    %161 = vmatprep.subr.mxu0 0.0
    %162 = vmatpush1.msra.mxu0 0.0
    %163 = vmatprep.subr.mxu0 0.0
    %164 = vmatpush1.msra.mxu0 0.0
    %165 = vmatprep.subr.mxu0 0.0
    %166 = vmatpush1.msra.mxu0 0.0
    %167 = vmatprep.subr.mxu0 0.0
    %168 = vmatpush1.msra.mxu0 0.0
    %169 = vmatprep.subr.mxu0 0.0
    %170 = vmatpush1.msra.mxu0 0.0
    %171 = vmatprep.subr.mxu0 0.0
    %172 = vmatpush1.msra.mxu0 0.0
    %173 = vmatprep.subr.mxu0 0.0
    %174 = vmatpush1.msra.mxu0 0.0
    %175 = vmatprep.subr.mxu0 0.0
    %176 = vmatpush1.msra.mxu0 0.0
    %177 = vmatprep.subr.mxu0 0.0
    %178 = vmatpush1.msra.mxu0 0.0
    %179 = vmatprep.subr.mxu0 0.0
    %180 = vmatpush1.msra.mxu0 0.0
    %181 = vmatprep.subr.mxu0 0.0
    %182 = vmatpush1.msra.mxu0 0.0
    %183 = vmatprep.subr.mxu0 0.0
    %184 = vmatpush1.msra.mxu0 0.0
    %185 = vmatprep.subr.mxu0 0.0
    %186 = vmatpush1.msra.mxu0 0.0
    %187 = vmatprep.subr.mxu0 0.0
    %188 = vmatpush1.msra.mxu0 0.0
    %189 = vmatprep.subr.mxu0 0.0
    %190 = vmatpush1.msra.mxu0 0.0
    %191 = vmatprep.subr.mxu0 0.0
    %192 = vmatpush1.msra.mxu0 0.0
    %193 = vmatprep.mubr.f32.mxu0 0.0
    %194 = vmatmul.mubr.f32.gmra.mrb[0].mxu0 %v106
    %v195 = vpop.f32.mrb[0].mxu0
    %v196 = vadd.f32 %v92, %v195
    %v197 = vpop.f32.mrb[0].mxu0
    %v198 = vadd.f32 %v96, %v197
    %199 = vmatprep.mubr.f32.mxu0 0.0
    %200 = vmatmul.mubr.f32.gmra.mrb[0].mxu0 %v109
    %v201 = vpop.f32.mrb[0].mxu0
    %v202 = vadd.f32 %v92, %v201
    %v203 = vpop.f32.mrb[0].mxu0
    %v204 = vadd.f32 %v96, %v203
    %205 = vmatprep.mubr.f32.mxu0 0.0
    %206 = vmatmul.mubr.f32.gmra.mrb[0].mxu0 %v112
    %v207 = vpop.f32.mrb[0].mxu0
    %v208 = vadd.f32 %v92, %v207
    %v209 = vpop.f32.mrb[0].mxu0
    %v210 = vadd.f32 %v96, %v209
    %211 = vmatprep.mubr.f32.mxu0 0.0
    %212 = vmatmul.mubr.f32.gmra.mrb[0].mxu0 %v115
    %v213 = vpop.f32.mrb[0].mxu0
    %v214 = vadd.f32 %v92, %v213
    %v215 = vpop.f32.mrb[0].mxu0
    %v216 = vadd.f32 %v96, %v215
    %217 = vmatprep.mubr.f32.mxu0 0.0
    %218 = vmatmul.mubr.f32.gmra.mrb[0].mxu0 %v118
    %v219 = vpop.f32.mrb[0].mxu0
    %v220 = vadd.f32 %v92, %v219
    %v221 = vpop.f32.mrb[0].mxu0
    %v222 = vadd.f32 %v96, %v221
    %223 = vmatprep.mubr.f32.mxu0 0.0
    %224 = vmatmul.mubr.f32.gmra.mrb[0].mxu0 %v121
    %v225 = vpop.f32.mrb[0].mxu0
    %v226 = vadd.f32 %v92, %v225
    %v227 = vpop.f32.mrb[0].mxu0
    %v228 = vadd.f32 %v96, %v227
    %229 = vmatprep.mubr.f32.mxu0 0.0
    %230 = vmatmul.mubr.f32.gmra.mrb[0].mxu0 %v124
    %v231 = vpop.f32.mrb[0].mxu0
    %v232 = vadd.f32 %v92, %v231
    %v233 = vpop.f32.mrb[0].mxu0
    %v234 = vadd.f32 %v96, %v233
    %235 = vmatprep.mubr.f32.mxu0 0.0
    %236 = vmatmul.mubr.f32.gmra.mrb[0].mxu0 %v127
    %v237 = vpop.f32.mrb[0].mxu0
    %v238 = vadd.f32 %v92, %v237
    %v239 = vpop.f32.mrb[0].mxu0
    %v240 = vadd.f32 %v96, %v239
    %241 = vdwg.mxu0
    %242 = vmatprep.subr.mxu0 0.0
    %243 = vmatpush1.msra.mxu0 %v83
    %244 = vmatprep.subr.mxu0 0.0
    %245 = vmatpush1.msra.mxu0 %v86
    %246 = vmatprep.subr.mxu0 0.0
    %247 = vmatpush1.msra.mxu0 0.0
    %248 = vmatprep.subr.mxu0 0.0
    %249 = vmatpush1.msra.mxu0 0.0
    %250 = vmatprep.subr.mxu0 0.0
    %251 = vmatpush1.msra.mxu0 0.0
    %252 = vmatprep.subr.mxu0 0.0
    %253 = vmatpush1.msra.mxu0 0.0
    %254 = vmatprep.subr.mxu0 0.0
    %255 = vmatpush1.msra.mxu0 0.0
    %256 = vmatprep.subr.mxu0 0.0
    %257 = vmatpush1.msra.mxu0 0.0
    %258 = vmatprep.subr.mxu0 0.0
    %259 = vmatpush1.msra.mxu0 0.0
    %260 = vmatprep.subr.mxu0 0.0
    %261 = vmatpush1.msra.mxu0 0.0
    %262 = vmatprep.subr.mxu0 0.0
    %263 = vmatpush1.msra.mxu0 0.0
    %264 = vmatprep.subr.mxu0 0.0
    %265 = vmatpush1.msra.mxu0 0.0
    %266 = vmatprep.subr.mxu0 0.0
    %267 = vmatpush1.msra.mxu0 0.0
    %268 = vmatprep.subr.mxu0 0.0
    %269 = vmatpush1.msra.mxu0 0.0
    %270 = vmatprep.subr.mxu0 0.0
    %271 = vmatpush1.msra.mxu0 0.0
    %272 = vmatprep.subr.mxu0 0.0
    %273 = vmatpush1.msra.mxu0 0.0
    %274 = vmatprep.subr.mxu0 0.0
    %275 = vmatpush1.msra.mxu0 0.0
    %276 = vmatprep.subr.mxu0 0.0
    %277 = vmatpush1.msra.mxu0 0.0
    %278 = vmatprep.subr.mxu0 0.0
    %279 = vmatpush1.msra.mxu0 0.0
    %280 = vmatprep.subr.mxu0 0.0
    %281 = vmatpush1.msra.mxu0 0.0
    %282 = vmatprep.subr.mxu0 0.0
    %283 = vmatpush1.msra.mxu0 0.0
    %284 = vmatprep.subr.mxu0 0.0
    %285 = vmatpush1.msra.mxu0 0.0
    %286 = vmatprep.subr.mxu0 0.0
    %287 = vmatpush1.msra.mxu0 0.0
    %288 = vmatprep.subr.mxu0 0.0
    %289 = vmatpush1.msra.mxu0 0.0
    %290 = vmatprep.subr.mxu0 0.0
    %291 = vmatpush1.msra.mxu0 0.0
    %292 = vmatprep.subr.mxu0 0.0
    %293 = vmatpush1.msra.mxu0 0.0
    %294 = vmatprep.subr.mxu0 0.0
    %295 = vmatpush1.msra.mxu0 0.0
    %296 = vmatprep.subr.mxu0 0.0
    %297 = vmatpush1.msra.mxu0 0.0
    %298 = vmatprep.subr.mxu0 0.0
    %299 = vmatpush1.msra.mxu0 0.0
    %300 = vmatprep.subr.mxu0 0.0
    %301 = vmatpush1.msra.mxu0 0.0
    %302 = vmatprep.subr.mxu0 0.0
    %303 = vmatpush1.msra.mxu0 0.0
    %304 = vmatprep.subr.mxu0 0.0
    %305 = vmatpush1.msra.mxu0 0.0
    %306 = vmatprep.mubr.f32.mxu0 0.0
    %307 = vmatmul.mubr.f32.gmra.mrb[0].mxu0 %v106
    %v308 = vpop.f32.mrb[0].mxu0
    %v309 = vadd.f32 %v100, %v308
    %v310 = vpop.f32.mrb[0].mxu0
    %311 = vmatprep.mubr.f32.mxu0 0.0
    %312 = vmatmul.mubr.f32.gmra.mrb[0].mxu0 %v109
    %v313 = vpop.f32.mrb[0].mxu0
    %v314 = vadd.f32 %v100, %v313
    %v315 = vpop.f32.mrb[0].mxu0
    %316 = vmatprep.mubr.f32.mxu0 0.0
    %317 = vmatmul.mubr.f32.gmra.mrb[0].mxu0 %v112
    %v318 = vpop.f32.mrb[0].mxu0
    %v319 = vadd.f32 %v100, %v318
    %v320 = vpop.f32.mrb[0].mxu0
    %321 = vmatprep.mubr.f32.mxu0 0.0
    %322 = vmatmul.mubr.f32.gmra.mrb[0].mxu0 %v115
    %v323 = vpop.f32.mrb[0].mxu0
    %v324 = vadd.f32 %v100, %v323
    %v325 = vpop.f32.mrb[0].mxu0
    %326 = vmatprep.mubr.f32.mxu0 0.0
    %327 = vmatmul.mubr.f32.gmra.mrb[0].mxu0 %v118
    %v328 = vpop.f32.mrb[0].mxu0
    %v329 = vadd.f32 %v100, %v328
    %v330 = vpop.f32.mrb[0].mxu0
    %331 = vmatprep.mubr.f32.mxu0 0.0
    %332 = vmatmul.mubr.f32.gmra.mrb[0].mxu0 %v121
    %v333 = vpop.f32.mrb[0].mxu0
    %v334 = vadd.f32 %v100, %v333
    %v335 = vpop.f32.mrb[0].mxu0
    %336 = vmatprep.mubr.f32.mxu0 0.0
    %337 = vmatmul.mubr.f32.gmra.mrb[0].mxu0 %v124
    %v338 = vpop.f32.mrb[0].mxu0
    %v339 = vadd.f32 %v100, %v338
    %v340 = vpop.f32.mrb[0].mxu0
    %341 = vmatprep.mubr.f32.mxu0 0.0
    %342 = vmatmul.mubr.f32.gmra.mrb[0].mxu0 %v127
    %v343 = vpop.f32.mrb[0].mxu0
    %v344 = vadd.f32 %v100, %v343
    %v345 = vpop.f32.mrb[0].mxu0
    %346 = vdwg.mxu0
    %347 = vst [vmem:[#allocation2] sm:$0xff] %v196
    %348 = vst [vmem:[#allocation2 + $0x8] sm:$0xff] %v198
    %349 = vst [vmem:[#allocation2 + $0x10] sm:$0xff] %v309
    %350 = vst [vmem:[#allocation2 + $0x18] sm:$0xff] %v202
    %351 = vst [vmem:[#allocation2 + $0x20] sm:$0xff] %v204
    %352 = vst [vmem:[#allocation2 + $0x28] sm:$0xff] %v314
    %353 = vst [vmem:[#allocation2 + $0x30] sm:$0xff] %v208
    %354 = vst [vmem:[#allocation2 + $0x38] sm:$0xff] %v210
    %355 = vst [vmem:[#allocation2 + $0x40] sm:$0xff] %v319
    %356 = vst [vmem:[#allocation2 + $0x48] sm:$0xff] %v214
    %357 = vst [vmem:[#allocation2 + $0x50] sm:$0xff] %v216
    %358 = vst [vmem:[#allocation2 + $0x58] sm:$0xff] %v324
    %359 = vst [vmem:[#allocation2 + $0x60] sm:$0xff] %v220
    %360 = vst [vmem:[#allocation2 + $0x68] sm:$0xff] %v222
    %361 = vst [vmem:[#allocation2 + $0x70] sm:$0xff] %v329
    %362 = vst [vmem:[#allocation2 + $0x78] sm:$0xff] %v226
    %363 = vst [vmem:[#allocation2 + $0x80] sm:$0xff] %v228
    %364 = vst [vmem:[#allocation2 + $0x88] sm:$0xff] %v334
    %365 = vst [vmem:[#allocation2 + $0x90] sm:$0xff] %v232
    %366 = vst [vmem:[#allocation2 + $0x98] sm:$0xff] %v234
    %367 = vst [vmem:[#allocation2 + $0xa0] sm:$0xff] %v339
    %368 = vst [vmem:[#allocation2 + $0xa8] sm:$0xff] %v238
    %369 = vst [vmem:[#allocation2 + $0xb0] sm:$0xff] %v240
    %370 = vst [vmem:[#allocation2 + $0xb8] sm:$0xff] %v344
    %v371 = vld [vmem:[#allocation4] sm:$0xff]
    %v372 = vld [vmem:[#allocation4 + $0x8] sm:$0xff]
    %v373 = vld [vmem:[#allocation4 + $0x10] sm:$0xff]
    %v374 = vld [vmem:[#allocation4 + $0x18] sm:$0xff]
    %v375 = vld [vmem:[#allocation4 + $0x20] sm:$0xff]
    %v376 = vld [vmem:[#allocation4 + $0x28] sm:$0xff]
    %v377 = vld [vmem:[#allocation4 + $0x30] sm:$0xff]
    %v378 = vld [vmem:[#allocation4 + $0x38] sm:$0xff]
    %v379 = vld [vmem:[#allocation4 + $0x40] sm:$0xff]
    %v380 = vld [vmem:[#allocation4 + $0x48] sm:$0xff]
    %v381 = vld [vmem:[#allocation4 + $0x50] sm:$0xff]
    %v382 = vld [vmem:[#allocation4 + $0x58] sm:$0xff]
    %v383 = vld [vmem:[#allocation4 + $0x60] sm:$0xff]
    %v384 = vld [vmem:[#allocation4 + $0x68] sm:$0xff]
    %v385 = vld [vmem:[#allocation4 + $0x70] sm:$0xff]
    %v386 = vld [vmem:[#allocation4 + $0x78] sm:$0xff]
    %v387 = vld [vmem:[#allocation4 + $0x80] sm:$0xff]
    %v388 = vld [vmem:[#allocation4 + $0x88] sm:$0xff]
    %v389 = vld [vmem:[#allocation4 + $0x90] sm:$0xff]
    %v390 = vld [vmem:[#allocation4 + $0x98] sm:$0xff]
    %v391 = vld [vmem:[#allocation4 + $0xa0] sm:$0xff]
    %v392 = vld [vmem:[#allocation4 + $0xa8] sm:$0xff]
    %v393 = vld [vmem:[#allocation4 + $0xb0] sm:$0xff]
    %v394 = vld [vmem:[#allocation4 + $0xb8] sm:$0xff]
    %v395 = vld [vmem:[#allocation4 + $0xc0] sm:$0xff]
    %v396 = vld [vmem:[#allocation4 + $0xc8] sm:$0xff]
    %v397 = vld [vmem:[#allocation4 + $0xd0] sm:$0xff]
    %v398 = vld [vmem:[#allocation4 + $0xd8] sm:$0xff]
    %v399 = vld [vmem:[#allocation4 + $0xe0] sm:$0xff]
    %v400 = vld [vmem:[#allocation4 + $0xe8] sm:$0xff]
    %v401 = vld [vmem:[#allocation4 + $0xf0] sm:$0xff]
    %v402 = vld [vmem:[#allocation4 + $0xf8] sm:$0xff]
    %v403 = vld [vmem:[#allocation4 + $0x100] sm:$0xff]
    %v404 = vld [vmem:[#allocation4 + $0x108] sm:$0xff]
    %v405 = vld [vmem:[#allocation4 + $0x110] sm:$0xff]
    %v406 = vld [vmem:[#allocation4 + $0x118] sm:$0xff]
    %v407 = vld [vmem:[#allocation4 + $0x120] sm:$0xff]
    %v408 = vld [vmem:[#allocation4 + $0x128] sm:$0xff]
    %v409 = vld [vmem:[#allocation4 + $0x130] sm:$0xff]
    %v410 = vld [vmem:[#allocation4 + $0x138] sm:$0xff]
    %v411 = vld [vmem:[#allocation4 + $0x140] sm:$0xff]
    %v412 = vld [vmem:[#allocation4 + $0x148] sm:$0xff]
    %v413 = vld [vmem:[#allocation4 + $0x150] sm:$0xff]
    %v414 = vld [vmem:[#allocation4 + $0x158] sm:$0xff]
    %v415 = vld [vmem:[#allocation4 + $0x160] sm:$0xff]
    %v416 = vld [vmem:[#allocation4 + $0x168] sm:$0xff]
    %v417 = vld [vmem:[#allocation4 + $0x170] sm:$0xff]
    %v418 = vld [vmem:[#allocation4 + $0x178] sm:$0xff]
    %v419 = vld [vmem:[%s4] sm:$0x1]
    %v420 = vld [vmem:[#allocation2] sm:$0xff]
    %v421 = vld [vmem:[#allocation2 + $0x8] sm:$0xff]
    %v422 = vld [vmem:[#allocation2 + $0x10] sm:$0xff]
    %423 = vmatprep.subr.mxu0 %v372
    %424 = vmatpush1.msra.mxu0 %v371
    %425 = vmatprep.subr.mxu0 %v375
    %426 = vmatpush1.msra.mxu0 %v374
    %427 = vmatprep.subr.mxu0 %v378
    %428 = vmatpush1.msra.mxu0 %v377
    %429 = vmatprep.subr.mxu0 %v381
    %430 = vmatpush1.msra.mxu0 %v380
    %431 = vmatprep.subr.mxu0 %v384
    %432 = vmatpush1.msra.mxu0 %v383
    %433 = vmatprep.subr.mxu0 %v387
    %434 = vmatpush1.msra.mxu0 %v386
    %435 = vmatprep.subr.mxu0 %v390
    %436 = vmatpush1.msra.mxu0 %v389
    %437 = vmatprep.subr.mxu0 %v393
    %438 = vmatpush1.msra.mxu0 %v392
    %439 = vmatprep.subr.mxu0 %v396
    %440 = vmatpush1.msra.mxu0 %v395
    %441 = vmatprep.subr.mxu0 %v399
    %442 = vmatpush1.msra.mxu0 %v398
    %443 = vmatprep.subr.mxu0 %v402
    %444 = vmatpush1.msra.mxu0 %v401
    %445 = vmatprep.subr.mxu0 %v405
    %446 = vmatpush1.msra.mxu0 %v404
    %447 = vmatprep.subr.mxu0 %v408
    %448 = vmatpush1.msra.mxu0 %v407
    %449 = vmatprep.subr.mxu0 %v411
    %450 = vmatpush1.msra.mxu0 %v410
    %451 = vmatprep.subr.mxu0 %v414
    %452 = vmatpush1.msra.mxu0 %v413
    %453 = vmatprep.subr.mxu0 %v417
    %454 = vmatpush1.msra.mxu0 %v416
    %455 = vmatprep.subr.mxu0 0.0
    %456 = vmatpush1.msra.mxu0 0.0
    %457 = vmatprep.subr.mxu0 0.0
    %458 = vmatpush1.msra.mxu0 0.0
    %459 = vmatprep.subr.mxu0 0.0
    %460 = vmatpush1.msra.mxu0 0.0
    %461 = vmatprep.subr.mxu0 0.0
    %462 = vmatpush1.msra.mxu0 0.0
    %463 = vmatprep.subr.mxu0 0.0
    %464 = vmatpush1.msra.mxu0 0.0
    %465 = vmatprep.subr.mxu0 0.0
    %466 = vmatpush1.msra.mxu0 0.0
    %467 = vmatprep.subr.mxu0 0.0
    %468 = vmatpush1.msra.mxu0 0.0
    %469 = vmatprep.subr.mxu0 0.0
    %470 = vmatpush1.msra.mxu0 0.0
    %471 = vmatprep.subr.mxu0 0.0
    %472 = vmatpush1.msra.mxu0 0.0
    %473 = vmatprep.subr.mxu0 0.0
    %474 = vmatpush1.msra.mxu0 0.0
    %475 = vmatprep.subr.mxu0 0.0
    %476 = vmatpush1.msra.mxu0 0.0
    %477 = vmatprep.subr.mxu0 0.0
    %478 = vmatpush1.msra.mxu0 0.0
    %479 = vmatprep.subr.mxu0 0.0
    %480 = vmatpush1.msra.mxu0 0.0
    %481 = vmatprep.subr.mxu0 0.0
    %482 = vmatpush1.msra.mxu0 0.0
    %483 = vmatprep.subr.mxu0 0.0
    %484 = vmatpush1.msra.mxu0 0.0
    %485 = vmatprep.subr.mxu0 0.0
    %486 = vmatpush1.msra.mxu0 0.0
    %487 = vmatprep.mubr.f32.mxu0 0.0
    %488 = vmatmul.mubr.f32.gmra.mrb[0].mxu0 0.0
    %v489 = vpop.f32.mrb[0].mxu0
    %v490 = vadd.f32 0.0, %v489
    %v491 = vpop.f32.mrb[0].mxu0
    %v492 = vadd.f32 0.0, %v491
    %493 = vdwg.mxu0
    %494 = vmatprep.subr.mxu0 0.0
    %495 = vmatpush1.msra.mxu0 %v373
    %496 = vmatprep.subr.mxu0 0.0
    %497 = vmatpush1.msra.mxu0 %v376
    %498 = vmatprep.subr.mxu0 0.0
    %499 = vmatpush1.msra.mxu0 %v379
    %500 = vmatprep.subr.mxu0 0.0
    %501 = vmatpush1.msra.mxu0 %v382
    %502 = vmatprep.subr.mxu0 0.0
    %503 = vmatpush1.msra.mxu0 %v385
    %504 = vmatprep.subr.mxu0 0.0
    %505 = vmatpush1.msra.mxu0 %v388
    %506 = vmatprep.subr.mxu0 0.0
    %507 = vmatpush1.msra.mxu0 %v391
    %508 = vmatprep.subr.mxu0 0.0
    %509 = vmatpush1.msra.mxu0 %v394
    %510 = vmatprep.subr.mxu0 0.0
    %511 = vmatpush1.msra.mxu0 %v397
    %512 = vmatprep.subr.mxu0 0.0
    %513 = vmatpush1.msra.mxu0 %v400
    %514 = vmatprep.subr.mxu0 0.0
    %515 = vmatpush1.msra.mxu0 %v403
    %516 = vmatprep.subr.mxu0 0.0
    %517 = vmatpush1.msra.mxu0 %v406
    %518 = vmatprep.subr.mxu0 0.0
    %519 = vmatpush1.msra.mxu0 %v409
    %520 = vmatprep.subr.mxu0 0.0
    %521 = vmatpush1.msra.mxu0 %v412
    %522 = vmatprep.subr.mxu0 0.0
    %523 = vmatpush1.msra.mxu0 %v415
    %524 = vmatprep.subr.mxu0 0.0
    %525 = vmatpush1.msra.mxu0 %v418
    %526 = vmatprep.subr.mxu0 0.0
    %527 = vmatpush1.msra.mxu0 0.0
    %528 = vmatprep.subr.mxu0 0.0
    %529 = vmatpush1.msra.mxu0 0.0
    %530 = vmatprep.subr.mxu0 0.0
    %531 = vmatpush1.msra.mxu0 0.0
    %532 = vmatprep.subr.mxu0 0.0
    %533 = vmatpush1.msra.mxu0 0.0
    %534 = vmatprep.subr.mxu0 0.0
    %535 = vmatpush1.msra.mxu0 0.0
    %536 = vmatprep.subr.mxu0 0.0
    %537 = vmatpush1.msra.mxu0 0.0
    %538 = vmatprep.subr.mxu0 0.0
    %539 = vmatpush1.msra.mxu0 0.0
    %540 = vmatprep.subr.mxu0 0.0
    %541 = vmatpush1.msra.mxu0 0.0
    %542 = vmatprep.subr.mxu0 0.0
    %543 = vmatpush1.msra.mxu0 0.0
    %544 = vmatprep.subr.mxu0 0.0
    %545 = vmatpush1.msra.mxu0 0.0
    %546 = vmatprep.subr.mxu0 0.0
    %547 = vmatpush1.msra.mxu0 0.0
    %548 = vmatprep.subr.mxu0 0.0
    %549 = vmatpush1.msra.mxu0 0.0
    %550 = vmatprep.subr.mxu0 0.0
    %551 = vmatpush1.msra.mxu0 0.0
    %552 = vmatprep.subr.mxu0 0.0
    %553 = vmatpush1.msra.mxu0 0.0
    %554 = vmatprep.subr.mxu0 0.0
    %555 = vmatpush1.msra.mxu0 0.0
    %556 = vmatprep.subr.mxu0 0.0
    %557 = vmatpush1.msra.mxu0 0.0
    %558 = vmatprep.mubr.f32.mxu0 0.0
    %559 = vmatmul.mubr.f32.gmra.mrb[0].mxu0 0.0
    %v560 = vpop.f32.mrb[0].mxu0
    %v561 = vadd.f32 0.0, %v560
    %v562 = vpop.f32.mrb[0].mxu0
    %563 = vdwg.mxu0
    %v564 = vadd.f32 %v420, %v490
    %v565 = vxor.u32 %v564, 2147483648
    %v566 = vmul.f32 %v565, 1.442695
    %v567 = vpow.pop %v566
    %v568 = vadd.f32 %v567, 1.0
    %v569 = vrcp.pop %v568
    %v570 = vmul.f32 1.0, %v569
    %v571 = vadd.f32 %v421, %v492
    %v572 = vxor.u32 %v571, 2147483648
    %v573 = vmul.f32 %v572, 1.442695
    %v574 = vpow.pop %v573
    %v575 = vadd.f32 %v574, 1.0
    %v576 = vrcp.pop %v575
    %v577 = vmul.f32 1.0, %v576
    %v579 = vlaneseq
    %v580 = vshrl.u32 %v579, 7
    %v581 = vsub.s32 0, %v580
    %v582 = vrot.slane %v419, %v581
    %v584 = vadd.f32 %v561, %v582
    %v585 = vmul.f32 %v570, %v584
    %v586 = vadd.f32 %v422, %v585
    %v587 = vtanh.pop %v586
    %v588 = vsub.f32 1.0, %v577
    %v589 = vmul.f32 %v588, %v587
    %v590 = vmul.f32 %v577, 0.0
    %v591 = vadd.f32 %v589, %v590
    %592 = vst [vmem:[#allocation3] sm:$0xff] %v591
    %v593 = vld [vmem:[#allocation2 + $0x18] sm:$0xff]
    %v594 = vld [vmem:[#allocation2 + $0x20] sm:$0xff]
    %v595 = vld [vmem:[#allocation2 + $0x28] sm:$0xff]
    %596 = vmatprep.subr.mxu0 %v372
    %597 = vmatpush1.msra.mxu0 %v371
    %598 = vmatprep.subr.mxu0 %v375
    %599 = vmatpush1.msra.mxu0 %v374
    %600 = vmatprep.subr.mxu0 %v378
    %601 = vmatpush1.msra.mxu0 %v377
    %602 = vmatprep.subr.mxu0 %v381
    %603 = vmatpush1.msra.mxu0 %v380
    %604 = vmatprep.subr.mxu0 %v384
    %605 = vmatpush1.msra.mxu0 %v383
    %606 = vmatprep.subr.mxu0 %v387
    %607 = vmatpush1.msra.mxu0 %v386
    %608 = vmatprep.subr.mxu0 %v390
    %609 = vmatpush1.msra.mxu0 %v389
    %610 = vmatprep.subr.mxu0 %v393
    %611 = vmatpush1.msra.mxu0 %v392
    %612 = vmatprep.subr.mxu0 %v396
    %613 = vmatpush1.msra.mxu0 %v395
    %614 = vmatprep.subr.mxu0 %v399
    %615 = vmatpush1.msra.mxu0 %v398
    %616 = vmatprep.subr.mxu0 %v402
    %617 = vmatpush1.msra.mxu0 %v401
    %618 = vmatprep.subr.mxu0 %v405
    %619 = vmatpush1.msra.mxu0 %v404
    %620 = vmatprep.subr.mxu0 %v408
    %621 = vmatpush1.msra.mxu0 %v407
    %622 = vmatprep.subr.mxu0 %v411
    %623 = vmatpush1.msra.mxu0 %v410
    %624 = vmatprep.subr.mxu0 %v414
    %625 = vmatpush1.msra.mxu0 %v413
    %626 = vmatprep.subr.mxu0 %v417
    %627 = vmatpush1.msra.mxu0 %v416
    %628 = vmatprep.subr.mxu0 0.0
    %629 = vmatpush1.msra.mxu0 0.0
    %630 = vmatprep.subr.mxu0 0.0
    %631 = vmatpush1.msra.mxu0 0.0
    %632 = vmatprep.subr.mxu0 0.0
    %633 = vmatpush1.msra.mxu0 0.0
    %634 = vmatprep.subr.mxu0 0.0
    %635 = vmatpush1.msra.mxu0 0.0
    %636 = vmatprep.subr.mxu0 0.0
    %637 = vmatpush1.msra.mxu0 0.0
    %638 = vmatprep.subr.mxu0 0.0
    %639 = vmatpush1.msra.mxu0 0.0
    %640 = vmatprep.subr.mxu0 0.0
    %641 = vmatpush1.msra.mxu0 0.0
    %642 = vmatprep.subr.mxu0 0.0
    %643 = vmatpush1.msra.mxu0 0.0
    %644 = vmatprep.subr.mxu0 0.0
    %645 = vmatpush1.msra.mxu0 0.0
    %646 = vmatprep.subr.mxu0 0.0
    %647 = vmatpush1.msra.mxu0 0.0
    %648 = vmatprep.subr.mxu0 0.0
    %649 = vmatpush1.msra.mxu0 0.0
    %650 = vmatprep.subr.mxu0 0.0
    %651 = vmatpush1.msra.mxu0 0.0
    %652 = vmatprep.subr.mxu0 0.0
    %653 = vmatpush1.msra.mxu0 0.0
    %654 = vmatprep.subr.mxu0 0.0
    %655 = vmatpush1.msra.mxu0 0.0
    %656 = vmatprep.subr.mxu0 0.0
    %657 = vmatpush1.msra.mxu0 0.0
    %658 = vmatprep.subr.mxu0 0.0
    %659 = vmatpush1.msra.mxu0 0.0
    %660 = vmatprep.mubr.f32.mxu0 0.0
    %661 = vmatmul.mubr.f32.gmra.mrb[0].mxu0 %v591
    %v662 = vpop.f32.mrb[0].mxu0
    %v663 = vadd.f32 0.0, %v662
    %v664 = vpop.f32.mrb[0].mxu0
    %v665 = vadd.f32 0.0, %v664
    %666 = vdwg.mxu0
    %667 = vmatprep.subr.mxu0 0.0
    %668 = vmatpush1.msra.mxu0 %v373
    %669 = vmatprep.subr.mxu0 0.0
    %670 = vmatpush1.msra.mxu0 %v376
    %671 = vmatprep.subr.mxu0 0.0
    %672 = vmatpush1.msra.mxu0 %v379
    %673 = vmatprep.subr.mxu0 0.0
    %674 = vmatpush1.msra.mxu0 %v382
    %675 = vmatprep.subr.mxu0 0.0
    %676 = vmatpush1.msra.mxu0 %v385
    %677 = vmatprep.subr.mxu0 0.0
    %678 = vmatpush1.msra.mxu0 %v388
    %679 = vmatprep.subr.mxu0 0.0
    %680 = vmatpush1.msra.mxu0 %v391
    %681 = vmatprep.subr.mxu0 0.0
    %682 = vmatpush1.msra.mxu0 %v394
    %683 = vmatprep.subr.mxu0 0.0
    %684 = vmatpush1.msra.mxu0 %v397
    %685 = vmatprep.subr.mxu0 0.0
    %686 = vmatpush1.msra.mxu0 %v400
    %687 = vmatprep.subr.mxu0 0.0
    %688 = vmatpush1.msra.mxu0 %v403
    %689 = vmatprep.subr.mxu0 0.0
    %690 = vmatpush1.msra.mxu0 %v406
    %691 = vmatprep.subr.mxu0 0.0
    %692 = vmatpush1.msra.mxu0 %v409
    %693 = vmatprep.subr.mxu0 0.0
    %694 = vmatpush1.msra.mxu0 %v412
    %695 = vmatprep.subr.mxu0 0.0
    %696 = vmatpush1.msra.mxu0 %v415
    %697 = vmatprep.subr.mxu0 0.0
    %698 = vmatpush1.msra.mxu0 %v418
    %699 = vmatprep.subr.mxu0 0.0
    %700 = vmatpush1.msra.mxu0 0.0
    %701 = vmatprep.subr.mxu0 0.0
    %702 = vmatpush1.msra.mxu0 0.0
    %703 = vmatprep.subr.mxu0 0.0
    %704 = vmatpush1.msra.mxu0 0.0
    %705 = vmatprep.subr.mxu0 0.0
    %706 = vmatpush1.msra.mxu0 0.0
    %707 = vmatprep.subr.mxu0 0.0
    %708 = vmatpush1.msra.mxu0 0.0
    %709 = vmatprep.subr.mxu0 0.0
    %710 = vmatpush1.msra.mxu0 0.0
    %711 = vmatprep.subr.mxu0 0.0
    %712 = vmatpush1.msra.mxu0 0.0
    %713 = vmatprep.subr.mxu0 0.0
    %714 = vmatpush1.msra.mxu0 0.0
    %715 = vmatprep.subr.mxu0 0.0
    %716 = vmatpush1.msra.mxu0 0.0
    %717 = vmatprep.subr.mxu0 0.0
    %718 = vmatpush1.msra.mxu0 0.0
    %719 = vmatprep.subr.mxu0 0.0
    %720 = vmatpush1.msra.mxu0 0.0
    %721 = vmatprep.subr.mxu0 0.0
    %722 = vmatpush1.msra.mxu0 0.0
    %723 = vmatprep.subr.mxu0 0.0
    %724 = vmatpush1.msra.mxu0 0.0
    %725 = vmatprep.subr.mxu0 0.0
    %726 = vmatpush1.msra.mxu0 0.0
    %727 = vmatprep.subr.mxu0 0.0
    %728 = vmatpush1.msra.mxu0 0.0
    %729 = vmatprep.subr.mxu0 0.0
    %730 = vmatpush1.msra.mxu0 0.0
    %731 = vmatprep.mubr.f32.mxu0 0.0
    %732 = vmatmul.mubr.f32.gmra.mrb[0].mxu0 %v591
    %v733 = vpop.f32.mrb[0].mxu0
    %v734 = vadd.f32 0.0, %v733
    %v735 = vpop.f32.mrb[0].mxu0
    %736 = vdwg.mxu0
    %v737 = vadd.f32 %v593, %v663
    %v738 = vxor.u32 %v737, 2147483648
    %v739 = vmul.f32 %v738, 1.442695
    %v740 = vpow.pop %v739
    %v741 = vadd.f32 %v740, 1.0
    %v742 = vrcp.pop %v741
    %v743 = vmul.f32 1.0, %v742
    %v744 = vadd.f32 %v594, %v665
    %v745 = vxor.u32 %v744, 2147483648
    %v746 = vmul.f32 %v745, 1.442695
    %v747 = vpow.pop %v746
    %v748 = vadd.f32 %v747, 1.0
    %v749 = vrcp.pop %v748
    %v750 = vmul.f32 1.0, %v749
    %v751 = vadd.f32 %v734, %v582
    %v752 = vmul.f32 %v743, %v751
    %v753 = vadd.f32 %v595, %v752
    %v754 = vtanh.pop %v753
    %v755 = vsub.f32 1.0, %v750
    %v756 = vmul.f32 %v755, %v754
    %v757 = vmul.f32 %v750, %v591
    %v758 = vadd.f32 %v756, %v757
    %759 = vst [vmem:[#allocation3 + $0x8] sm:$0xff] %v758
    %v760 = vld [vmem:[#allocation2 + $0x30] sm:$0xff]
    %v761 = vld [vmem:[#allocation2 + $0x38] sm:$0xff]
    %v762 = vld [vmem:[#allocation2 + $0x40] sm:$0xff]
    %763 = vmatprep.subr.mxu0 %v372
    %764 = vmatpush1.msra.mxu0 %v371
    %765 = vmatprep.subr.mxu0 %v375
    %766 = vmatpush1.msra.mxu0 %v374
    %767 = vmatprep.subr.mxu0 %v378
    %768 = vmatpush1.msra.mxu0 %v377
    %769 = vmatprep.subr.mxu0 %v381
    %770 = vmatpush1.msra.mxu0 %v380
    %771 = vmatprep.subr.mxu0 %v384
    %772 = vmatpush1.msra.mxu0 %v383
    %773 = vmatprep.subr.mxu0 %v387
    %774 = vmatpush1.msra.mxu0 %v386
    %775 = vmatprep.subr.mxu0 %v390
    %776 = vmatpush1.msra.mxu0 %v389
    %777 = vmatprep.subr.mxu0 %v393
    %778 = vmatpush1.msra.mxu0 %v392
    %779 = vmatprep.subr.mxu0 %v396
    %780 = vmatpush1.msra.mxu0 %v395
    %781 = vmatprep.subr.mxu0 %v399
    %782 = vmatpush1.msra.mxu0 %v398
    %783 = vmatprep.subr.mxu0 %v402
    %784 = vmatpush1.msra.mxu0 %v401
    %785 = vmatprep.subr.mxu0 %v405
    %786 = vmatpush1.msra.mxu0 %v404
    %787 = vmatprep.subr.mxu0 %v408
    %788 = vmatpush1.msra.mxu0 %v407
    %789 = vmatprep.subr.mxu0 %v411
    %790 = vmatpush1.msra.mxu0 %v410
    %791 = vmatprep.subr.mxu0 %v414
    %792 = vmatpush1.msra.mxu0 %v413
    %793 = vmatprep.subr.mxu0 %v417
    %794 = vmatpush1.msra.mxu0 %v416
    %795 = vmatprep.subr.mxu0 0.0
    %796 = vmatpush1.msra.mxu0 0.0
    %797 = vmatprep.subr.mxu0 0.0
    %798 = vmatpush1.msra.mxu0 0.0
    %799 = vmatprep.subr.mxu0 0.0
    %800 = vmatpush1.msra.mxu0 0.0
    %801 = vmatprep.subr.mxu0 0.0
    %802 = vmatpush1.msra.mxu0 0.0
    %803 = vmatprep.subr.mxu0 0.0
    %804 = vmatpush1.msra.mxu0 0.0
    %805 = vmatprep.subr.mxu0 0.0
    %806 = vmatpush1.msra.mxu0 0.0
    %807 = vmatprep.subr.mxu0 0.0
    %808 = vmatpush1.msra.mxu0 0.0
    %809 = vmatprep.subr.mxu0 0.0
    %810 = vmatpush1.msra.mxu0 0.0
    %811 = vmatprep.subr.mxu0 0.0
    %812 = vmatpush1.msra.mxu0 0.0
    %813 = vmatprep.subr.mxu0 0.0
    %814 = vmatpush1.msra.mxu0 0.0
    %815 = vmatprep.subr.mxu0 0.0
    %816 = vmatpush1.msra.mxu0 0.0
    %817 = vmatprep.subr.mxu0 0.0
    %818 = vmatpush1.msra.mxu0 0.0
    %819 = vmatprep.subr.mxu0 0.0
    %820 = vmatpush1.msra.mxu0 0.0
    %821 = vmatprep.subr.mxu0 0.0
    %822 = vmatpush1.msra.mxu0 0.0
    %823 = vmatprep.subr.mxu0 0.0
    %824 = vmatpush1.msra.mxu0 0.0
    %825 = vmatprep.subr.mxu0 0.0
    %826 = vmatpush1.msra.mxu0 0.0
    %827 = vmatprep.mubr.f32.mxu0 0.0
    %828 = vmatmul.mubr.f32.gmra.mrb[0].mxu0 %v758
    %v829 = vpop.f32.mrb[0].mxu0
    %v830 = vadd.f32 0.0, %v829
    %v831 = vpop.f32.mrb[0].mxu0
    %v832 = vadd.f32 0.0, %v831
    %833 = vdwg.mxu0
    %834 = vmatprep.subr.mxu0 0.0
    %835 = vmatpush1.msra.mxu0 %v373
    %836 = vmatprep.subr.mxu0 0.0
    %837 = vmatpush1.msra.mxu0 %v376
    %838 = vmatprep.subr.mxu0 0.0
    %839 = vmatpush1.msra.mxu0 %v379
    %840 = vmatprep.subr.mxu0 0.0
    %841 = vmatpush1.msra.mxu0 %v382
    %842 = vmatprep.subr.mxu0 0.0
    %843 = vmatpush1.msra.mxu0 %v385
    %844 = vmatprep.subr.mxu0 0.0
    %845 = vmatpush1.msra.mxu0 %v388
    %846 = vmatprep.subr.mxu0 0.0
    %847 = vmatpush1.msra.mxu0 %v391
    %848 = vmatprep.subr.mxu0 0.0
    %849 = vmatpush1.msra.mxu0 %v394
    %850 = vmatprep.subr.mxu0 0.0
    %851 = vmatpush1.msra.mxu0 %v397
    %852 = vmatprep.subr.mxu0 0.0
    %853 = vmatpush1.msra.mxu0 %v400
    %854 = vmatprep.subr.mxu0 0.0
    %855 = vmatpush1.msra.mxu0 %v403
    %856 = vmatprep.subr.mxu0 0.0
    %857 = vmatpush1.msra.mxu0 %v406
    %858 = vmatprep.subr.mxu0 0.0
    %859 = vmatpush1.msra.mxu0 %v409
    %860 = vmatprep.subr.mxu0 0.0
    %861 = vmatpush1.msra.mxu0 %v412
    %862 = vmatprep.subr.mxu0 0.0
    %863 = vmatpush1.msra.mxu0 %v415
    %864 = vmatprep.subr.mxu0 0.0
    %865 = vmatpush1.msra.mxu0 %v418
    %866 = vmatprep.subr.mxu0 0.0
    %867 = vmatpush1.msra.mxu0 0.0
    %868 = vmatprep.subr.mxu0 0.0
    %869 = vmatpush1.msra.mxu0 0.0
    %870 = vmatprep.subr.mxu0 0.0
    %871 = vmatpush1.msra.mxu0 0.0
    %872 = vmatprep.subr.mxu0 0.0
    %873 = vmatpush1.msra.mxu0 0.0
    %874 = vmatprep.subr.mxu0 0.0
    %875 = vmatpush1.msra.mxu0 0.0
    %876 = vmatprep.subr.mxu0 0.0
    %877 = vmatpush1.msra.mxu0 0.0
    %878 = vmatprep.subr.mxu0 0.0
    %879 = vmatpush1.msra.mxu0 0.0
    %880 = vmatprep.subr.mxu0 0.0
    %881 = vmatpush1.msra.mxu0 0.0
    %882 = vmatprep.subr.mxu0 0.0
    %883 = vmatpush1.msra.mxu0 0.0
    %884 = vmatprep.subr.mxu0 0.0
    %885 = vmatpush1.msra.mxu0 0.0
    %886 = vmatprep.subr.mxu0 0.0
    %887 = vmatpush1.msra.mxu0 0.0
    %888 = vmatprep.subr.mxu0 0.0
    %889 = vmatpush1.msra.mxu0 0.0
    %890 = vmatprep.subr.mxu0 0.0
    %891 = vmatpush1.msra.mxu0 0.0
    %892 = vmatprep.subr.mxu0 0.0
    %893 = vmatpush1.msra.mxu0 0.0
    %894 = vmatprep.subr.mxu0 0.0
    %895 = vmatpush1.msra.mxu0 0.0
    %896 = vmatprep.subr.mxu0 0.0
    %897 = vmatpush1.msra.mxu0 0.0
    %898 = vmatprep.mubr.f32.mxu0 0.0
    %899 = vmatmul.mubr.f32.gmra.mrb[0].mxu0 %v758
    %v900 = vpop.f32.mrb[0].mxu0
    %v901 = vadd.f32 0.0, %v900
    %v902 = vpop.f32.mrb[0].mxu0
    %903 = vdwg.mxu0
    %v904 = vadd.f32 %v760, %v830
    %v905 = vxor.u32 %v904, 2147483648
    %v906 = vmul.f32 %v905, 1.442695
    %v907 = vpow.pop %v906
    %v908 = vadd.f32 %v907, 1.0
    %v909 = vrcp.pop %v908
    %v910 = vmul.f32 1.0, %v909
    %v911 = vadd.f32 %v761, %v832
    %v912 = vxor.u32 %v911, 2147483648
    %v913 = vmul.f32 %v912, 1.442695
    %v914 = vpow.pop %v913
    %v915 = vadd.f32 %v914, 1.0
    %v916 = vrcp.pop %v915
    %v917 = vmul.f32 1.0, %v916
    %v918 = vadd.f32 %v901, %v582
    %v919 = vmul.f32 %v910, %v918
    %v920 = vadd.f32 %v762, %v919
    %v921 = vtanh.pop %v920
    %v922 = vsub.f32 1.0, %v917
    %v923 = vmul.f32 %v922, %v921
    %v924 = vmul.f32 %v917, %v758
    %v925 = vadd.f32 %v923, %v924
    %926 = vst [vmem:[#allocation3 + $0x10] sm:$0xff] %v925
    %v927 = vld [vmem:[#allocation2 + $0x48] sm:$0xff]
    %v928 = vld [vmem:[#allocation2 + $0x50] sm:$0xff]
    %v929 = vld [vmem:[#allocation2 + $0x58] sm:$0xff]
    %930 = vmatprep.subr.mxu0 %v372
    %931 = vmatpush1.msra.mxu0 %v371
    %932 = vmatprep.subr.mxu0 %v375
    %933 = vmatpush1.msra.mxu0 %v374
    %934 = vmatprep.subr.mxu0 %v378
    %935 = vmatpush1.msra.mxu0 %v377
    %936 = vmatprep.subr.mxu0 %v381
    %937 = vmatpush1.msra.mxu0 %v380
    %938 = vmatprep.subr.mxu0 %v384
    %939 = vmatpush1.msra.mxu0 %v383
    %940 = vmatprep.subr.mxu0 %v387
    %941 = vmatpush1.msra.mxu0 %v386
    %942 = vmatprep.subr.mxu0 %v390
    %943 = vmatpush1.msra.mxu0 %v389
    %944 = vmatprep.subr.mxu0 %v393
    %945 = vmatpush1.msra.mxu0 %v392
    %946 = vmatprep.subr.mxu0 %v396
    %947 = vmatpush1.msra.mxu0 %v395
    %948 = vmatprep.subr.mxu0 %v399
    %949 = vmatpush1.msra.mxu0 %v398
    %950 = vmatprep.subr.mxu0 %v402
    %951 = vmatpush1.msra.mxu0 %v401
    %952 = vmatprep.subr.mxu0 %v405
    %953 = vmatpush1.msra.mxu0 %v404
    %954 = vmatprep.subr.mxu0 %v408
    %955 = vmatpush1.msra.mxu0 %v407
    %956 = vmatprep.subr.mxu0 %v411
    %957 = vmatpush1.msra.mxu0 %v410
    %958 = vmatprep.subr.mxu0 %v414
    %959 = vmatpush1.msra.mxu0 %v413
    %960 = vmatprep.subr.mxu0 %v417
    %961 = vmatpush1.msra.mxu0 %v416
    %962 = vmatprep.subr.mxu0 0.0
    %963 = vmatpush1.msra.mxu0 0.0
    %964 = vmatprep.subr.mxu0 0.0
    %965 = vmatpush1.msra.mxu0 0.0
    %966 = vmatprep.subr.mxu0 0.0
    %967 = vmatpush1.msra.mxu0 0.0
    %968 = vmatprep.subr.mxu0 0.0
    %969 = vmatpush1.msra.mxu0 0.0
    %970 = vmatprep.subr.mxu0 0.0
    %971 = vmatpush1.msra.mxu0 0.0
    %972 = vmatprep.subr.mxu0 0.0
    %973 = vmatpush1.msra.mxu0 0.0
    %974 = vmatprep.subr.mxu0 0.0
    %975 = vmatpush1.msra.mxu0 0.0
    %976 = vmatprep.subr.mxu0 0.0
    %977 = vmatpush1.msra.mxu0 0.0
    %978 = vmatprep.subr.mxu0 0.0
    %979 = vmatpush1.msra.mxu0 0.0
    %980 = vmatprep.subr.mxu0 0.0
    %981 = vmatpush1.msra.mxu0 0.0
    %982 = vmatprep.subr.mxu0 0.0
    %983 = vmatpush1.msra.mxu0 0.0
    %984 = vmatprep.subr.mxu0 0.0
    %985 = vmatpush1.msra.mxu0 0.0
    %986 = vmatprep.subr.mxu0 0.0
    %987 = vmatpush1.msra.mxu0 0.0
    %988 = vmatprep.subr.mxu0 0.0
    %989 = vmatpush1.msra.mxu0 0.0
    %990 = vmatprep.subr.mxu0 0.0
    %991 = vmatpush1.msra.mxu0 0.0
    %992 = vmatprep.subr.mxu0 0.0
    %993 = vmatpush1.msra.mxu0 0.0
    %994 = vmatprep.mubr.f32.mxu0 0.0
    %995 = vmatmul.mubr.f32.gmra.mrb[0].mxu0 %v925
    %v996 = vpop.f32.mrb[0].mxu0
    %v997 = vadd.f32 0.0, %v996
    %v998 = vpop.f32.mrb[0].mxu0
    %v999 = vadd.f32 0.0, %v998
    %1000 = vdwg.mxu0
    %1001 = vmatprep.subr.mxu0 0.0
    %1002 = vmatpush1.msra.mxu0 %v373
    %1003 = vmatprep.subr.mxu0 0.0
    %1004 = vmatpush1.msra.mxu0 %v376
    %1005 = vmatprep.subr.mxu0 0.0
    %1006 = vmatpush1.msra.mxu0 %v379
    %1007 = vmatprep.subr.mxu0 0.0
    %1008 = vmatpush1.msra.mxu0 %v382
    %1009 = vmatprep.subr.mxu0 0.0
    %1010 = vmatpush1.msra.mxu0 %v385
    %1011 = vmatprep.subr.mxu0 0.0
    %1012 = vmatpush1.msra.mxu0 %v388
    %1013 = vmatprep.subr.mxu0 0.0
    %1014 = vmatpush1.msra.mxu0 %v391
    %1015 = vmatprep.subr.mxu0 0.0
    %1016 = vmatpush1.msra.mxu0 %v394
    %1017 = vmatprep.subr.mxu0 0.0
    %1018 = vmatpush1.msra.mxu0 %v397
    %1019 = vmatprep.subr.mxu0 0.0
    %1020 = vmatpush1.msra.mxu0 %v400
    %1021 = vmatprep.subr.mxu0 0.0
    %1022 = vmatpush1.msra.mxu0 %v403
    %1023 = vmatprep.subr.mxu0 0.0
    %1024 = vmatpush1.msra.mxu0 %v406
    %1025 = vmatprep.subr.mxu0 0.0
    %1026 = vmatpush1.msra.mxu0 %v409
    %1027 = vmatprep.subr.mxu0 0.0
    %1028 = vmatpush1.msra.mxu0 %v412
    %1029 = vmatprep.subr.mxu0 0.0
    %1030 = vmatpush1.msra.mxu0 %v415
    %1031 = vmatprep.subr.mxu0 0.0
    %1032 = vmatpush1.msra.mxu0 %v418
    %1033 = vmatprep.subr.mxu0 0.0
    %1034 = vmatpush1.msra.mxu0 0.0
    %1035 = vmatprep.subr.mxu0 0.0
    %1036 = vmatpush1.msra.mxu0 0.0
    %1037 = vmatprep.subr.mxu0 0.0
    %1038 = vmatpush1.msra.mxu0 0.0
    %1039 = vmatprep.subr.mxu0 0.0
    %1040 = vmatpush1.msra.mxu0 0.0
    %1041 = vmatprep.subr.mxu0 0.0
    %1042 = vmatpush1.msra.mxu0 0.0
    %1043 = vmatprep.subr.mxu0 0.0
    %1044 = vmatpush1.msra.mxu0 0.0
    %1045 = vmatprep.subr.mxu0 0.0
    %1046 = vmatpush1.msra.mxu0 0.0
    %1047 = vmatprep.subr.mxu0 0.0
    %1048 = vmatpush1.msra.mxu0 0.0
    %1049 = vmatprep.subr.mxu0 0.0
    %1050 = vmatpush1.msra.mxu0 0.0
    %1051 = vmatprep.subr.mxu0 0.0
    %1052 = vmatpush1.msra.mxu0 0.0
    %1053 = vmatprep.subr.mxu0 0.0
    %1054 = vmatpush1.msra.mxu0 0.0
    %1055 = vmatprep.subr.mxu0 0.0
    %1056 = vmatpush1.msra.mxu0 0.0
    %1057 = vmatprep.subr.mxu0 0.0
    %1058 = vmatpush1.msra.mxu0 0.0
    %1059 = vmatprep.subr.mxu0 0.0
    %1060 = vmatpush1.msra.mxu0 0.0
    %1061 = vmatprep.subr.mxu0 0.0
    %1062 = vmatpush1.msra.mxu0 0.0
    %1063 = vmatprep.subr.mxu0 0.0
    %1064 = vmatpush1.msra.mxu0 0.0
    %1065 = vmatprep.mubr.f32.mxu0 0.0
    %1066 = vmatmul.mubr.f32.gmra.mrb[0].mxu0 %v925
    %v1067 = vpop.f32.mrb[0].mxu0
    %v1068 = vadd.f32 0.0, %v1067
    %v1069 = vpop.f32.mrb[0].mxu0
    %1070 = vdwg.mxu0
    %v1071 = vadd.f32 %v927, %v997
    %v1072 = vxor.u32 %v1071, 2147483648
    %v1073 = vmul.f32 %v1072, 1.442695
    %v1074 = vpow.pop %v1073
    %v1075 = vadd.f32 %v1074, 1.0
    %v1076 = vrcp.pop %v1075
    %v1077 = vmul.f32 1.0, %v1076
    %v1078 = vadd.f32 %v928, %v999
    %v1079 = vxor.u32 %v1078, 2147483648
    %v1080 = vmul.f32 %v1079, 1.442695
    %v1081 = vpow.pop %v1080
    %v1082 = vadd.f32 %v1081, 1.0
    %v1083 = vrcp.pop %v1082
    %v1084 = vmul.f32 1.0, %v1083
    %v1085 = vadd.f32 %v1068, %v582
    %v1086 = vmul.f32 %v1077, %v1085
    %v1087 = vadd.f32 %v929, %v1086
    %v1088 = vtanh.pop %v1087
    %v1089 = vsub.f32 1.0, %v1084
    %v1090 = vmul.f32 %v1089, %v1088
    %v1091 = vmul.f32 %v1084, %v925
    %v1092 = vadd.f32 %v1090, %v1091
    %1093 = vst [vmem:[#allocation3 + $0x18] sm:$0xff] %v1092
    %v1094 = vld [vmem:[#allocation2 + $0x60] sm:$0xff]
    %v1095 = vld [vmem:[#allocation2 + $0x68] sm:$0xff]
    %v1096 = vld [vmem:[#allocation2 + $0x70] sm:$0xff]
    %1097 = vmatprep.subr.mxu0 %v372
    %1098 = vmatpush1.msra.mxu0 %v371
    %1099 = vmatprep.subr.mxu0 %v375
    %1100 = vmatpush1.msra.mxu0 %v374
    %1101 = vmatprep.subr.mxu0 %v378
    %1102 = vmatpush1.msra.mxu0 %v377
    %1103 = vmatprep.subr.mxu0 %v381
    %1104 = vmatpush1.msra.mxu0 %v380
    %1105 = vmatprep.subr.mxu0 %v384
    %1106 = vmatpush1.msra.mxu0 %v383
    %1107 = vmatprep.subr.mxu0 %v387
    %1108 = vmatpush1.msra.mxu0 %v386
    %1109 = vmatprep.subr.mxu0 %v390
    %1110 = vmatpush1.msra.mxu0 %v389
    %1111 = vmatprep.subr.mxu0 %v393
    %1112 = vmatpush1.msra.mxu0 %v392
    %1113 = vmatprep.subr.mxu0 %v396
    %1114 = vmatpush1.msra.mxu0 %v395
    %1115 = vmatprep.subr.mxu0 %v399
    %1116 = vmatpush1.msra.mxu0 %v398
    %1117 = vmatprep.subr.mxu0 %v402
    %1118 = vmatpush1.msra.mxu0 %v401
    %1119 = vmatprep.subr.mxu0 %v405
    %1120 = vmatpush1.msra.mxu0 %v404
    %1121 = vmatprep.subr.mxu0 %v408
    %1122 = vmatpush1.msra.mxu0 %v407
    %1123 = vmatprep.subr.mxu0 %v411
    %1124 = vmatpush1.msra.mxu0 %v410
    %1125 = vmatprep.subr.mxu0 %v414
    %1126 = vmatpush1.msra.mxu0 %v413
    %1127 = vmatprep.subr.mxu0 %v417
    %1128 = vmatpush1.msra.mxu0 %v416
    %1129 = vmatprep.subr.mxu0 0.0
    %1130 = vmatpush1.msra.mxu0 0.0
    %1131 = vmatprep.subr.mxu0 0.0
    %1132 = vmatpush1.msra.mxu0 0.0
    %1133 = vmatprep.subr.mxu0 0.0
    %1134 = vmatpush1.msra.mxu0 0.0
    %1135 = vmatprep.subr.mxu0 0.0
    %1136 = vmatpush1.msra.mxu0 0.0
    %1137 = vmatprep.subr.mxu0 0.0
    %1138 = vmatpush1.msra.mxu0 0.0
    %1139 = vmatprep.subr.mxu0 0.0
    %1140 = vmatpush1.msra.mxu0 0.0
    %1141 = vmatprep.subr.mxu0 0.0
    %1142 = vmatpush1.msra.mxu0 0.0
    %1143 = vmatprep.subr.mxu0 0.0
    %1144 = vmatpush1.msra.mxu0 0.0
    %1145 = vmatprep.subr.mxu0 0.0
    %1146 = vmatpush1.msra.mxu0 0.0
    %1147 = vmatprep.subr.mxu0 0.0
    %1148 = vmatpush1.msra.mxu0 0.0
    %1149 = vmatprep.subr.mxu0 0.0
    %1150 = vmatpush1.msra.mxu0 0.0
    %1151 = vmatprep.subr.mxu0 0.0
    %1152 = vmatpush1.msra.mxu0 0.0
    %1153 = vmatprep.subr.mxu0 0.0
    %1154 = vmatpush1.msra.mxu0 0.0
    %1155 = vmatprep.subr.mxu0 0.0
    %1156 = vmatpush1.msra.mxu0 0.0
    %1157 = vmatprep.subr.mxu0 0.0
    %1158 = vmatpush1.msra.mxu0 0.0
    %1159 = vmatprep.subr.mxu0 0.0
    %1160 = vmatpush1.msra.mxu0 0.0
    %1161 = vmatprep.mubr.f32.mxu0 0.0
    %1162 = vmatmul.mubr.f32.gmra.mrb[0].mxu0 %v1092
    %v1163 = vpop.f32.mrb[0].mxu0
    %v1164 = vadd.f32 0.0, %v1163
    %v1165 = vpop.f32.mrb[0].mxu0
    %v1166 = vadd.f32 0.0, %v1165
    %1167 = vdwg.mxu0
    %1168 = vmatprep.subr.mxu0 0.0
    %1169 = vmatpush1.msra.mxu0 %v373
    %1170 = vmatprep.subr.mxu0 0.0
    %1171 = vmatpush1.msra.mxu0 %v376
    %1172 = vmatprep.subr.mxu0 0.0
    %1173 = vmatpush1.msra.mxu0 %v379
    %1174 = vmatprep.subr.mxu0 0.0
    %1175 = vmatpush1.msra.mxu0 %v382
    %1176 = vmatprep.subr.mxu0 0.0
    %1177 = vmatpush1.msra.mxu0 %v385
    %1178 = vmatprep.subr.mxu0 0.0
    %1179 = vmatpush1.msra.mxu0 %v388
    %1180 = vmatprep.subr.mxu0 0.0
    %1181 = vmatpush1.msra.mxu0 %v391
    %1182 = vmatprep.subr.mxu0 0.0
    %1183 = vmatpush1.msra.mxu0 %v394
    %1184 = vmatprep.subr.mxu0 0.0
    %1185 = vmatpush1.msra.mxu0 %v397
    %1186 = vmatprep.subr.mxu0 0.0
    %1187 = vmatpush1.msra.mxu0 %v400
    %1188 = vmatprep.subr.mxu0 0.0
    %1189 = vmatpush1.msra.mxu0 %v403
    %1190 = vmatprep.subr.mxu0 0.0
    %1191 = vmatpush1.msra.mxu0 %v406
    %1192 = vmatprep.subr.mxu0 0.0
    %1193 = vmatpush1.msra.mxu0 %v409
    %1194 = vmatprep.subr.mxu0 0.0
    %1195 = vmatpush1.msra.mxu0 %v412
    %1196 = vmatprep.subr.mxu0 0.0
    %1197 = vmatpush1.msra.mxu0 %v415
    %1198 = vmatprep.subr.mxu0 0.0
    %1199 = vmatpush1.msra.mxu0 %v418
    %1200 = vmatprep.subr.mxu0 0.0
    %1201 = vmatpush1.msra.mxu0 0.0
    %1202 = vmatprep.subr.mxu0 0.0
    %1203 = vmatpush1.msra.mxu0 0.0
    %1204 = vmatprep.subr.mxu0 0.0
    %1205 = vmatpush1.msra.mxu0 0.0
    %1206 = vmatprep.subr.mxu0 0.0
    %1207 = vmatpush1.msra.mxu0 0.0
    %1208 = vmatprep.subr.mxu0 0.0
    %1209 = vmatpush1.msra.mxu0 0.0
    %1210 = vmatprep.subr.mxu0 0.0
    %1211 = vmatpush1.msra.mxu0 0.0
    %1212 = vmatprep.subr.mxu0 0.0
    %1213 = vmatpush1.msra.mxu0 0.0
    %1214 = vmatprep.subr.mxu0 0.0
    %1215 = vmatpush1.msra.mxu0 0.0
    %1216 = vmatprep.subr.mxu0 0.0
    %1217 = vmatpush1.msra.mxu0 0.0
    %1218 = vmatprep.subr.mxu0 0.0
    %1219 = vmatpush1.msra.mxu0 0.0
    %1220 = vmatprep.subr.mxu0 0.0
    %1221 = vmatpush1.msra.mxu0 0.0
    %1222 = vmatprep.subr.mxu0 0.0
    %1223 = vmatpush1.msra.mxu0 0.0
    %1224 = vmatprep.subr.mxu0 0.0
    %1225 = vmatpush1.msra.mxu0 0.0
    %1226 = vmatprep.subr.mxu0 0.0
    %1227 = vmatpush1.msra.mxu0 0.0
    %1228 = vmatprep.subr.mxu0 0.0
    %1229 = vmatpush1.msra.mxu0 0.0
    %1230 = vmatprep.subr.mxu0 0.0
    %1231 = vmatpush1.msra.mxu0 0.0
    %1232 = vmatprep.mubr.f32.mxu0 0.0
    %1233 = vmatmul.mubr.f32.gmra.mrb[0].mxu0 %v1092
    %v1234 = vpop.f32.mrb[0].mxu0
    %v1235 = vadd.f32 0.0, %v1234
    %v1236 = vpop.f32.mrb[0].mxu0
    %1237 = vdwg.mxu0
    %v1238 = vadd.f32 %v1094, %v1164
    %v1239 = vxor.u32 %v1238, 2147483648
    %v1240 = vmul.f32 %v1239, 1.442695
    %v1241 = vpow.pop %v1240
    %v1242 = vadd.f32 %v1241, 1.0
    %v1243 = vrcp.pop %v1242
    %v1244 = vmul.f32 1.0, %v1243
    %v1245 = vadd.f32 %v1095, %v1166
    %v1246 = vxor.u32 %v1245, 2147483648
    %v1247 = vmul.f32 %v1246, 1.442695
    %v1248 = vpow.pop %v1247
    %v1249 = vadd.f32 %v1248, 1.0
    %v1250 = vrcp.pop %v1249
    %v1251 = vmul.f32 1.0, %v1250
    %v1252 = vadd.f32 %v1235, %v582
    %v1253 = vmul.f32 %v1244, %v1252
    %v1254 = vadd.f32 %v1096, %v1253
    %v1255 = vtanh.pop %v1254
    %v1256 = vsub.f32 1.0, %v1251
    %v1257 = vmul.f32 %v1256, %v1255
    %v1258 = vmul.f32 %v1251, %v1092
    %v1259 = vadd.f32 %v1257, %v1258
    %1260 = vst [vmem:[#allocation3 + $0x20] sm:$0xff] %v1259
    %v1261 = vld [vmem:[#allocation2 + $0x78] sm:$0xff]
    %v1262 = vld [vmem:[#allocation2 + $0x80] sm:$0xff]
    %v1263 = vld [vmem:[#allocation2 + $0x88] sm:$0xff]
    %1264 = vmatprep.subr.mxu0 %v372
    %1265 = vmatpush1.msra.mxu0 %v371
    %1266 = vmatprep.subr.mxu0 %v375
    %1267 = vmatpush1.msra.mxu0 %v374
    %1268 = vmatprep.subr.mxu0 %v378
    %1269 = vmatpush1.msra.mxu0 %v377
    %1270 = vmatprep.subr.mxu0 %v381
    %1271 = vmatpush1.msra.mxu0 %v380
    %1272 = vmatprep.subr.mxu0 %v384
    %1273 = vmatpush1.msra.mxu0 %v383
    %1274 = vmatprep.subr.mxu0 %v387
    %1275 = vmatpush1.msra.mxu0 %v386
    %1276 = vmatprep.subr.mxu0 %v390
    %1277 = vmatpush1.msra.mxu0 %v389
    %1278 = vmatprep.subr.mxu0 %v393
    %1279 = vmatpush1.msra.mxu0 %v392
    %1280 = vmatprep.subr.mxu0 %v396
    %1281 = vmatpush1.msra.mxu0 %v395
    %1282 = vmatprep.subr.mxu0 %v399
    %1283 = vmatpush1.msra.mxu0 %v398
    %1284 = vmatprep.subr.mxu0 %v402
    %1285 = vmatpush1.msra.mxu0 %v401
    %1286 = vmatprep.subr.mxu0 %v405
    %1287 = vmatpush1.msra.mxu0 %v404
    %1288 = vmatprep.subr.mxu0 %v408
    %1289 = vmatpush1.msra.mxu0 %v407
    %1290 = vmatprep.subr.mxu0 %v411
    %1291 = vmatpush1.msra.mxu0 %v410
    %1292 = vmatprep.subr.mxu0 %v414
    %1293 = vmatpush1.msra.mxu0 %v413
    %1294 = vmatprep.subr.mxu0 %v417
    %1295 = vmatpush1.msra.mxu0 %v416
    %1296 = vmatprep.subr.mxu0 0.0
    %1297 = vmatpush1.msra.mxu0 0.0
    %1298 = vmatprep.subr.mxu0 0.0
    %1299 = vmatpush1.msra.mxu0 0.0
    %1300 = vmatprep.subr.mxu0 0.0
    %1301 = vmatpush1.msra.mxu0 0.0
    %1302 = vmatprep.subr.mxu0 0.0
    %1303 = vmatpush1.msra.mxu0 0.0
    %1304 = vmatprep.subr.mxu0 0.0
    %1305 = vmatpush1.msra.mxu0 0.0
    %1306 = vmatprep.subr.mxu0 0.0
    %1307 = vmatpush1.msra.mxu0 0.0
    %1308 = vmatprep.subr.mxu0 0.0
    %1309 = vmatpush1.msra.mxu0 0.0
    %1310 = vmatprep.subr.mxu0 0.0
    %1311 = vmatpush1.msra.mxu0 0.0
    %1312 = vmatprep.subr.mxu0 0.0
    %1313 = vmatpush1.msra.mxu0 0.0
    %1314 = vmatprep.subr.mxu0 0.0
    %1315 = vmatpush1.msra.mxu0 0.0
    %1316 = vmatprep.subr.mxu0 0.0
    %1317 = vmatpush1.msra.mxu0 0.0
    %1318 = vmatprep.subr.mxu0 0.0
    %1319 = vmatpush1.msra.mxu0 0.0
    %1320 = vmatprep.subr.mxu0 0.0
    %1321 = vmatpush1.msra.mxu0 0.0
    %1322 = vmatprep.subr.mxu0 0.0
    %1323 = vmatpush1.msra.mxu0 0.0
    %1324 = vmatprep.subr.mxu0 0.0
    %1325 = vmatpush1.msra.mxu0 0.0
    %1326 = vmatprep.subr.mxu0 0.0
    %1327 = vmatpush1.msra.mxu0 0.0
    %1328 = vmatprep.mubr.f32.mxu0 0.0
    %1329 = vmatmul.mubr.f32.gmra.mrb[0].mxu0 %v1259
    %v1330 = vpop.f32.mrb[0].mxu0
    %v1331 = vadd.f32 0.0, %v1330
    %v1332 = vpop.f32.mrb[0].mxu0
    %v1333 = vadd.f32 0.0, %v1332
    %1334 = vdwg.mxu0
    %1335 = vmatprep.subr.mxu0 0.0
    %1336 = vmatpush1.msra.mxu0 %v373
    %1337 = vmatprep.subr.mxu0 0.0
    %1338 = vmatpush1.msra.mxu0 %v376
    %1339 = vmatprep.subr.mxu0 0.0
    %1340 = vmatpush1.msra.mxu0 %v379
    %1341 = vmatprep.subr.mxu0 0.0
    %1342 = vmatpush1.msra.mxu0 %v382
    %1343 = vmatprep.subr.mxu0 0.0
    %1344 = vmatpush1.msra.mxu0 %v385
    %1345 = vmatprep.subr.mxu0 0.0
    %1346 = vmatpush1.msra.mxu0 %v388
    %1347 = vmatprep.subr.mxu0 0.0
    %1348 = vmatpush1.msra.mxu0 %v391
    %1349 = vmatprep.subr.mxu0 0.0
    %1350 = vmatpush1.msra.mxu0 %v394
    %1351 = vmatprep.subr.mxu0 0.0
    %1352 = vmatpush1.msra.mxu0 %v397
    %1353 = vmatprep.subr.mxu0 0.0
    %1354 = vmatpush1.msra.mxu0 %v400
    %1355 = vmatprep.subr.mxu0 0.0
    %1356 = vmatpush1.msra.mxu0 %v403
    %1357 = vmatprep.subr.mxu0 0.0
    %1358 = vmatpush1.msra.mxu0 %v406
    %1359 = vmatprep.subr.mxu0 0.0
    %1360 = vmatpush1.msra.mxu0 %v409
    %1361 = vmatprep.subr.mxu0 0.0
    %1362 = vmatpush1.msra.mxu0 %v412
    %1363 = vmatprep.subr.mxu0 0.0
    %1364 = vmatpush1.msra.mxu0 %v415
    %1365 = vmatprep.subr.mxu0 0.0
    %1366 = vmatpush1.msra.mxu0 %v418
    %1367 = vmatprep.subr.mxu0 0.0
    %1368 = vmatpush1.msra.mxu0 0.0
    %1369 = vmatprep.subr.mxu0 0.0
    %1370 = vmatpush1.msra.mxu0 0.0
    %1371 = vmatprep.subr.mxu0 0.0
    %1372 = vmatpush1.msra.mxu0 0.0
    %1373 = vmatprep.subr.mxu0 0.0
    %1374 = vmatpush1.msra.mxu0 0.0
    %1375 = vmatprep.subr.mxu0 0.0
    %1376 = vmatpush1.msra.mxu0 0.0
    %1377 = vmatprep.subr.mxu0 0.0
    %1378 = vmatpush1.msra.mxu0 0.0
    %1379 = vmatprep.subr.mxu0 0.0
    %1380 = vmatpush1.msra.mxu0 0.0
    %1381 = vmatprep.subr.mxu0 0.0
    %1382 = vmatpush1.msra.mxu0 0.0
    %1383 = vmatprep.subr.mxu0 0.0
    %1384 = vmatpush1.msra.mxu0 0.0
    %1385 = vmatprep.subr.mxu0 0.0
    %1386 = vmatpush1.msra.mxu0 0.0
    %1387 = vmatprep.subr.mxu0 0.0
    %1388 = vmatpush1.msra.mxu0 0.0
    %1389 = vmatprep.subr.mxu0 0.0
    %1390 = vmatpush1.msra.mxu0 0.0
    %1391 = vmatprep.subr.mxu0 0.0
    %1392 = vmatpush1.msra.mxu0 0.0
    %1393 = vmatprep.subr.mxu0 0.0
    %1394 = vmatpush1.msra.mxu0 0.0
    %1395 = vmatprep.subr.mxu0 0.0
    %1396 = vmatpush1.msra.mxu0 0.0
    %1397 = vmatprep.subr.mxu0 0.0
    %1398 = vmatpush1.msra.mxu0 0.0
    %1399 = vmatprep.mubr.f32.mxu0 0.0
    %1400 = vmatmul.mubr.f32.gmra.mrb[0].mxu0 %v1259
    %v1401 = vpop.f32.mrb[0].mxu0
    %v1402 = vadd.f32 0.0, %v1401
    %v1403 = vpop.f32.mrb[0].mxu0
    %1404 = vdwg.mxu0
    %v1405 = vadd.f32 %v1261, %v1331
    %v1406 = vxor.u32 %v1405, 2147483648
    %v1407 = vmul.f32 %v1406, 1.442695
    %v1408 = vpow.pop %v1407
    %v1409 = vadd.f32 %v1408, 1.0
    %v1410 = vrcp.pop %v1409
    %v1411 = vmul.f32 1.0, %v1410
    %v1412 = vadd.f32 %v1262, %v1333
    %v1413 = vxor.u32 %v1412, 2147483648
    %v1414 = vmul.f32 %v1413, 1.442695
    %v1415 = vpow.pop %v1414
    %v1416 = vadd.f32 %v1415, 1.0
    %v1417 = vrcp.pop %v1416
    %v1418 = vmul.f32 1.0, %v1417
    %v1419 = vadd.f32 %v1402, %v582
    %v1420 = vmul.f32 %v1411, %v1419
    %v1421 = vadd.f32 %v1263, %v1420
    %v1422 = vtanh.pop %v1421
    %v1423 = vsub.f32 1.0, %v1418
    %v1424 = vmul.f32 %v1423, %v1422
    %v1425 = vmul.f32 %v1418, %v1259
    %v1426 = vadd.f32 %v1424, %v1425
    %1427 = vst [vmem:[#allocation3 + $0x28] sm:$0xff] %v1426
    %v1428 = vld [vmem:[#allocation2 + $0x90] sm:$0xff]
    %v1429 = vld [vmem:[#allocation2 + $0x98] sm:$0xff]
    %v1430 = vld [vmem:[#allocation2 + $0xa0] sm:$0xff]
    %1431 = vmatprep.subr.mxu0 %v372
    %1432 = vmatpush1.msra.mxu0 %v371
    %1433 = vmatprep.subr.mxu0 %v375
    %1434 = vmatpush1.msra.mxu0 %v374
    %1435 = vmatprep.subr.mxu0 %v378
    %1436 = vmatpush1.msra.mxu0 %v377
    %1437 = vmatprep.subr.mxu0 %v381
    %1438 = vmatpush1.msra.mxu0 %v380
    %1439 = vmatprep.subr.mxu0 %v384
    %1440 = vmatpush1.msra.mxu0 %v383
    %1441 = vmatprep.subr.mxu0 %v387
    %1442 = vmatpush1.msra.mxu0 %v386
    %1443 = vmatprep.subr.mxu0 %v390
    %1444 = vmatpush1.msra.mxu0 %v389
    %1445 = vmatprep.subr.mxu0 %v393
    %1446 = vmatpush1.msra.mxu0 %v392
    %1447 = vmatprep.subr.mxu0 %v396
    %1448 = vmatpush1.msra.mxu0 %v395
    %1449 = vmatprep.subr.mxu0 %v399
    %1450 = vmatpush1.msra.mxu0 %v398
    %1451 = vmatprep.subr.mxu0 %v402
    %1452 = vmatpush1.msra.mxu0 %v401
    %1453 = vmatprep.subr.mxu0 %v405
    %1454 = vmatpush1.msra.mxu0 %v404
    %1455 = vmatprep.subr.mxu0 %v408
    %1456 = vmatpush1.msra.mxu0 %v407
    %1457 = vmatprep.subr.mxu0 %v411
    %1458 = vmatpush1.msra.mxu0 %v410
    %1459 = vmatprep.subr.mxu0 %v414
    %1460 = vmatpush1.msra.mxu0 %v413
    %1461 = vmatprep.subr.mxu0 %v417
    %1462 = vmatpush1.msra.mxu0 %v416
    %1463 = vmatprep.subr.mxu0 0.0
    %1464 = vmatpush1.msra.mxu0 0.0
    %1465 = vmatprep.subr.mxu0 0.0
    %1466 = vmatpush1.msra.mxu0 0.0
    %1467 = vmatprep.subr.mxu0 0.0
    %1468 = vmatpush1.msra.mxu0 0.0
    %1469 = vmatprep.subr.mxu0 0.0
    %1470 = vmatpush1.msra.mxu0 0.0
    %1471 = vmatprep.subr.mxu0 0.0
    %1472 = vmatpush1.msra.mxu0 0.0
    %1473 = vmatprep.subr.mxu0 0.0
    %1474 = vmatpush1.msra.mxu0 0.0
    %1475 = vmatprep.subr.mxu0 0.0
    %1476 = vmatpush1.msra.mxu0 0.0
    %1477 = vmatprep.subr.mxu0 0.0
    %1478 = vmatpush1.msra.mxu0 0.0
    %1479 = vmatprep.subr.mxu0 0.0
    %1480 = vmatpush1.msra.mxu0 0.0
    %1481 = vmatprep.subr.mxu0 0.0
    %1482 = vmatpush1.msra.mxu0 0.0
    %1483 = vmatprep.subr.mxu0 0.0
    %1484 = vmatpush1.msra.mxu0 0.0
    %1485 = vmatprep.subr.mxu0 0.0
    %1486 = vmatpush1.msra.mxu0 0.0
    %1487 = vmatprep.subr.mxu0 0.0
    %1488 = vmatpush1.msra.mxu0 0.0
    %1489 = vmatprep.subr.mxu0 0.0
    %1490 = vmatpush1.msra.mxu0 0.0
    %1491 = vmatprep.subr.mxu0 0.0
    %1492 = vmatpush1.msra.mxu0 0.0
    %1493 = vmatprep.subr.mxu0 0.0
    %1494 = vmatpush1.msra.mxu0 0.0
    %1495 = vmatprep.mubr.f32.mxu0 0.0
    %1496 = vmatmul.mubr.f32.gmra.mrb[0].mxu0 %v1426
    %v1497 = vpop.f32.mrb[0].mxu0
    %v1498 = vadd.f32 0.0, %v1497
    %v1499 = vpop.f32.mrb[0].mxu0
    %v1500 = vadd.f32 0.0, %v1499
    %1501 = vdwg.mxu0
    %1502 = vmatprep.subr.mxu0 0.0
    %1503 = vmatpush1.msra.mxu0 %v373
    %1504 = vmatprep.subr.mxu0 0.0
    %1505 = vmatpush1.msra.mxu0 %v376
    %1506 = vmatprep.subr.mxu0 0.0
    %1507 = vmatpush1.msra.mxu0 %v379
    %1508 = vmatprep.subr.mxu0 0.0
    %1509 = vmatpush1.msra.mxu0 %v382
    %1510 = vmatprep.subr.mxu0 0.0
    %1511 = vmatpush1.msra.mxu0 %v385
    %1512 = vmatprep.subr.mxu0 0.0
    %1513 = vmatpush1.msra.mxu0 %v388
    %1514 = vmatprep.subr.mxu0 0.0
    %1515 = vmatpush1.msra.mxu0 %v391
    %1516 = vmatprep.subr.mxu0 0.0
    %1517 = vmatpush1.msra.mxu0 %v394
    %1518 = vmatprep.subr.mxu0 0.0
    %1519 = vmatpush1.msra.mxu0 %v397
    %1520 = vmatprep.subr.mxu0 0.0
    %1521 = vmatpush1.msra.mxu0 %v400
    %1522 = vmatprep.subr.mxu0 0.0
    %1523 = vmatpush1.msra.mxu0 %v403
    %1524 = vmatprep.subr.mxu0 0.0
    %1525 = vmatpush1.msra.mxu0 %v406
    %1526 = vmatprep.subr.mxu0 0.0
    %1527 = vmatpush1.msra.mxu0 %v409
    %1528 = vmatprep.subr.mxu0 0.0
    %1529 = vmatpush1.msra.mxu0 %v412
    %1530 = vmatprep.subr.mxu0 0.0
    %1531 = vmatpush1.msra.mxu0 %v415
    %1532 = vmatprep.subr.mxu0 0.0
    %1533 = vmatpush1.msra.mxu0 %v418
    %1534 = vmatprep.subr.mxu0 0.0
    %1535 = vmatpush1.msra.mxu0 0.0
    %1536 = vmatprep.subr.mxu0 0.0
    %1537 = vmatpush1.msra.mxu0 0.0
    %1538 = vmatprep.subr.mxu0 0.0
    %1539 = vmatpush1.msra.mxu0 0.0
    %1540 = vmatprep.subr.mxu0 0.0
    %1541 = vmatpush1.msra.mxu0 0.0
    %1542 = vmatprep.subr.mxu0 0.0
    %1543 = vmatpush1.msra.mxu0 0.0
    %1544 = vmatprep.subr.mxu0 0.0
    %1545 = vmatpush1.msra.mxu0 0.0
    %1546 = vmatprep.subr.mxu0 0.0
    %1547 = vmatpush1.msra.mxu0 0.0
    %1548 = vmatprep.subr.mxu0 0.0
    %1549 = vmatpush1.msra.mxu0 0.0
    %1550 = vmatprep.subr.mxu0 0.0
    %1551 = vmatpush1.msra.mxu0 0.0
    %1552 = vmatprep.subr.mxu0 0.0
    %1553 = vmatpush1.msra.mxu0 0.0
    %1554 = vmatprep.subr.mxu0 0.0
    %1555 = vmatpush1.msra.mxu0 0.0
    %1556 = vmatprep.subr.mxu0 0.0
    %1557 = vmatpush1.msra.mxu0 0.0
    %1558 = vmatprep.subr.mxu0 0.0
    %1559 = vmatpush1.msra.mxu0 0.0
    %1560 = vmatprep.subr.mxu0 0.0
    %1561 = vmatpush1.msra.mxu0 0.0
    %1562 = vmatprep.subr.mxu0 0.0
    %1563 = vmatpush1.msra.mxu0 0.0
    %1564 = vmatprep.subr.mxu0 0.0
    %1565 = vmatpush1.msra.mxu0 0.0
    %1566 = vmatprep.mubr.f32.mxu0 0.0
    %1567 = vmatmul.mubr.f32.gmra.mrb[0].mxu0 %v1426
    %v1568 = vpop.f32.mrb[0].mxu0
    %v1569 = vadd.f32 0.0, %v1568
    %v1570 = vpop.f32.mrb[0].mxu0
    %1571 = vdwg.mxu0
    %v1572 = vadd.f32 %v1428, %v1498
    %v1573 = vxor.u32 %v1572, 2147483648
    %v1574 = vmul.f32 %v1573, 1.442695
    %v1575 = vpow.pop %v1574
    %v1576 = vadd.f32 %v1575, 1.0
    %v1577 = vrcp.pop %v1576
    %v1578 = vmul.f32 1.0, %v1577
    %v1579 = vadd.f32 %v1429, %v1500
    %v1580 = vxor.u32 %v1579, 2147483648
    %v1581 = vmul.f32 %v1580, 1.442695
    %v1582 = vpow.pop %v1581
    %v1583 = vadd.f32 %v1582, 1.0
    %v1584 = vrcp.pop %v1583
    %v1585 = vmul.f32 1.0, %v1584
    %v1586 = vadd.f32 %v1569, %v582
    %v1587 = vmul.f32 %v1578, %v1586
    %v1588 = vadd.f32 %v1430, %v1587
    %v1589 = vtanh.pop %v1588
    %v1590 = vsub.f32 1.0, %v1585
    %v1591 = vmul.f32 %v1590, %v1589
    %v1592 = vmul.f32 %v1585, %v1426
    %v1593 = vadd.f32 %v1591, %v1592
    %1594 = vst [vmem:[#allocation3 + $0x30] sm:$0xff] %v1593
    %v1595 = vld [vmem:[#allocation2 + $0xa8] sm:$0xff]
    %v1596 = vld [vmem:[#allocation2 + $0xb0] sm:$0xff]
    %v1597 = vld [vmem:[#allocation2 + $0xb8] sm:$0xff]
    %1598 = vmatprep.subr.mxu0 %v372
    %1599 = vmatpush1.msra.mxu0 %v371
    %1600 = vmatprep.subr.mxu0 %v375
    %1601 = vmatpush1.msra.mxu0 %v374
    %1602 = vmatprep.subr.mxu0 %v378
    %1603 = vmatpush1.msra.mxu0 %v377
    %1604 = vmatprep.subr.mxu0 %v381
    %1605 = vmatpush1.msra.mxu0 %v380
    %1606 = vmatprep.subr.mxu0 %v384
    %1607 = vmatpush1.msra.mxu0 %v383
    %1608 = vmatprep.subr.mxu0 %v387
    %1609 = vmatpush1.msra.mxu0 %v386
    %1610 = vmatprep.subr.mxu0 %v390
    %1611 = vmatpush1.msra.mxu0 %v389
    %1612 = vmatprep.subr.mxu0 %v393
    %1613 = vmatpush1.msra.mxu0 %v392
    %1614 = vmatprep.subr.mxu0 %v396
    %1615 = vmatpush1.msra.mxu0 %v395
    %1616 = vmatprep.subr.mxu0 %v399
    %1617 = vmatpush1.msra.mxu0 %v398
    %1618 = vmatprep.subr.mxu0 %v402
    %1619 = vmatpush1.msra.mxu0 %v401
    %1620 = vmatprep.subr.mxu0 %v405
    %1621 = vmatpush1.msra.mxu0 %v404
    %1622 = vmatprep.subr.mxu0 %v408
    %1623 = vmatpush1.msra.mxu0 %v407
    %1624 = vmatprep.subr.mxu0 %v411
    %1625 = vmatpush1.msra.mxu0 %v410
    %1626 = vmatprep.subr.mxu0 %v414
    %1627 = vmatpush1.msra.mxu0 %v413
    %1628 = vmatprep.subr.mxu0 %v417
    %1629 = vmatpush1.msra.mxu0 %v416
    %1630 = vmatprep.subr.mxu0 0.0
    %1631 = vmatpush1.msra.mxu0 0.0
    %1632 = vmatprep.subr.mxu0 0.0
    %1633 = vmatpush1.msra.mxu0 0.0
    %1634 = vmatprep.subr.mxu0 0.0
    %1635 = vmatpush1.msra.mxu0 0.0
    %1636 = vmatprep.subr.mxu0 0.0
    %1637 = vmatpush1.msra.mxu0 0.0
    %1638 = vmatprep.subr.mxu0 0.0
    %1639 = vmatpush1.msra.mxu0 0.0
    %1640 = vmatprep.subr.mxu0 0.0
    %1641 = vmatpush1.msra.mxu0 0.0
    %1642 = vmatprep.subr.mxu0 0.0
    %1643 = vmatpush1.msra.mxu0 0.0
    %1644 = vmatprep.subr.mxu0 0.0
    %1645 = vmatpush1.msra.mxu0 0.0
    %1646 = vmatprep.subr.mxu0 0.0
    %1647 = vmatpush1.msra.mxu0 0.0
    %1648 = vmatprep.subr.mxu0 0.0
    %1649 = vmatpush1.msra.mxu0 0.0
    %1650 = vmatprep.subr.mxu0 0.0
    %1651 = vmatpush1.msra.mxu0 0.0
    %1652 = vmatprep.subr.mxu0 0.0
    %1653 = vmatpush1.msra.mxu0 0.0
    %1654 = vmatprep.subr.mxu0 0.0
    %1655 = vmatpush1.msra.mxu0 0.0
    %1656 = vmatprep.subr.mxu0 0.0
    %1657 = vmatpush1.msra.mxu0 0.0
    %1658 = vmatprep.subr.mxu0 0.0
    %1659 = vmatpush1.msra.mxu0 0.0
    %1660 = vmatprep.subr.mxu0 0.0
    %1661 = vmatpush1.msra.mxu0 0.0
    %1662 = vmatprep.mubr.f32.mxu0 0.0
    %1663 = vmatmul.mubr.f32.gmra.mrb[0].mxu0 %v1593
    %v1664 = vpop.f32.mrb[0].mxu0
    %v1665 = vadd.f32 0.0, %v1664
    %v1666 = vpop.f32.mrb[0].mxu0
    %v1667 = vadd.f32 0.0, %v1666
    %1668 = vdwg.mxu0
    %1669 = vmatprep.subr.mxu0 0.0
    %1670 = vmatpush1.msra.mxu0 %v373
    %1671 = vmatprep.subr.mxu0 0.0
    %1672 = vmatpush1.msra.mxu0 %v376
    %1673 = vmatprep.subr.mxu0 0.0
    %1674 = vmatpush1.msra.mxu0 %v379
    %1675 = vmatprep.subr.mxu0 0.0
    %1676 = vmatpush1.msra.mxu0 %v382
    %1677 = vmatprep.subr.mxu0 0.0
    %1678 = vmatpush1.msra.mxu0 %v385
    %1679 = vmatprep.subr.mxu0 0.0
    %1680 = vmatpush1.msra.mxu0 %v388
    %1681 = vmatprep.subr.mxu0 0.0
    %1682 = vmatpush1.msra.mxu0 %v391
    %1683 = vmatprep.subr.mxu0 0.0
    %1684 = vmatpush1.msra.mxu0 %v394
    %1685 = vmatprep.subr.mxu0 0.0
    %1686 = vmatpush1.msra.mxu0 %v397
    %1687 = vmatprep.subr.mxu0 0.0
    %1688 = vmatpush1.msra.mxu0 %v400
    %1689 = vmatprep.subr.mxu0 0.0
    %1690 = vmatpush1.msra.mxu0 %v403
    %1691 = vmatprep.subr.mxu0 0.0
    %1692 = vmatpush1.msra.mxu0 %v406
    %1693 = vmatprep.subr.mxu0 0.0
    %1694 = vmatpush1.msra.mxu0 %v409
    %1695 = vmatprep.subr.mxu0 0.0
    %1696 = vmatpush1.msra.mxu0 %v412
    %1697 = vmatprep.subr.mxu0 0.0
    %1698 = vmatpush1.msra.mxu0 %v415
    %1699 = vmatprep.subr.mxu0 0.0
    %1700 = vmatpush1.msra.mxu0 %v418
    %1701 = vmatprep.subr.mxu0 0.0
    %1702 = vmatpush1.msra.mxu0 0.0
    %1703 = vmatprep.subr.mxu0 0.0
    %1704 = vmatpush1.msra.mxu0 0.0
    %1705 = vmatprep.subr.mxu0 0.0
    %1706 = vmatpush1.msra.mxu0 0.0
    %1707 = vmatprep.subr.mxu0 0.0
    %1708 = vmatpush1.msra.mxu0 0.0
    %1709 = vmatprep.subr.mxu0 0.0
    %1710 = vmatpush1.msra.mxu0 0.0
    %1711 = vmatprep.subr.mxu0 0.0
    %1712 = vmatpush1.msra.mxu0 0.0
    %1713 = vmatprep.subr.mxu0 0.0
    %1714 = vmatpush1.msra.mxu0 0.0
    %1715 = vmatprep.subr.mxu0 0.0
    %1716 = vmatpush1.msra.mxu0 0.0
    %1717 = vmatprep.subr.mxu0 0.0
    %1718 = vmatpush1.msra.mxu0 0.0
    %1719 = vmatprep.subr.mxu0 0.0
    %1720 = vmatpush1.msra.mxu0 0.0
    %1721 = vmatprep.subr.mxu0 0.0
    %1722 = vmatpush1.msra.mxu0 0.0
    %1723 = vmatprep.subr.mxu0 0.0
    %1724 = vmatpush1.msra.mxu0 0.0
    %1725 = vmatprep.subr.mxu0 0.0
    %1726 = vmatpush1.msra.mxu0 0.0
    %1727 = vmatprep.subr.mxu0 0.0
    %1728 = vmatpush1.msra.mxu0 0.0
    %1729 = vmatprep.subr.mxu0 0.0
    %1730 = vmatpush1.msra.mxu0 0.0
    %1731 = vmatprep.subr.mxu0 0.0
    %1732 = vmatpush1.msra.mxu0 0.0
    %1733 = vmatprep.mubr.f32.mxu0 0.0
    %1734 = vmatmul.mubr.f32.gmra.mrb[0].mxu0 %v1593
    %v1735 = vpop.f32.mrb[0].mxu0
    %v1736 = vadd.f32 0.0, %v1735
    %v1737 = vpop.f32.mrb[0].mxu0
    %1738 = vdwg.mxu0
    %v1739 = vadd.f32 %v1595, %v1665
    %v1740 = vxor.u32 %v1739, 2147483648
    %v1741 = vmul.f32 %v1740, 1.442695
    %v1742 = vpow.pop %v1741
    %v1743 = vadd.f32 %v1742, 1.0
    %v1744 = vrcp.pop %v1743
    %v1745 = vmul.f32 1.0, %v1744
    %v1746 = vadd.f32 %v1596, %v1667
    %v1747 = vxor.u32 %v1746, 2147483648
    %v1748 = vmul.f32 %v1747, 1.442695
    %v1749 = vpow.pop %v1748
    %v1750 = vadd.f32 %v1749, 1.0
    %v1751 = vrcp.pop %v1750
    %v1752 = vmul.f32 1.0, %v1751
    %v1753 = vadd.f32 %v1736, %v582
    %v1754 = vmul.f32 %v1745, %v1753
    %v1755 = vadd.f32 %v1597, %v1754
    %v1756 = vtanh.pop %v1755
    %v1757 = vsub.f32 1.0, %v1752
    %v1758 = vmul.f32 %v1757, %v1756
    %v1759 = vmul.f32 %v1752, %v1593
    %v1760 = vadd.f32 %v1758, %v1759
    %1761 = vst [vmem:[#allocation3 + $0x38] sm:$0xff] %v1760
    %v1762 = vld [vmem:[#allocation3] sm:$0xff]
    %v1763 = vld [vmem:[#allocation3 + $0x8] sm:$0xff]
    %v1764 = vld [vmem:[#allocation3 + $0x10] sm:$0xff]
    %v1765 = vld [vmem:[#allocation3 + $0x18] sm:$0xff]
    %v1766 = vld [vmem:[#allocation3 + $0x20] sm:$0xff]
    %v1767 = vld [vmem:[#allocation3 + $0x28] sm:$0xff]
    %v1768 = vld [vmem:[#allocation3 + $0x30] sm:$0xff]
    %v1769 = vld [vmem:[#allocation3 + $0x38] sm:$0xff]
    %v1770 = vld [vmem:[#allocation6] sm:$0xff]
    %v1771 = vld [vmem:[#allocation6 + $0x8] sm:$0xff]
    %v1772 = vld [vmem:[#allocation6 + $0x10] sm:$0xff]
    %v1773 = vld [vmem:[#allocation6 + $0x18] sm:$0xff]
    %v1774 = vld [vmem:[#allocation6 + $0x20] sm:$0xff]
    %v1775 = vld [vmem:[#allocation6 + $0x28] sm:$0xff]
    %v1776 = vld [vmem:[#allocation6 + $0x30] sm:$0xff]
    %v1777 = vld [vmem:[#allocation6 + $0x38] sm:$0xff]
    %v1778 = vld [vmem:[#allocation6 + $0x40] sm:$0xff]
    %v1779 = vld [vmem:[#allocation6 + $0x48] sm:$0xff]
    %v1780 = vld [vmem:[#allocation6 + $0x50] sm:$0xff]
    %v1781 = vld [vmem:[#allocation6 + $0x58] sm:$0xff]
    %v1782 = vld [vmem:[#allocation6 + $0x60] sm:$0xff]
    %v1783 = vld [vmem:[#allocation6 + $0x68] sm:$0xff]
    %v1784 = vld [vmem:[#allocation6 + $0x70] sm:$0xff]
    %v1785 = vld [vmem:[#allocation6 + $0x78] sm:$0xff]
    %v1786 = vld [vmem:[#allocation6 + $0x80] sm:$0xff]
    %v1787 = vld [vmem:[#allocation6 + $0x88] sm:$0xff]
    %v1788 = vld [vmem:[#allocation6 + $0x90] sm:$0xff]
    %v1789 = vld [vmem:[#allocation6 + $0x98] sm:$0xff]
    %v1790 = vld [vmem:[#allocation6 + $0xa0] sm:$0xff]
    %v1791 = vld [vmem:[#allocation6 + $0xa8] sm:$0xff]
    %v1792 = vld [vmem:[#allocation6 + $0xb0] sm:$0xff]
    %v1793 = vld [vmem:[#allocation6 + $0xb8] sm:$0xff]
    %v1794 = vld [vmem:[#allocation6 + $0xc0] sm:$0xff]
    %v1795 = vld [vmem:[#allocation6 + $0xc8] sm:$0xff]
    %v1796 = vld [vmem:[#allocation6 + $0xd0] sm:$0xff]
    %v1797 = vld [vmem:[#allocation6 + $0xd8] sm:$0xff]
    %v1798 = vld [vmem:[#allocation6 + $0xe0] sm:$0xff]
    %v1799 = vld [vmem:[#allocation6 + $0xe8] sm:$0xff]
    %v1800 = vld [vmem:[#allocation6 + $0xf0] sm:$0xff]
    %v1801 = vld [vmem:[#allocation6 + $0xf8] sm:$0xff]
    %v1802 = vld [vmem:[#allocation6 + $0x100] sm:$0xff]
    %v1803 = vld [vmem:[#allocation6 + $0x108] sm:$0xff]
    %v1804 = vld [vmem:[#allocation6 + $0x110] sm:$0xff]
    %v1805 = vld [vmem:[#allocation6 + $0x118] sm:$0xff]
    %v1806 = vld [vmem:[#allocation6 + $0x120] sm:$0xff]
    %v1807 = vld [vmem:[#allocation6 + $0x128] sm:$0xff]
    %v1808 = vld [vmem:[#allocation6 + $0x130] sm:$0xff]
    %v1809 = vld [vmem:[#allocation6 + $0x138] sm:$0xff]
    %v1810 = vld [vmem:[#allocation6 + $0x140] sm:$0xff]
    %v1811 = vld [vmem:[#allocation6 + $0x148] sm:$0xff]
    %v1812 = vld [vmem:[#allocation6 + $0x150] sm:$0xff]
    %v1813 = vld [vmem:[#allocation6 + $0x158] sm:$0xff]
    %v1814 = vld [vmem:[#allocation6 + $0x160] sm:$0xff]
    %v1815 = vld [vmem:[#allocation6 + $0x168] sm:$0xff]
    %v1816 = vld [vmem:[#allocation6 + $0x170] sm:$0xff]
    %v1817 = vld [vmem:[#allocation6 + $0x178] sm:$0xff]
    %v1818 = vld [vmem:[%s7] sm:$0x7]
    %v1820 = vlaneseq
    %v1821 = vshrl.u32 %v1820, 7
    %v1822 = vsub.s32 0, %v1821
    %v1823 = vrot.slane %v1818, %v1822
    %v1824 = vlaneseq
    %v1825 = vshrl.u32 %v1824, 7
    %v1826 = vsub.s32 1, %v1825
    %v1827 = vrot.slane %v1818, %v1826
    %v1828 = vlaneseq
    %v1829 = vshrl.u32 %v1828, 7
    %v1830 = vsub.s32 2, %v1829
    %v1831 = vrot.slane %v1818, %v1830
    %1835 = vmatprep.subr.mxu0 %v1771
    %1836 = vmatpush1.msra.mxu0 %v1770
    %1837 = vmatprep.subr.mxu0 %v1774
    %1838 = vmatpush1.msra.mxu0 %v1773
    %1839 = vmatprep.subr.mxu0 %v1777
    %1840 = vmatpush1.msra.mxu0 %v1776
    %1841 = vmatprep.subr.mxu0 %v1780
    %1842 = vmatpush1.msra.mxu0 %v1779
    %1843 = vmatprep.subr.mxu0 %v1783
    %1844 = vmatpush1.msra.mxu0 %v1782
    %1845 = vmatprep.subr.mxu0 %v1786
    %1846 = vmatpush1.msra.mxu0 %v1785
    %1847 = vmatprep.subr.mxu0 %v1789
    %1848 = vmatpush1.msra.mxu0 %v1788
    %1849 = vmatprep.subr.mxu0 %v1792
    %1850 = vmatpush1.msra.mxu0 %v1791
    %1851 = vmatprep.subr.mxu0 %v1795
    %1852 = vmatpush1.msra.mxu0 %v1794
    %1853 = vmatprep.subr.mxu0 %v1798
    %1854 = vmatpush1.msra.mxu0 %v1797
    %1855 = vmatprep.subr.mxu0 %v1801
    %1856 = vmatpush1.msra.mxu0 %v1800
    %1857 = vmatprep.subr.mxu0 %v1804
    %1858 = vmatpush1.msra.mxu0 %v1803
    %1859 = vmatprep.subr.mxu0 %v1807
    %1860 = vmatpush1.msra.mxu0 %v1806
    %1861 = vmatprep.subr.mxu0 %v1810
    %1862 = vmatpush1.msra.mxu0 %v1809
    %1863 = vmatprep.subr.mxu0 %v1813
    %1864 = vmatpush1.msra.mxu0 %v1812
    %1865 = vmatprep.subr.mxu0 %v1816
    %1866 = vmatpush1.msra.mxu0 %v1815
    %1867 = vmatprep.subr.mxu0 0.0
    %1868 = vmatpush1.msra.mxu0 0.0
    %1869 = vmatprep.subr.mxu0 0.0
    %1870 = vmatpush1.msra.mxu0 0.0
    %1871 = vmatprep.subr.mxu0 0.0
    %1872 = vmatpush1.msra.mxu0 0.0
    %1873 = vmatprep.subr.mxu0 0.0
    %1874 = vmatpush1.msra.mxu0 0.0
    %1875 = vmatprep.subr.mxu0 0.0
    %1876 = vmatpush1.msra.mxu0 0.0
    %1877 = vmatprep.subr.mxu0 0.0
    %1878 = vmatpush1.msra.mxu0 0.0
    %1879 = vmatprep.subr.mxu0 0.0
    %1880 = vmatpush1.msra.mxu0 0.0
    %1881 = vmatprep.subr.mxu0 0.0
    %1882 = vmatpush1.msra.mxu0 0.0
    %1883 = vmatprep.subr.mxu0 0.0
    %1884 = vmatpush1.msra.mxu0 0.0
    %1885 = vmatprep.subr.mxu0 0.0
    %1886 = vmatpush1.msra.mxu0 0.0
    %1887 = vmatprep.subr.mxu0 0.0
    %1888 = vmatpush1.msra.mxu0 0.0
    %1889 = vmatprep.subr.mxu0 0.0
    %1890 = vmatpush1.msra.mxu0 0.0
    %1891 = vmatprep.subr.mxu0 0.0
    %1892 = vmatpush1.msra.mxu0 0.0
    %1893 = vmatprep.subr.mxu0 0.0
    %1894 = vmatpush1.msra.mxu0 0.0
    %1895 = vmatprep.subr.mxu0 0.0
    %1896 = vmatpush1.msra.mxu0 0.0
    %1897 = vmatprep.subr.mxu0 0.0
    %1898 = vmatpush1.msra.mxu0 0.0
    %1899 = vmatprep.mubr.f32.mxu0 0.0
    %1900 = vmatmul.mubr.f32.gmra.mrb[0].mxu0 %v1762
    %v1901 = vpop.f32.mrb[0].mxu0
    %v1902 = vadd.f32 %v1823, %v1901
    %v1903 = vpop.f32.mrb[0].mxu0
    %v1904 = vadd.f32 %v1827, %v1903
    %1905 = vmatprep.mubr.f32.mxu0 0.0
    %1906 = vmatmul.mubr.f32.gmra.mrb[0].mxu0 %v1763
    %v1907 = vpop.f32.mrb[0].mxu0
    %v1908 = vadd.f32 %v1823, %v1907
    %v1909 = vpop.f32.mrb[0].mxu0
    %v1910 = vadd.f32 %v1827, %v1909
    %1911 = vmatprep.mubr.f32.mxu0 0.0
    %1912 = vmatmul.mubr.f32.gmra.mrb[0].mxu0 %v1764
    %v1913 = vpop.f32.mrb[0].mxu0
    %v1914 = vadd.f32 %v1823, %v1913
    %v1915 = vpop.f32.mrb[0].mxu0
    %v1916 = vadd.f32 %v1827, %v1915
    %1917 = vmatprep.mubr.f32.mxu0 0.0
    %1918 = vmatmul.mubr.f32.gmra.mrb[0].mxu0 %v1765
    %v1919 = vpop.f32.mrb[0].mxu0
    %v1920 = vadd.f32 %v1823, %v1919
    %v1921 = vpop.f32.mrb[0].mxu0
    %v1922 = vadd.f32 %v1827, %v1921
    %1923 = vmatprep.mubr.f32.mxu0 0.0
    %1924 = vmatmul.mubr.f32.gmra.mrb[0].mxu0 %v1766
    %v1925 = vpop.f32.mrb[0].mxu0
    %v1926 = vadd.f32 %v1823, %v1925
    %v1927 = vpop.f32.mrb[0].mxu0
    %v1928 = vadd.f32 %v1827, %v1927
    %1929 = vmatprep.mubr.f32.mxu0 0.0
    %1930 = vmatmul.mubr.f32.gmra.mrb[0].mxu0 %v1767
    %v1931 = vpop.f32.mrb[0].mxu0
    %v1932 = vadd.f32 %v1823, %v1931
    %v1933 = vpop.f32.mrb[0].mxu0
    %v1934 = vadd.f32 %v1827, %v1933
    %1935 = vmatprep.mubr.f32.mxu0 0.0
    %1936 = vmatmul.mubr.f32.gmra.mrb[0].mxu0 %v1768
    %v1937 = vpop.f32.mrb[0].mxu0
    %v1938 = vadd.f32 %v1823, %v1937
    %v1939 = vpop.f32.mrb[0].mxu0
    %v1940 = vadd.f32 %v1827, %v1939
    %1941 = vmatprep.mubr.f32.mxu0 0.0
    %1942 = vmatmul.mubr.f32.gmra.mrb[0].mxu0 %v1769
    %v1943 = vpop.f32.mrb[0].mxu0
    %v1944 = vadd.f32 %v1823, %v1943
    %v1945 = vpop.f32.mrb[0].mxu0
    %v1946 = vadd.f32 %v1827, %v1945
    %1947 = vdwg.mxu0
    %1948 = vmatprep.subr.mxu0 0.0
    %1949 = vmatpush1.msra.mxu0 %v1772
    %1950 = vmatprep.subr.mxu0 0.0
    %1951 = vmatpush1.msra.mxu0 %v1775
    %1952 = vmatprep.subr.mxu0 0.0
    %1953 = vmatpush1.msra.mxu0 %v1778
    %1954 = vmatprep.subr.mxu0 0.0
    %1955 = vmatpush1.msra.mxu0 %v1781
    %1956 = vmatprep.subr.mxu0 0.0
    %1957 = vmatpush1.msra.mxu0 %v1784
    %1958 = vmatprep.subr.mxu0 0.0
    %1959 = vmatpush1.msra.mxu0 %v1787
    %1960 = vmatprep.subr.mxu0 0.0
    %1961 = vmatpush1.msra.mxu0 %v1790
    %1962 = vmatprep.subr.mxu0 0.0
    %1963 = vmatpush1.msra.mxu0 %v1793
    %1964 = vmatprep.subr.mxu0 0.0
    %1965 = vmatpush1.msra.mxu0 %v1796
    %1966 = vmatprep.subr.mxu0 0.0
    %1967 = vmatpush1.msra.mxu0 %v1799
    %1968 = vmatprep.subr.mxu0 0.0
    %1969 = vmatpush1.msra.mxu0 %v1802
    %1970 = vmatprep.subr.mxu0 0.0
    %1971 = vmatpush1.msra.mxu0 %v1805
    %1972 = vmatprep.subr.mxu0 0.0
    %1973 = vmatpush1.msra.mxu0 %v1808
    %1974 = vmatprep.subr.mxu0 0.0
    %1975 = vmatpush1.msra.mxu0 %v1811
    %1976 = vmatprep.subr.mxu0 0.0
    %1977 = vmatpush1.msra.mxu0 %v1814
    %1978 = vmatprep.subr.mxu0 0.0
    %1979 = vmatpush1.msra.mxu0 %v1817
    %1980 = vmatprep.subr.mxu0 0.0
    %1981 = vmatpush1.msra.mxu0 0.0
    %1982 = vmatprep.subr.mxu0 0.0
    %1983 = vmatpush1.msra.mxu0 0.0
    %1984 = vmatprep.subr.mxu0 0.0
    %1985 = vmatpush1.msra.mxu0 0.0
    %1986 = vmatprep.subr.mxu0 0.0
    %1987 = vmatpush1.msra.mxu0 0.0
    %1988 = vmatprep.subr.mxu0 0.0
    %1989 = vmatpush1.msra.mxu0 0.0
    %1990 = vmatprep.subr.mxu0 0.0
    %1991 = vmatpush1.msra.mxu0 0.0
    %1992 = vmatprep.subr.mxu0 0.0
    %1993 = vmatpush1.msra.mxu0 0.0
    %1994 = vmatprep.subr.mxu0 0.0
    %1995 = vmatpush1.msra.mxu0 0.0
    %1996 = vmatprep.subr.mxu0 0.0
    %1997 = vmatpush1.msra.mxu0 0.0
    %1998 = vmatprep.subr.mxu0 0.0
    %1999 = vmatpush1.msra.mxu0 0.0
    %2000 = vmatprep.subr.mxu0 0.0
    %2001 = vmatpush1.msra.mxu0 0.0
    %2002 = vmatprep.subr.mxu0 0.0
    %2003 = vmatpush1.msra.mxu0 0.0
    %2004 = vmatprep.subr.mxu0 0.0
    %2005 = vmatpush1.msra.mxu0 0.0
    %2006 = vmatprep.subr.mxu0 0.0
    %2007 = vmatpush1.msra.mxu0 0.0
    %2008 = vmatprep.subr.mxu0 0.0
    %2009 = vmatpush1.msra.mxu0 0.0
    %2010 = vmatprep.subr.mxu0 0.0
    %2011 = vmatpush1.msra.mxu0 0.0
    %2012 = vmatprep.mubr.f32.mxu0 0.0
    %2013 = vmatmul.mubr.f32.gmra.mrb[0].mxu0 %v1762
    %v2014 = vpop.f32.mrb[0].mxu0
    %v2015 = vadd.f32 %v1831, %v2014
    %v2016 = vpop.f32.mrb[0].mxu0
    %2017 = vmatprep.mubr.f32.mxu0 0.0
    %2018 = vmatmul.mubr.f32.gmra.mrb[0].mxu0 %v1763
    %v2019 = vpop.f32.mrb[0].mxu0
    %v2020 = vadd.f32 %v1831, %v2019
    %v2021 = vpop.f32.mrb[0].mxu0
    %2022 = vmatprep.mubr.f32.mxu0 0.0
    %2023 = vmatmul.mubr.f32.gmra.mrb[0].mxu0 %v1764
    %v2024 = vpop.f32.mrb[0].mxu0
    %v2025 = vadd.f32 %v1831, %v2024
    %v2026 = vpop.f32.mrb[0].mxu0
    %2027 = vmatprep.mubr.f32.mxu0 0.0
    %2028 = vmatmul.mubr.f32.gmra.mrb[0].mxu0 %v1765
    %v2029 = vpop.f32.mrb[0].mxu0
    %v2030 = vadd.f32 %v1831, %v2029
    %v2031 = vpop.f32.mrb[0].mxu0
    %2032 = vmatprep.mubr.f32.mxu0 0.0
    %2033 = vmatmul.mubr.f32.gmra.mrb[0].mxu0 %v1766
    %v2034 = vpop.f32.mrb[0].mxu0
    %v2035 = vadd.f32 %v1831, %v2034
    %v2036 = vpop.f32.mrb[0].mxu0
    %2037 = vmatprep.mubr.f32.mxu0 0.0
    %2038 = vmatmul.mubr.f32.gmra.mrb[0].mxu0 %v1767
    %v2039 = vpop.f32.mrb[0].mxu0
    %v2040 = vadd.f32 %v1831, %v2039
    %v2041 = vpop.f32.mrb[0].mxu0
    %2042 = vmatprep.mubr.f32.mxu0 0.0
    %2043 = vmatmul.mubr.f32.gmra.mrb[0].mxu0 %v1768
    %v2044 = vpop.f32.mrb[0].mxu0
    %v2045 = vadd.f32 %v1831, %v2044
    %v2046 = vpop.f32.mrb[0].mxu0
    %2047 = vmatprep.mubr.f32.mxu0 0.0
    %2048 = vmatmul.mubr.f32.gmra.mrb[0].mxu0 %v1769
    %v2049 = vpop.f32.mrb[0].mxu0
    %v2050 = vadd.f32 %v1831, %v2049
    %v2051 = vpop.f32.mrb[0].mxu0
    %2052 = vdwg.mxu0
    %2053 = vst [vmem:[#allocation2] sm:$0xff] %v1902
    %2054 = vst [vmem:[#allocation2 + $0x8] sm:$0xff] %v1904
    %2055 = vst [vmem:[#allocation2 + $0x10] sm:$0xff] %v2015
    %2056 = vst [vmem:[#allocation2 + $0x18] sm:$0xff] %v1908
    %2057 = vst [vmem:[#allocation2 + $0x20] sm:$0xff] %v1910
    %2058 = vst [vmem:[#allocation2 + $0x28] sm:$0xff] %v2020
    %2059 = vst [vmem:[#allocation2 + $0x30] sm:$0xff] %v1914
    %2060 = vst [vmem:[#allocation2 + $0x38] sm:$0xff] %v1916
    %2061 = vst [vmem:[#allocation2 + $0x40] sm:$0xff] %v2025
    %2062 = vst [vmem:[#allocation2 + $0x48] sm:$0xff] %v1920
    %2063 = vst [vmem:[#allocation2 + $0x50] sm:$0xff] %v1922
    %2064 = vst [vmem:[#allocation2 + $0x58] sm:$0xff] %v2030
    %2065 = vst [vmem:[#allocation2 + $0x60] sm:$0xff] %v1926
    %2066 = vst [vmem:[#allocation2 + $0x68] sm:$0xff] %v1928
    %2067 = vst [vmem:[#allocation2 + $0x70] sm:$0xff] %v2035
    %2068 = vst [vmem:[#allocation2 + $0x78] sm:$0xff] %v1932
    %2069 = vst [vmem:[#allocation2 + $0x80] sm:$0xff] %v1934
    %2070 = vst [vmem:[#allocation2 + $0x88] sm:$0xff] %v2040
    %2071 = vst [vmem:[#allocation2 + $0x90] sm:$0xff] %v1938
    %2072 = vst [vmem:[#allocation2 + $0x98] sm:$0xff] %v1940
    %2073 = vst [vmem:[#allocation2 + $0xa0] sm:$0xff] %v2045
    %2074 = vst [vmem:[#allocation2 + $0xa8] sm:$0xff] %v1944
    %2075 = vst [vmem:[#allocation2 + $0xb0] sm:$0xff] %v1946
    %2076 = vst [vmem:[#allocation2 + $0xb8] sm:$0xff] %v2050
    %v2077 = vld [vmem:[#allocation8] sm:$0xff]
    %v2078 = vld [vmem:[#allocation8 + $0x8] sm:$0xff]
    %v2079 = vld [vmem:[#allocation8 + $0x10] sm:$0xff]
    %v2080 = vld [vmem:[#allocation8 + $0x18] sm:$0xff]
    %v2081 = vld [vmem:[#allocation8 + $0x20] sm:$0xff]
    %v2082 = vld [vmem:[#allocation8 + $0x28] sm:$0xff]
    %v2083 = vld [vmem:[#allocation8 + $0x30] sm:$0xff]
    %v2084 = vld [vmem:[#allocation8 + $0x38] sm:$0xff]
    %v2085 = vld [vmem:[#allocation8 + $0x40] sm:$0xff]
    %v2086 = vld [vmem:[#allocation8 + $0x48] sm:$0xff]
    %v2087 = vld [vmem:[#allocation8 + $0x50] sm:$0xff]
    %v2088 = vld [vmem:[#allocation8 + $0x58] sm:$0xff]
    %v2089 = vld [vmem:[#allocation8 + $0x60] sm:$0xff]
    %v2090 = vld [vmem:[#allocation8 + $0x68] sm:$0xff]
    %v2091 = vld [vmem:[#allocation8 + $0x70] sm:$0xff]
    %v2092 = vld [vmem:[#allocation8 + $0x78] sm:$0xff]
    %v2093 = vld [vmem:[#allocation8 + $0x80] sm:$0xff]
    %v2094 = vld [vmem:[#allocation8 + $0x88] sm:$0xff]
    %v2095 = vld [vmem:[#allocation8 + $0x90] sm:$0xff]
    %v2096 = vld [vmem:[#allocation8 + $0x98] sm:$0xff]
    %v2097 = vld [vmem:[#allocation8 + $0xa0] sm:$0xff]
    %v2098 = vld [vmem:[#allocation8 + $0xa8] sm:$0xff]
    %v2099 = vld [vmem:[#allocation8 + $0xb0] sm:$0xff]
    %v2100 = vld [vmem:[#allocation8 + $0xb8] sm:$0xff]
    %v2101 = vld [vmem:[#allocation8 + $0xc0] sm:$0xff]
    %v2102 = vld [vmem:[#allocation8 + $0xc8] sm:$0xff]
    %v2103 = vld [vmem:[#allocation8 + $0xd0] sm:$0xff]
    %v2104 = vld [vmem:[#allocation8 + $0xd8] sm:$0xff]
    %v2105 = vld [vmem:[#allocation8 + $0xe0] sm:$0xff]
    %v2106 = vld [vmem:[#allocation8 + $0xe8] sm:$0xff]
    %v2107 = vld [vmem:[#allocation8 + $0xf0] sm:$0xff]
    %v2108 = vld [vmem:[#allocation8 + $0xf8] sm:$0xff]
    %v2109 = vld [vmem:[#allocation8 + $0x100] sm:$0xff]
    %v2110 = vld [vmem:[#allocation8 + $0x108] sm:$0xff]
    %v2111 = vld [vmem:[#allocation8 + $0x110] sm:$0xff]
    %v2112 = vld [vmem:[#allocation8 + $0x118] sm:$0xff]
    %v2113 = vld [vmem:[#allocation8 + $0x120] sm:$0xff]
    %v2114 = vld [vmem:[#allocation8 + $0x128] sm:$0xff]
    %v2115 = vld [vmem:[#allocation8 + $0x130] sm:$0xff]
    %v2116 = vld [vmem:[#allocation8 + $0x138] sm:$0xff]
    %v2117 = vld [vmem:[#allocation8 + $0x140] sm:$0xff]
    %v2118 = vld [vmem:[#allocation8 + $0x148] sm:$0xff]
    %v2119 = vld [vmem:[#allocation8 + $0x150] sm:$0xff]
    %v2120 = vld [vmem:[#allocation8 + $0x158] sm:$0xff]
    %v2121 = vld [vmem:[#allocation8 + $0x160] sm:$0xff]
    %v2122 = vld [vmem:[#allocation8 + $0x168] sm:$0xff]
    %v2123 = vld [vmem:[#allocation8 + $0x170] sm:$0xff]
    %v2124 = vld [vmem:[#allocation8 + $0x178] sm:$0xff]
    %v2125 = vld [vmem:[%s8] sm:$0x1]
    %v2126 = vld [vmem:[#allocation2] sm:$0xff]
    %v2127 = vld [vmem:[#allocation2 + $0x8] sm:$0xff]
    %v2128 = vld [vmem:[#allocation2 + $0x10] sm:$0xff]
    %2129 = vmatprep.subr.mxu0 %v2078
    %2130 = vmatpush1.msra.mxu0 %v2077
    %2131 = vmatprep.subr.mxu0 %v2081
    %2132 = vmatpush1.msra.mxu0 %v2080
    %2133 = vmatprep.subr.mxu0 %v2084
    %2134 = vmatpush1.msra.mxu0 %v2083
    %2135 = vmatprep.subr.mxu0 %v2087
    %2136 = vmatpush1.msra.mxu0 %v2086
    %2137 = vmatprep.subr.mxu0 %v2090
    %2138 = vmatpush1.msra.mxu0 %v2089
    %2139 = vmatprep.subr.mxu0 %v2093
    %2140 = vmatpush1.msra.mxu0 %v2092
    %2141 = vmatprep.subr.mxu0 %v2096
    %2142 = vmatpush1.msra.mxu0 %v2095
    %2143 = vmatprep.subr.mxu0 %v2099
    %2144 = vmatpush1.msra.mxu0 %v2098
    %2145 = vmatprep.subr.mxu0 %v2102
    %2146 = vmatpush1.msra.mxu0 %v2101
    %2147 = vmatprep.subr.mxu0 %v2105
    %2148 = vmatpush1.msra.mxu0 %v2104
    %2149 = vmatprep.subr.mxu0 %v2108
    %2150 = vmatpush1.msra.mxu0 %v2107
    %2151 = vmatprep.subr.mxu0 %v2111
    %2152 = vmatpush1.msra.mxu0 %v2110
    %2153 = vmatprep.subr.mxu0 %v2114
    %2154 = vmatpush1.msra.mxu0 %v2113
    %2155 = vmatprep.subr.mxu0 %v2117
    %2156 = vmatpush1.msra.mxu0 %v2116
    %2157 = vmatprep.subr.mxu0 %v2120
    %2158 = vmatpush1.msra.mxu0 %v2119
    %2159 = vmatprep.subr.mxu0 %v2123
    %2160 = vmatpush1.msra.mxu0 %v2122
    %2161 = vmatprep.subr.mxu0 0.0
    %2162 = vmatpush1.msra.mxu0 0.0
    %2163 = vmatprep.subr.mxu0 0.0
    %2164 = vmatpush1.msra.mxu0 0.0
    %2165 = vmatprep.subr.mxu0 0.0
    %2166 = vmatpush1.msra.mxu0 0.0
    %2167 = vmatprep.subr.mxu0 0.0
    %2168 = vmatpush1.msra.mxu0 0.0
    %2169 = vmatprep.subr.mxu0 0.0
    %2170 = vmatpush1.msra.mxu0 0.0
    %2171 = vmatprep.subr.mxu0 0.0
    %2172 = vmatpush1.msra.mxu0 0.0
    %2173 = vmatprep.subr.mxu0 0.0
    %2174 = vmatpush1.msra.mxu0 0.0
    %2175 = vmatprep.subr.mxu0 0.0
    %2176 = vmatpush1.msra.mxu0 0.0
    %2177 = vmatprep.subr.mxu0 0.0
    %2178 = vmatpush1.msra.mxu0 0.0
    %2179 = vmatprep.subr.mxu0 0.0
    %2180 = vmatpush1.msra.mxu0 0.0
    %2181 = vmatprep.subr.mxu0 0.0
    %2182 = vmatpush1.msra.mxu0 0.0
    %2183 = vmatprep.subr.mxu0 0.0
    %2184 = vmatpush1.msra.mxu0 0.0
    %2185 = vmatprep.subr.mxu0 0.0
    %2186 = vmatpush1.msra.mxu0 0.0
    %2187 = vmatprep.subr.mxu0 0.0
    %2188 = vmatpush1.msra.mxu0 0.0
    %2189 = vmatprep.subr.mxu0 0.0
    %2190 = vmatpush1.msra.mxu0 0.0
    %2191 = vmatprep.subr.mxu0 0.0
    %2192 = vmatpush1.msra.mxu0 0.0
    %2193 = vmatprep.mubr.f32.mxu0 0.0
    %2194 = vmatmul.mubr.f32.gmra.mrb[0].mxu0 0.0
    %v2195 = vpop.f32.mrb[0].mxu0
    %v2196 = vadd.f32 0.0, %v2195
    %v2197 = vpop.f32.mrb[0].mxu0
    %v2198 = vadd.f32 0.0, %v2197
    %2199 = vdwg.mxu0
    %2200 = vmatprep.subr.mxu0 0.0
    %2201 = vmatpush1.msra.mxu0 %v2079
    %2202 = vmatprep.subr.mxu0 0.0
    %2203 = vmatpush1.msra.mxu0 %v2082
    %2204 = vmatprep.subr.mxu0 0.0
    %2205 = vmatpush1.msra.mxu0 %v2085
    %2206 = vmatprep.subr.mxu0 0.0
    %2207 = vmatpush1.msra.mxu0 %v2088
    %2208 = vmatprep.subr.mxu0 0.0
    %2209 = vmatpush1.msra.mxu0 %v2091
    %2210 = vmatprep.subr.mxu0 0.0
    %2211 = vmatpush1.msra.mxu0 %v2094
    %2212 = vmatprep.subr.mxu0 0.0
    %2213 = vmatpush1.msra.mxu0 %v2097
    %2214 = vmatprep.subr.mxu0 0.0
    %2215 = vmatpush1.msra.mxu0 %v2100
    %2216 = vmatprep.subr.mxu0 0.0
    %2217 = vmatpush1.msra.mxu0 %v2103
    %2218 = vmatprep.subr.mxu0 0.0
    %2219 = vmatpush1.msra.mxu0 %v2106
    %2220 = vmatprep.subr.mxu0 0.0
    %2221 = vmatpush1.msra.mxu0 %v2109
    %2222 = vmatprep.subr.mxu0 0.0
    %2223 = vmatpush1.msra.mxu0 %v2112
    %2224 = vmatprep.subr.mxu0 0.0
    %2225 = vmatpush1.msra.mxu0 %v2115
    %2226 = vmatprep.subr.mxu0 0.0
    %2227 = vmatpush1.msra.mxu0 %v2118
    %2228 = vmatprep.subr.mxu0 0.0
    %2229 = vmatpush1.msra.mxu0 %v2121
    %2230 = vmatprep.subr.mxu0 0.0
    %2231 = vmatpush1.msra.mxu0 %v2124
    %2232 = vmatprep.subr.mxu0 0.0
    %2233 = vmatpush1.msra.mxu0 0.0
    %2234 = vmatprep.subr.mxu0 0.0
    %2235 = vmatpush1.msra.mxu0 0.0
    %2236 = vmatprep.subr.mxu0 0.0
    %2237 = vmatpush1.msra.mxu0 0.0
    %2238 = vmatprep.subr.mxu0 0.0
    %2239 = vmatpush1.msra.mxu0 0.0
    %2240 = vmatprep.subr.mxu0 0.0
    %2241 = vmatpush1.msra.mxu0 0.0
    %2242 = vmatprep.subr.mxu0 0.0
    %2243 = vmatpush1.msra.mxu0 0.0
    %2244 = vmatprep.subr.mxu0 0.0
    %2245 = vmatpush1.msra.mxu0 0.0
    %2246 = vmatprep.subr.mxu0 0.0
    %2247 = vmatpush1.msra.mxu0 0.0
    %2248 = vmatprep.subr.mxu0 0.0
    %2249 = vmatpush1.msra.mxu0 0.0
    %2250 = vmatprep.subr.mxu0 0.0
    %2251 = vmatpush1.msra.mxu0 0.0
    %2252 = vmatprep.subr.mxu0 0.0
    %2253 = vmatpush1.msra.mxu0 0.0
    %2254 = vmatprep.subr.mxu0 0.0
    %2255 = vmatpush1.msra.mxu0 0.0
    %2256 = vmatprep.subr.mxu0 0.0
    %2257 = vmatpush1.msra.mxu0 0.0
    %2258 = vmatprep.subr.mxu0 0.0
    %2259 = vmatpush1.msra.mxu0 0.0
    %2260 = vmatprep.subr.mxu0 0.0
    %2261 = vmatpush1.msra.mxu0 0.0
    %2262 = vmatprep.subr.mxu0 0.0
    %2263 = vmatpush1.msra.mxu0 0.0
    %2264 = vmatprep.mubr.f32.mxu0 0.0
    %2265 = vmatmul.mubr.f32.gmra.mrb[0].mxu0 0.0
    %v2266 = vpop.f32.mrb[0].mxu0
    %v2267 = vadd.f32 0.0, %v2266
    %v2268 = vpop.f32.mrb[0].mxu0
    %2269 = vdwg.mxu0
    %v2270 = vadd.f32 %v2126, %v2196
    %v2271 = vxor.u32 %v2270, 2147483648
    %v2272 = vmul.f32 %v2271, 1.442695
    %v2273 = vpow.pop %v2272
    %v2274 = vadd.f32 %v2273, 1.0
    %v2275 = vrcp.pop %v2274
    %v2276 = vmul.f32 1.0, %v2275
    %v2277 = vadd.f32 %v2127, %v2198
    %v2278 = vxor.u32 %v2277, 2147483648
    %v2279 = vmul.f32 %v2278, 1.442695
    %v2280 = vpow.pop %v2279
    %v2281 = vadd.f32 %v2280, 1.0
    %v2282 = vrcp.pop %v2281
    %v2283 = vmul.f32 1.0, %v2282
    %v2285 = vlaneseq
    %v2286 = vshrl.u32 %v2285, 7
    %v2287 = vsub.s32 0, %v2286
    %v2288 = vrot.slane %v2125, %v2287
    %v2290 = vadd.f32 %v2267, %v2288
    %v2291 = vmul.f32 %v2276, %v2290
    %v2292 = vadd.f32 %v2128, %v2291
    %v2293 = vtanh.pop %v2292
    %v2294 = vsub.f32 1.0, %v2283
    %v2295 = vmul.f32 %v2294, %v2293
    %v2296 = vmul.f32 %v2283, 0.0
    %v2297 = vadd.f32 %v2295, %v2296
    %2298 = vst [vmem:[%s9] sm:$0xff] %v2297
    %v2299 = vld [vmem:[#allocation2 + $0x18] sm:$0xff]
    %v2300 = vld [vmem:[#allocation2 + $0x20] sm:$0xff]
    %v2301 = vld [vmem:[#allocation2 + $0x28] sm:$0xff]
    %2302 = vmatprep.subr.mxu0 %v2078
    %2303 = vmatpush1.msra.mxu0 %v2077
    %2304 = vmatprep.subr.mxu0 %v2081
    %2305 = vmatpush1.msra.mxu0 %v2080
    %2306 = vmatprep.subr.mxu0 %v2084
    %2307 = vmatpush1.msra.mxu0 %v2083
    %2308 = vmatprep.subr.mxu0 %v2087
    %2309 = vmatpush1.msra.mxu0 %v2086
    %2310 = vmatprep.subr.mxu0 %v2090
    %2311 = vmatpush1.msra.mxu0 %v2089
    %2312 = vmatprep.subr.mxu0 %v2093
    %2313 = vmatpush1.msra.mxu0 %v2092
    %2314 = vmatprep.subr.mxu0 %v2096
    %2315 = vmatpush1.msra.mxu0 %v2095
    %2316 = vmatprep.subr.mxu0 %v2099
    %2317 = vmatpush1.msra.mxu0 %v2098
    %2318 = vmatprep.subr.mxu0 %v2102
    %2319 = vmatpush1.msra.mxu0 %v2101
    %2320 = vmatprep.subr.mxu0 %v2105
    %2321 = vmatpush1.msra.mxu0 %v2104
    %2322 = vmatprep.subr.mxu0 %v2108
    %2323 = vmatpush1.msra.mxu0 %v2107
    %2324 = vmatprep.subr.mxu0 %v2111
    %2325 = vmatpush1.msra.mxu0 %v2110
    %2326 = vmatprep.subr.mxu0 %v2114
    %2327 = vmatpush1.msra.mxu0 %v2113
    %2328 = vmatprep.subr.mxu0 %v2117
    %2329 = vmatpush1.msra.mxu0 %v2116
    %2330 = vmatprep.subr.mxu0 %v2120
    %2331 = vmatpush1.msra.mxu0 %v2119
    %2332 = vmatprep.subr.mxu0 %v2123
    %2333 = vmatpush1.msra.mxu0 %v2122
    %2334 = vmatprep.subr.mxu0 0.0
    %2335 = vmatpush1.msra.mxu0 0.0
    %2336 = vmatprep.subr.mxu0 0.0
    %2337 = vmatpush1.msra.mxu0 0.0
    %2338 = vmatprep.subr.mxu0 0.0
    %2339 = vmatpush1.msra.mxu0 0.0
    %2340 = vmatprep.subr.mxu0 0.0
    %2341 = vmatpush1.msra.mxu0 0.0
    %2342 = vmatprep.subr.mxu0 0.0
    %2343 = vmatpush1.msra.mxu0 0.0
    %2344 = vmatprep.subr.mxu0 0.0
    %2345 = vmatpush1.msra.mxu0 0.0
    %2346 = vmatprep.subr.mxu0 0.0
    %2347 = vmatpush1.msra.mxu0 0.0
    %2348 = vmatprep.subr.mxu0 0.0
    %2349 = vmatpush1.msra.mxu0 0.0
    %2350 = vmatprep.subr.mxu0 0.0
    %2351 = vmatpush1.msra.mxu0 0.0
    %2352 = vmatprep.subr.mxu0 0.0
    %2353 = vmatpush1.msra.mxu0 0.0
    %2354 = vmatprep.subr.mxu0 0.0
    %2355 = vmatpush1.msra.mxu0 0.0
    %2356 = vmatprep.subr.mxu0 0.0
    %2357 = vmatpush1.msra.mxu0 0.0
    %2358 = vmatprep.subr.mxu0 0.0
    %2359 = vmatpush1.msra.mxu0 0.0
    %2360 = vmatprep.subr.mxu0 0.0
    %2361 = vmatpush1.msra.mxu0 0.0
    %2362 = vmatprep.subr.mxu0 0.0
    %2363 = vmatpush1.msra.mxu0 0.0
    %2364 = vmatprep.subr.mxu0 0.0
    %2365 = vmatpush1.msra.mxu0 0.0
    %2366 = vmatprep.mubr.f32.mxu0 0.0
    %2367 = vmatmul.mubr.f32.gmra.mrb[0].mxu0 %v2297
    %v2368 = vpop.f32.mrb[0].mxu0
    %v2369 = vadd.f32 0.0, %v2368
    %v2370 = vpop.f32.mrb[0].mxu0
    %v2371 = vadd.f32 0.0, %v2370
    %2372 = vdwg.mxu0
    %2373 = vmatprep.subr.mxu0 0.0
    %2374 = vmatpush1.msra.mxu0 %v2079
    %2375 = vmatprep.subr.mxu0 0.0
    %2376 = vmatpush1.msra.mxu0 %v2082
    %2377 = vmatprep.subr.mxu0 0.0
    %2378 = vmatpush1.msra.mxu0 %v2085
    %2379 = vmatprep.subr.mxu0 0.0
    %2380 = vmatpush1.msra.mxu0 %v2088
    %2381 = vmatprep.subr.mxu0 0.0
    %2382 = vmatpush1.msra.mxu0 %v2091
    %2383 = vmatprep.subr.mxu0 0.0
    %2384 = vmatpush1.msra.mxu0 %v2094
    %2385 = vmatprep.subr.mxu0 0.0
    %2386 = vmatpush1.msra.mxu0 %v2097
    %2387 = vmatprep.subr.mxu0 0.0
    %2388 = vmatpush1.msra.mxu0 %v2100
    %2389 = vmatprep.subr.mxu0 0.0
    %2390 = vmatpush1.msra.mxu0 %v2103
    %2391 = vmatprep.subr.mxu0 0.0
    %2392 = vmatpush1.msra.mxu0 %v2106
    %2393 = vmatprep.subr.mxu0 0.0
    %2394 = vmatpush1.msra.mxu0 %v2109
    %2395 = vmatprep.subr.mxu0 0.0
    %2396 = vmatpush1.msra.mxu0 %v2112
    %2397 = vmatprep.subr.mxu0 0.0
    %2398 = vmatpush1.msra.mxu0 %v2115
    %2399 = vmatprep.subr.mxu0 0.0
    %2400 = vmatpush1.msra.mxu0 %v2118
    %2401 = vmatprep.subr.mxu0 0.0
    %2402 = vmatpush1.msra.mxu0 %v2121
    %2403 = vmatprep.subr.mxu0 0.0
    %2404 = vmatpush1.msra.mxu0 %v2124
    %2405 = vmatprep.subr.mxu0 0.0
    %2406 = vmatpush1.msra.mxu0 0.0
    %2407 = vmatprep.subr.mxu0 0.0
    %2408 = vmatpush1.msra.mxu0 0.0
    %2409 = vmatprep.subr.mxu0 0.0
    %2410 = vmatpush1.msra.mxu0 0.0
    %2411 = vmatprep.subr.mxu0 0.0
    %2412 = vmatpush1.msra.mxu0 0.0
    %2413 = vmatprep.subr.mxu0 0.0
    %2414 = vmatpush1.msra.mxu0 0.0
    %2415 = vmatprep.subr.mxu0 0.0
    %2416 = vmatpush1.msra.mxu0 0.0
    %2417 = vmatprep.subr.mxu0 0.0
    %2418 = vmatpush1.msra.mxu0 0.0
    %2419 = vmatprep.subr.mxu0 0.0
    %2420 = vmatpush1.msra.mxu0 0.0
    %2421 = vmatprep.subr.mxu0 0.0
    %2422 = vmatpush1.msra.mxu0 0.0
    %2423 = vmatprep.subr.mxu0 0.0
    %2424 = vmatpush1.msra.mxu0 0.0
    %2425 = vmatprep.subr.mxu0 0.0
    %2426 = vmatpush1.msra.mxu0 0.0
    %2427 = vmatprep.subr.mxu0 0.0
    %2428 = vmatpush1.msra.mxu0 0.0
    %2429 = vmatprep.subr.mxu0 0.0
    %2430 = vmatpush1.msra.mxu0 0.0
    %2431 = vmatprep.subr.mxu0 0.0
    %2432 = vmatpush1.msra.mxu0 0.0
    %2433 = vmatprep.subr.mxu0 0.0
    %2434 = vmatpush1.msra.mxu0 0.0
    %2435 = vmatprep.subr.mxu0 0.0
    %2436 = vmatpush1.msra.mxu0 0.0
    %2437 = vmatprep.mubr.f32.mxu0 0.0
    %2438 = vmatmul.mubr.f32.gmra.mrb[0].mxu0 %v2297
    %v2439 = vpop.f32.mrb[0].mxu0
    %v2440 = vadd.f32 0.0, %v2439
    %v2441 = vpop.f32.mrb[0].mxu0
    %2442 = vdwg.mxu0
    %v2443 = vadd.f32 %v2299, %v2369
    %v2444 = vxor.u32 %v2443, 2147483648
    %v2445 = vmul.f32 %v2444, 1.442695
    %v2446 = vpow.pop %v2445
    %v2447 = vadd.f32 %v2446, 1.0
    %v2448 = vrcp.pop %v2447
    %v2449 = vmul.f32 1.0, %v2448
    %v2450 = vadd.f32 %v2300, %v2371
    %v2451 = vxor.u32 %v2450, 2147483648
    %v2452 = vmul.f32 %v2451, 1.442695
    %v2453 = vpow.pop %v2452
    %v2454 = vadd.f32 %v2453, 1.0
    %v2455 = vrcp.pop %v2454
    %v2456 = vmul.f32 1.0, %v2455
    %v2457 = vadd.f32 %v2440, %v2288
    %v2458 = vmul.f32 %v2449, %v2457
    %v2459 = vadd.f32 %v2301, %v2458
    %v2460 = vtanh.pop %v2459
    %v2461 = vsub.f32 1.0, %v2456
    %v2462 = vmul.f32 %v2461, %v2460
    %v2463 = vmul.f32 %v2456, %v2297
    %v2464 = vadd.f32 %v2462, %v2463
    %2465 = vst [vmem:[%s9 + $0x8] sm:$0xff] %v2464
    %v2466 = vld [vmem:[#allocation2 + $0x30] sm:$0xff]
    %v2467 = vld [vmem:[#allocation2 + $0x38] sm:$0xff]
    %v2468 = vld [vmem:[#allocation2 + $0x40] sm:$0xff]
    %2469 = vmatprep.subr.mxu0 %v2078
    %2470 = vmatpush1.msra.mxu0 %v2077
    %2471 = vmatprep.subr.mxu0 %v2081
    %2472 = vmatpush1.msra.mxu0 %v2080
    %2473 = vmatprep.subr.mxu0 %v2084
    %2474 = vmatpush1.msra.mxu0 %v2083
    %2475 = vmatprep.subr.mxu0 %v2087
    %2476 = vmatpush1.msra.mxu0 %v2086
    %2477 = vmatprep.subr.mxu0 %v2090
    %2478 = vmatpush1.msra.mxu0 %v2089
    %2479 = vmatprep.subr.mxu0 %v2093
    %2480 = vmatpush1.msra.mxu0 %v2092
    %2481 = vmatprep.subr.mxu0 %v2096
    %2482 = vmatpush1.msra.mxu0 %v2095
    %2483 = vmatprep.subr.mxu0 %v2099
    %2484 = vmatpush1.msra.mxu0 %v2098
    %2485 = vmatprep.subr.mxu0 %v2102
    %2486 = vmatpush1.msra.mxu0 %v2101
    %2487 = vmatprep.subr.mxu0 %v2105
    %2488 = vmatpush1.msra.mxu0 %v2104
    %2489 = vmatprep.subr.mxu0 %v2108
    %2490 = vmatpush1.msra.mxu0 %v2107
    %2491 = vmatprep.subr.mxu0 %v2111
    %2492 = vmatpush1.msra.mxu0 %v2110
    %2493 = vmatprep.subr.mxu0 %v2114
    %2494 = vmatpush1.msra.mxu0 %v2113
    %2495 = vmatprep.subr.mxu0 %v2117
    %2496 = vmatpush1.msra.mxu0 %v2116
    %2497 = vmatprep.subr.mxu0 %v2120
    %2498 = vmatpush1.msra.mxu0 %v2119
    %2499 = vmatprep.subr.mxu0 %v2123
    %2500 = vmatpush1.msra.mxu0 %v2122
    %2501 = vmatprep.subr.mxu0 0.0
    %2502 = vmatpush1.msra.mxu0 0.0
    %2503 = vmatprep.subr.mxu0 0.0
    %2504 = vmatpush1.msra.mxu0 0.0
    %2505 = vmatprep.subr.mxu0 0.0
    %2506 = vmatpush1.msra.mxu0 0.0
    %2507 = vmatprep.subr.mxu0 0.0
    %2508 = vmatpush1.msra.mxu0 0.0
    %2509 = vmatprep.subr.mxu0 0.0
    %2510 = vmatpush1.msra.mxu0 0.0
    %2511 = vmatprep.subr.mxu0 0.0
    %2512 = vmatpush1.msra.mxu0 0.0
    %2513 = vmatprep.subr.mxu0 0.0
    %2514 = vmatpush1.msra.mxu0 0.0
    %2515 = vmatprep.subr.mxu0 0.0
    %2516 = vmatpush1.msra.mxu0 0.0
    %2517 = vmatprep.subr.mxu0 0.0
    %2518 = vmatpush1.msra.mxu0 0.0
    %2519 = vmatprep.subr.mxu0 0.0
    %2520 = vmatpush1.msra.mxu0 0.0
    %2521 = vmatprep.subr.mxu0 0.0
    %2522 = vmatpush1.msra.mxu0 0.0
    %2523 = vmatprep.subr.mxu0 0.0
    %2524 = vmatpush1.msra.mxu0 0.0
    %2525 = vmatprep.subr.mxu0 0.0
    %2526 = vmatpush1.msra.mxu0 0.0
    %2527 = vmatprep.subr.mxu0 0.0
    %2528 = vmatpush1.msra.mxu0 0.0
    %2529 = vmatprep.subr.mxu0 0.0
    %2530 = vmatpush1.msra.mxu0 0.0
    %2531 = vmatprep.subr.mxu0 0.0
    %2532 = vmatpush1.msra.mxu0 0.0
    %2533 = vmatprep.mubr.f32.mxu0 0.0
    %2534 = vmatmul.mubr.f32.gmra.mrb[0].mxu0 %v2464
    %v2535 = vpop.f32.mrb[0].mxu0
    %v2536 = vadd.f32 0.0, %v2535
    %v2537 = vpop.f32.mrb[0].mxu0
    %v2538 = vadd.f32 0.0, %v2537
    %2539 = vdwg.mxu0
    %2540 = vmatprep.subr.mxu0 0.0
    %2541 = vmatpush1.msra.mxu0 %v2079
    %2542 = vmatprep.subr.mxu0 0.0
    %2543 = vmatpush1.msra.mxu0 %v2082
    %2544 = vmatprep.subr.mxu0 0.0
    %2545 = vmatpush1.msra.mxu0 %v2085
    %2546 = vmatprep.subr.mxu0 0.0
    %2547 = vmatpush1.msra.mxu0 %v2088
    %2548 = vmatprep.subr.mxu0 0.0
    %2549 = vmatpush1.msra.mxu0 %v2091
    %2550 = vmatprep.subr.mxu0 0.0
    %2551 = vmatpush1.msra.mxu0 %v2094
    %2552 = vmatprep.subr.mxu0 0.0
    %2553 = vmatpush1.msra.mxu0 %v2097
    %2554 = vmatprep.subr.mxu0 0.0
    %2555 = vmatpush1.msra.mxu0 %v2100
    %2556 = vmatprep.subr.mxu0 0.0
    %2557 = vmatpush1.msra.mxu0 %v2103
    %2558 = vmatprep.subr.mxu0 0.0
    %2559 = vmatpush1.msra.mxu0 %v2106
    %2560 = vmatprep.subr.mxu0 0.0
    %2561 = vmatpush1.msra.mxu0 %v2109
    %2562 = vmatprep.subr.mxu0 0.0
    %2563 = vmatpush1.msra.mxu0 %v2112
    %2564 = vmatprep.subr.mxu0 0.0
    %2565 = vmatpush1.msra.mxu0 %v2115
    %2566 = vmatprep.subr.mxu0 0.0
    %2567 = vmatpush1.msra.mxu0 %v2118
    %2568 = vmatprep.subr.mxu0 0.0
    %2569 = vmatpush1.msra.mxu0 %v2121
    %2570 = vmatprep.subr.mxu0 0.0
    %2571 = vmatpush1.msra.mxu0 %v2124
    %2572 = vmatprep.subr.mxu0 0.0
    %2573 = vmatpush1.msra.mxu0 0.0
    %2574 = vmatprep.subr.mxu0 0.0
    %2575 = vmatpush1.msra.mxu0 0.0
    %2576 = vmatprep.subr.mxu0 0.0
    %2577 = vmatpush1.msra.mxu0 0.0
    %2578 = vmatprep.subr.mxu0 0.0
    %2579 = vmatpush1.msra.mxu0 0.0
    %2580 = vmatprep.subr.mxu0 0.0
    %2581 = vmatpush1.msra.mxu0 0.0
    %2582 = vmatprep.subr.mxu0 0.0
    %2583 = vmatpush1.msra.mxu0 0.0
    %2584 = vmatprep.subr.mxu0 0.0
    %2585 = vmatpush1.msra.mxu0 0.0
    %2586 = vmatprep.subr.mxu0 0.0
    %2587 = vmatpush1.msra.mxu0 0.0
    %2588 = vmatprep.subr.mxu0 0.0
    %2589 = vmatpush1.msra.mxu0 0.0
    %2590 = vmatprep.subr.mxu0 0.0
    %2591 = vmatpush1.msra.mxu0 0.0
    %2592 = vmatprep.subr.mxu0 0.0
    %2593 = vmatpush1.msra.mxu0 0.0
    %2594 = vmatprep.subr.mxu0 0.0
    %2595 = vmatpush1.msra.mxu0 0.0
    %2596 = vmatprep.subr.mxu0 0.0
    %2597 = vmatpush1.msra.mxu0 0.0
    %2598 = vmatprep.subr.mxu0 0.0
    %2599 = vmatpush1.msra.mxu0 0.0
    %2600 = vmatprep.subr.mxu0 0.0
    %2601 = vmatpush1.msra.mxu0 0.0
    %2602 = vmatprep.subr.mxu0 0.0
    %2603 = vmatpush1.msra.mxu0 0.0
    %2604 = vmatprep.mubr.f32.mxu0 0.0
    %2605 = vmatmul.mubr.f32.gmra.mrb[0].mxu0 %v2464
    %v2606 = vpop.f32.mrb[0].mxu0
    %v2607 = vadd.f32 0.0, %v2606
    %v2608 = vpop.f32.mrb[0].mxu0
    %2609 = vdwg.mxu0
    %v2610 = vadd.f32 %v2466, %v2536
    %v2611 = vxor.u32 %v2610, 2147483648
    %v2612 = vmul.f32 %v2611, 1.442695
    %v2613 = vpow.pop %v2612
    %v2614 = vadd.f32 %v2613, 1.0
    %v2615 = vrcp.pop %v2614
    %v2616 = vmul.f32 1.0, %v2615
    %v2617 = vadd.f32 %v2467, %v2538
    %v2618 = vxor.u32 %v2617, 2147483648
    %v2619 = vmul.f32 %v2618, 1.442695
    %v2620 = vpow.pop %v2619
    %v2621 = vadd.f32 %v2620, 1.0
    %v2622 = vrcp.pop %v2621
    %v2623 = vmul.f32 1.0, %v2622
    %v2624 = vadd.f32 %v2607, %v2288
    %v2625 = vmul.f32 %v2616, %v2624
    %v2626 = vadd.f32 %v2468, %v2625
    %v2627 = vtanh.pop %v2626
    %v2628 = vsub.f32 1.0, %v2623
    %v2629 = vmul.f32 %v2628, %v2627
    %v2630 = vmul.f32 %v2623, %v2464
    %v2631 = vadd.f32 %v2629, %v2630
    %2632 = vst [vmem:[%s9 + $0x10] sm:$0xff] %v2631
    %v2633 = vld [vmem:[#allocation2 + $0x48] sm:$0xff]
    %v2634 = vld [vmem:[#allocation2 + $0x50] sm:$0xff]
    %v2635 = vld [vmem:[#allocation2 + $0x58] sm:$0xff]
    %2636 = vmatprep.subr.mxu0 %v2078
    %2637 = vmatpush1.msra.mxu0 %v2077
    %2638 = vmatprep.subr.mxu0 %v2081
    %2639 = vmatpush1.msra.mxu0 %v2080
    %2640 = vmatprep.subr.mxu0 %v2084
    %2641 = vmatpush1.msra.mxu0 %v2083
    %2642 = vmatprep.subr.mxu0 %v2087
    %2643 = vmatpush1.msra.mxu0 %v2086
    %2644 = vmatprep.subr.mxu0 %v2090
    %2645 = vmatpush1.msra.mxu0 %v2089
    %2646 = vmatprep.subr.mxu0 %v2093
    %2647 = vmatpush1.msra.mxu0 %v2092
    %2648 = vmatprep.subr.mxu0 %v2096
    %2649 = vmatpush1.msra.mxu0 %v2095
    %2650 = vmatprep.subr.mxu0 %v2099
    %2651 = vmatpush1.msra.mxu0 %v2098
    %2652 = vmatprep.subr.mxu0 %v2102
    %2653 = vmatpush1.msra.mxu0 %v2101
    %2654 = vmatprep.subr.mxu0 %v2105
    %2655 = vmatpush1.msra.mxu0 %v2104
    %2656 = vmatprep.subr.mxu0 %v2108
    %2657 = vmatpush1.msra.mxu0 %v2107
    %2658 = vmatprep.subr.mxu0 %v2111
    %2659 = vmatpush1.msra.mxu0 %v2110
    %2660 = vmatprep.subr.mxu0 %v2114
    %2661 = vmatpush1.msra.mxu0 %v2113
    %2662 = vmatprep.subr.mxu0 %v2117
    %2663 = vmatpush1.msra.mxu0 %v2116
    %2664 = vmatprep.subr.mxu0 %v2120
    %2665 = vmatpush1.msra.mxu0 %v2119
    %2666 = vmatprep.subr.mxu0 %v2123
    %2667 = vmatpush1.msra.mxu0 %v2122
    %2668 = vmatprep.subr.mxu0 0.0
    %2669 = vmatpush1.msra.mxu0 0.0
    %2670 = vmatprep.subr.mxu0 0.0
    %2671 = vmatpush1.msra.mxu0 0.0
    %2672 = vmatprep.subr.mxu0 0.0
    %2673 = vmatpush1.msra.mxu0 0.0
    %2674 = vmatprep.subr.mxu0 0.0
    %2675 = vmatpush1.msra.mxu0 0.0
    %2676 = vmatprep.subr.mxu0 0.0
    %2677 = vmatpush1.msra.mxu0 0.0
    %2678 = vmatprep.subr.mxu0 0.0
    %2679 = vmatpush1.msra.mxu0 0.0
    %2680 = vmatprep.subr.mxu0 0.0
    %2681 = vmatpush1.msra.mxu0 0.0
    %2682 = vmatprep.subr.mxu0 0.0
    %2683 = vmatpush1.msra.mxu0 0.0
    %2684 = vmatprep.subr.mxu0 0.0
    %2685 = vmatpush1.msra.mxu0 0.0
    %2686 = vmatprep.subr.mxu0 0.0
    %2687 = vmatpush1.msra.mxu0 0.0
    %2688 = vmatprep.subr.mxu0 0.0
    %2689 = vmatpush1.msra.mxu0 0.0
    %2690 = vmatprep.subr.mxu0 0.0
    %2691 = vmatpush1.msra.mxu0 0.0
    %2692 = vmatprep.subr.mxu0 0.0
    %2693 = vmatpush1.msra.mxu0 0.0
    %2694 = vmatprep.subr.mxu0 0.0
    %2695 = vmatpush1.msra.mxu0 0.0
    %2696 = vmatprep.subr.mxu0 0.0
    %2697 = vmatpush1.msra.mxu0 0.0
    %2698 = vmatprep.subr.mxu0 0.0
    %2699 = vmatpush1.msra.mxu0 0.0
    %2700 = vmatprep.mubr.f32.mxu0 0.0
    %2701 = vmatmul.mubr.f32.gmra.mrb[0].mxu0 %v2631
    %v2702 = vpop.f32.mrb[0].mxu0
    %v2703 = vadd.f32 0.0, %v2702
    %v2704 = vpop.f32.mrb[0].mxu0
    %v2705 = vadd.f32 0.0, %v2704
    %2706 = vdwg.mxu0
    %2707 = vmatprep.subr.mxu0 0.0
    %2708 = vmatpush1.msra.mxu0 %v2079
    %2709 = vmatprep.subr.mxu0 0.0
    %2710 = vmatpush1.msra.mxu0 %v2082
    %2711 = vmatprep.subr.mxu0 0.0
    %2712 = vmatpush1.msra.mxu0 %v2085
    %2713 = vmatprep.subr.mxu0 0.0
    %2714 = vmatpush1.msra.mxu0 %v2088
    %2715 = vmatprep.subr.mxu0 0.0
    %2716 = vmatpush1.msra.mxu0 %v2091
    %2717 = vmatprep.subr.mxu0 0.0
    %2718 = vmatpush1.msra.mxu0 %v2094
    %2719 = vmatprep.subr.mxu0 0.0
    %2720 = vmatpush1.msra.mxu0 %v2097
    %2721 = vmatprep.subr.mxu0 0.0
    %2722 = vmatpush1.msra.mxu0 %v2100
    %2723 = vmatprep.subr.mxu0 0.0
    %2724 = vmatpush1.msra.mxu0 %v2103
    %2725 = vmatprep.subr.mxu0 0.0
    %2726 = vmatpush1.msra.mxu0 %v2106
    %2727 = vmatprep.subr.mxu0 0.0
    %2728 = vmatpush1.msra.mxu0 %v2109
    %2729 = vmatprep.subr.mxu0 0.0
    %2730 = vmatpush1.msra.mxu0 %v2112
    %2731 = vmatprep.subr.mxu0 0.0
    %2732 = vmatpush1.msra.mxu0 %v2115
    %2733 = vmatprep.subr.mxu0 0.0
    %2734 = vmatpush1.msra.mxu0 %v2118
    %2735 = vmatprep.subr.mxu0 0.0
    %2736 = vmatpush1.msra.mxu0 %v2121
    %2737 = vmatprep.subr.mxu0 0.0
    %2738 = vmatpush1.msra.mxu0 %v2124
    %2739 = vmatprep.subr.mxu0 0.0
    %2740 = vmatpush1.msra.mxu0 0.0
    %2741 = vmatprep.subr.mxu0 0.0
    %2742 = vmatpush1.msra.mxu0 0.0
    %2743 = vmatprep.subr.mxu0 0.0
    %2744 = vmatpush1.msra.mxu0 0.0
    %2745 = vmatprep.subr.mxu0 0.0
    %2746 = vmatpush1.msra.mxu0 0.0
    %2747 = vmatprep.subr.mxu0 0.0
    %2748 = vmatpush1.msra.mxu0 0.0
    %2749 = vmatprep.subr.mxu0 0.0
    %2750 = vmatpush1.msra.mxu0 0.0
    %2751 = vmatprep.subr.mxu0 0.0
    %2752 = vmatpush1.msra.mxu0 0.0
    %2753 = vmatprep.subr.mxu0 0.0
    %2754 = vmatpush1.msra.mxu0 0.0
    %2755 = vmatprep.subr.mxu0 0.0
    %2756 = vmatpush1.msra.mxu0 0.0
    %2757 = vmatprep.subr.mxu0 0.0
    %2758 = vmatpush1.msra.mxu0 0.0
    %2759 = vmatprep.subr.mxu0 0.0
    %2760 = vmatpush1.msra.mxu0 0.0
    %2761 = vmatprep.subr.mxu0 0.0
    %2762 = vmatpush1.msra.mxu0 0.0
    %2763 = vmatprep.subr.mxu0 0.0
    %2764 = vmatpush1.msra.mxu0 0.0
    %2765 = vmatprep.subr.mxu0 0.0
    %2766 = vmatpush1.msra.mxu0 0.0
    %2767 = vmatprep.subr.mxu0 0.0
    %2768 = vmatpush1.msra.mxu0 0.0
    %2769 = vmatprep.subr.mxu0 0.0
    %2770 = vmatpush1.msra.mxu0 0.0
    %2771 = vmatprep.mubr.f32.mxu0 0.0
    %2772 = vmatmul.mubr.f32.gmra.mrb[0].mxu0 %v2631
    %v2773 = vpop.f32.mrb[0].mxu0
    %v2774 = vadd.f32 0.0, %v2773
    %v2775 = vpop.f32.mrb[0].mxu0
    %2776 = vdwg.mxu0
    %v2777 = vadd.f32 %v2633, %v2703
    %v2778 = vxor.u32 %v2777, 2147483648
    %v2779 = vmul.f32 %v2778, 1.442695
    %v2780 = vpow.pop %v2779
    %v2781 = vadd.f32 %v2780, 1.0
    %v2782 = vrcp.pop %v2781
    %v2783 = vmul.f32 1.0, %v2782
    %v2784 = vadd.f32 %v2634, %v2705
    %v2785 = vxor.u32 %v2784, 2147483648
    %v2786 = vmul.f32 %v2785, 1.442695
    %v2787 = vpow.pop %v2786
    %v2788 = vadd.f32 %v2787, 1.0
    %v2789 = vrcp.pop %v2788
    %v2790 = vmul.f32 1.0, %v2789
    %v2791 = vadd.f32 %v2774, %v2288
    %v2792 = vmul.f32 %v2783, %v2791
    %v2793 = vadd.f32 %v2635, %v2792
    %v2794 = vtanh.pop %v2793
    %v2795 = vsub.f32 1.0, %v2790
    %v2796 = vmul.f32 %v2795, %v2794
    %v2797 = vmul.f32 %v2790, %v2631
    %v2798 = vadd.f32 %v2796, %v2797
    %2799 = vst [vmem:[%s9 + $0x18] sm:$0xff] %v2798
    %v2800 = vld [vmem:[#allocation2 + $0x60] sm:$0xff]
    %v2801 = vld [vmem:[#allocation2 + $0x68] sm:$0xff]
    %v2802 = vld [vmem:[#allocation2 + $0x70] sm:$0xff]
    %2803 = vmatprep.subr.mxu0 %v2078
    %2804 = vmatpush1.msra.mxu0 %v2077
    %2805 = vmatprep.subr.mxu0 %v2081
    %2806 = vmatpush1.msra.mxu0 %v2080
    %2807 = vmatprep.subr.mxu0 %v2084
    %2808 = vmatpush1.msra.mxu0 %v2083
    %2809 = vmatprep.subr.mxu0 %v2087
    %2810 = vmatpush1.msra.mxu0 %v2086
    %2811 = vmatprep.subr.mxu0 %v2090
    %2812 = vmatpush1.msra.mxu0 %v2089
    %2813 = vmatprep.subr.mxu0 %v2093
    %2814 = vmatpush1.msra.mxu0 %v2092
    %2815 = vmatprep.subr.mxu0 %v2096
    %2816 = vmatpush1.msra.mxu0 %v2095
    %2817 = vmatprep.subr.mxu0 %v2099
    %2818 = vmatpush1.msra.mxu0 %v2098
    %2819 = vmatprep.subr.mxu0 %v2102
    %2820 = vmatpush1.msra.mxu0 %v2101
    %2821 = vmatprep.subr.mxu0 %v2105
    %2822 = vmatpush1.msra.mxu0 %v2104
    %2823 = vmatprep.subr.mxu0 %v2108
    %2824 = vmatpush1.msra.mxu0 %v2107
    %2825 = vmatprep.subr.mxu0 %v2111
    %2826 = vmatpush1.msra.mxu0 %v2110
    %2827 = vmatprep.subr.mxu0 %v2114
    %2828 = vmatpush1.msra.mxu0 %v2113
    %2829 = vmatprep.subr.mxu0 %v2117
    %2830 = vmatpush1.msra.mxu0 %v2116
    %2831 = vmatprep.subr.mxu0 %v2120
    %2832 = vmatpush1.msra.mxu0 %v2119
    %2833 = vmatprep.subr.mxu0 %v2123
    %2834 = vmatpush1.msra.mxu0 %v2122
    %2835 = vmatprep.subr.mxu0 0.0
    %2836 = vmatpush1.msra.mxu0 0.0
    %2837 = vmatprep.subr.mxu0 0.0
    %2838 = vmatpush1.msra.mxu0 0.0
    %2839 = vmatprep.subr.mxu0 0.0
    %2840 = vmatpush1.msra.mxu0 0.0
    %2841 = vmatprep.subr.mxu0 0.0
    %2842 = vmatpush1.msra.mxu0 0.0
    %2843 = vmatprep.subr.mxu0 0.0
    %2844 = vmatpush1.msra.mxu0 0.0
    %2845 = vmatprep.subr.mxu0 0.0
    %2846 = vmatpush1.msra.mxu0 0.0
    %2847 = vmatprep.subr.mxu0 0.0
    %2848 = vmatpush1.msra.mxu0 0.0
    %2849 = vmatprep.subr.mxu0 0.0
    %2850 = vmatpush1.msra.mxu0 0.0
    %2851 = vmatprep.subr.mxu0 0.0
    %2852 = vmatpush1.msra.mxu0 0.0
    %2853 = vmatprep.subr.mxu0 0.0
    %2854 = vmatpush1.msra.mxu0 0.0
    %2855 = vmatprep.subr.mxu0 0.0
    %2856 = vmatpush1.msra.mxu0 0.0
    %2857 = vmatprep.subr.mxu0 0.0
    %2858 = vmatpush1.msra.mxu0 0.0
    %2859 = vmatprep.subr.mxu0 0.0
    %2860 = vmatpush1.msra.mxu0 0.0
    %2861 = vmatprep.subr.mxu0 0.0
    %2862 = vmatpush1.msra.mxu0 0.0
    %2863 = vmatprep.subr.mxu0 0.0
    %2864 = vmatpush1.msra.mxu0 0.0
    %2865 = vmatprep.subr.mxu0 0.0
    %2866 = vmatpush1.msra.mxu0 0.0
    %2867 = vmatprep.mubr.f32.mxu0 0.0
    %2868 = vmatmul.mubr.f32.gmra.mrb[0].mxu0 %v2798
    %v2869 = vpop.f32.mrb[0].mxu0
    %v2870 = vadd.f32 0.0, %v2869
    %v2871 = vpop.f32.mrb[0].mxu0
    %v2872 = vadd.f32 0.0, %v2871
    %2873 = vdwg.mxu0
    %2874 = vmatprep.subr.mxu0 0.0
    %2875 = vmatpush1.msra.mxu0 %v2079
    %2876 = vmatprep.subr.mxu0 0.0
    %2877 = vmatpush1.msra.mxu0 %v2082
    %2878 = vmatprep.subr.mxu0 0.0
    %2879 = vmatpush1.msra.mxu0 %v2085
    %2880 = vmatprep.subr.mxu0 0.0
    %2881 = vmatpush1.msra.mxu0 %v2088
    %2882 = vmatprep.subr.mxu0 0.0
    %2883 = vmatpush1.msra.mxu0 %v2091
    %2884 = vmatprep.subr.mxu0 0.0
    %2885 = vmatpush1.msra.mxu0 %v2094
    %2886 = vmatprep.subr.mxu0 0.0
    %2887 = vmatpush1.msra.mxu0 %v2097
    %2888 = vmatprep.subr.mxu0 0.0
    %2889 = vmatpush1.msra.mxu0 %v2100
    %2890 = vmatprep.subr.mxu0 0.0
    %2891 = vmatpush1.msra.mxu0 %v2103
    %2892 = vmatprep.subr.mxu0 0.0
    %2893 = vmatpush1.msra.mxu0 %v2106
    %2894 = vmatprep.subr.mxu0 0.0
    %2895 = vmatpush1.msra.mxu0 %v2109
    %2896 = vmatprep.subr.mxu0 0.0
    %2897 = vmatpush1.msra.mxu0 %v2112
    %2898 = vmatprep.subr.mxu0 0.0
    %2899 = vmatpush1.msra.mxu0 %v2115
    %2900 = vmatprep.subr.mxu0 0.0
    %2901 = vmatpush1.msra.mxu0 %v2118
    %2902 = vmatprep.subr.mxu0 0.0
    %2903 = vmatpush1.msra.mxu0 %v2121
    %2904 = vmatprep.subr.mxu0 0.0
    %2905 = vmatpush1.msra.mxu0 %v2124
    %2906 = vmatprep.subr.mxu0 0.0
    %2907 = vmatpush1.msra.mxu0 0.0
    %2908 = vmatprep.subr.mxu0 0.0
    %2909 = vmatpush1.msra.mxu0 0.0
    %2910 = vmatprep.subr.mxu0 0.0
    %2911 = vmatpush1.msra.mxu0 0.0
    %2912 = vmatprep.subr.mxu0 0.0
    %2913 = vmatpush1.msra.mxu0 0.0
    %2914 = vmatprep.subr.mxu0 0.0
    %2915 = vmatpush1.msra.mxu0 0.0
    %2916 = vmatprep.subr.mxu0 0.0
    %2917 = vmatpush1.msra.mxu0 0.0
    %2918 = vmatprep.subr.mxu0 0.0
    %2919 = vmatpush1.msra.mxu0 0.0
    %2920 = vmatprep.subr.mxu0 0.0
    %2921 = vmatpush1.msra.mxu0 0.0
    %2922 = vmatprep.subr.mxu0 0.0
    %2923 = vmatpush1.msra.mxu0 0.0
    %2924 = vmatprep.subr.mxu0 0.0
    %2925 = vmatpush1.msra.mxu0 0.0
    %2926 = vmatprep.subr.mxu0 0.0
    %2927 = vmatpush1.msra.mxu0 0.0
    %2928 = vmatprep.subr.mxu0 0.0
    %2929 = vmatpush1.msra.mxu0 0.0
    %2930 = vmatprep.subr.mxu0 0.0
    %2931 = vmatpush1.msra.mxu0 0.0
    %2932 = vmatprep.subr.mxu0 0.0
    %2933 = vmatpush1.msra.mxu0 0.0
    %2934 = vmatprep.subr.mxu0 0.0
    %2935 = vmatpush1.msra.mxu0 0.0
    %2936 = vmatprep.subr.mxu0 0.0
    %2937 = vmatpush1.msra.mxu0 0.0
    %2938 = vmatprep.mubr.f32.mxu0 0.0
    %2939 = vmatmul.mubr.f32.gmra.mrb[0].mxu0 %v2798
    %v2940 = vpop.f32.mrb[0].mxu0
    %v2941 = vadd.f32 0.0, %v2940
    %v2942 = vpop.f32.mrb[0].mxu0
    %2943 = vdwg.mxu0
    %v2944 = vadd.f32 %v2800, %v2870
    %v2945 = vxor.u32 %v2944, 2147483648
    %v2946 = vmul.f32 %v2945, 1.442695
    %v2947 = vpow.pop %v2946
    %v2948 = vadd.f32 %v2947, 1.0
    %v2949 = vrcp.pop %v2948
    %v2950 = vmul.f32 1.0, %v2949
    %v2951 = vadd.f32 %v2801, %v2872
    %v2952 = vxor.u32 %v2951, 2147483648
    %v2953 = vmul.f32 %v2952, 1.442695
    %v2954 = vpow.pop %v2953
    %v2955 = vadd.f32 %v2954, 1.0
    %v2956 = vrcp.pop %v2955
    %v2957 = vmul.f32 1.0, %v2956
    %v2958 = vadd.f32 %v2941, %v2288
    %v2959 = vmul.f32 %v2950, %v2958
    %v2960 = vadd.f32 %v2802, %v2959
    %v2961 = vtanh.pop %v2960
    %v2962 = vsub.f32 1.0, %v2957
    %v2963 = vmul.f32 %v2962, %v2961
    %v2964 = vmul.f32 %v2957, %v2798
    %v2965 = vadd.f32 %v2963, %v2964
    %2966 = vst [vmem:[%s9 + $0x20] sm:$0xff] %v2965
    %v2967 = vld [vmem:[#allocation2 + $0x78] sm:$0xff]
    %v2968 = vld [vmem:[#allocation2 + $0x80] sm:$0xff]
    %v2969 = vld [vmem:[#allocation2 + $0x88] sm:$0xff]
    %2970 = vmatprep.subr.mxu0 %v2078
    %2971 = vmatpush1.msra.mxu0 %v2077
    %2972 = vmatprep.subr.mxu0 %v2081
    %2973 = vmatpush1.msra.mxu0 %v2080
    %2974 = vmatprep.subr.mxu0 %v2084
    %2975 = vmatpush1.msra.mxu0 %v2083
    %2976 = vmatprep.subr.mxu0 %v2087
    %2977 = vmatpush1.msra.mxu0 %v2086
    %2978 = vmatprep.subr.mxu0 %v2090
    %2979 = vmatpush1.msra.mxu0 %v2089
    %2980 = vmatprep.subr.mxu0 %v2093
    %2981 = vmatpush1.msra.mxu0 %v2092
    %2982 = vmatprep.subr.mxu0 %v2096
    %2983 = vmatpush1.msra.mxu0 %v2095
    %2984 = vmatprep.subr.mxu0 %v2099
    %2985 = vmatpush1.msra.mxu0 %v2098
    %2986 = vmatprep.subr.mxu0 %v2102
    %2987 = vmatpush1.msra.mxu0 %v2101
    %2988 = vmatprep.subr.mxu0 %v2105
    %2989 = vmatpush1.msra.mxu0 %v2104
    %2990 = vmatprep.subr.mxu0 %v2108
    %2991 = vmatpush1.msra.mxu0 %v2107
    %2992 = vmatprep.subr.mxu0 %v2111
    %2993 = vmatpush1.msra.mxu0 %v2110
    %2994 = vmatprep.subr.mxu0 %v2114
    %2995 = vmatpush1.msra.mxu0 %v2113
    %2996 = vmatprep.subr.mxu0 %v2117
    %2997 = vmatpush1.msra.mxu0 %v2116
    %2998 = vmatprep.subr.mxu0 %v2120
    %2999 = vmatpush1.msra.mxu0 %v2119
    %3000 = vmatprep.subr.mxu0 %v2123
    %3001 = vmatpush1.msra.mxu0 %v2122
    %3002 = vmatprep.subr.mxu0 0.0
    %3003 = vmatpush1.msra.mxu0 0.0
    %3004 = vmatprep.subr.mxu0 0.0
    %3005 = vmatpush1.msra.mxu0 0.0
    %3006 = vmatprep.subr.mxu0 0.0
    %3007 = vmatpush1.msra.mxu0 0.0
    %3008 = vmatprep.subr.mxu0 0.0
    %3009 = vmatpush1.msra.mxu0 0.0
    %3010 = vmatprep.subr.mxu0 0.0
    %3011 = vmatpush1.msra.mxu0 0.0
    %3012 = vmatprep.subr.mxu0 0.0
    %3013 = vmatpush1.msra.mxu0 0.0
    %3014 = vmatprep.subr.mxu0 0.0
    %3015 = vmatpush1.msra.mxu0 0.0
    %3016 = vmatprep.subr.mxu0 0.0
    %3017 = vmatpush1.msra.mxu0 0.0
    %3018 = vmatprep.subr.mxu0 0.0
    %3019 = vmatpush1.msra.mxu0 0.0
    %3020 = vmatprep.subr.mxu0 0.0
    %3021 = vmatpush1.msra.mxu0 0.0
    %3022 = vmatprep.subr.mxu0 0.0
    %3023 = vmatpush1.msra.mxu0 0.0
    %3024 = vmatprep.subr.mxu0 0.0
    %3025 = vmatpush1.msra.mxu0 0.0
    %3026 = vmatprep.subr.mxu0 0.0
    %3027 = vmatpush1.msra.mxu0 0.0
    %3028 = vmatprep.subr.mxu0 0.0
    %3029 = vmatpush1.msra.mxu0 0.0
    %3030 = vmatprep.subr.mxu0 0.0
    %3031 = vmatpush1.msra.mxu0 0.0
    %3032 = vmatprep.subr.mxu0 0.0
    %3033 = vmatpush1.msra.mxu0 0.0
    %3034 = vmatprep.mubr.f32.mxu0 0.0
    %3035 = vmatmul.mubr.f32.gmra.mrb[0].mxu0 %v2965
    %v3036 = vpop.f32.mrb[0].mxu0
    %v3037 = vadd.f32 0.0, %v3036
    %v3038 = vpop.f32.mrb[0].mxu0
    %v3039 = vadd.f32 0.0, %v3038
    %3040 = vdwg.mxu0
    %3041 = vmatprep.subr.mxu0 0.0
    %3042 = vmatpush1.msra.mxu0 %v2079
    %3043 = vmatprep.subr.mxu0 0.0
    %3044 = vmatpush1.msra.mxu0 %v2082
    %3045 = vmatprep.subr.mxu0 0.0
    %3046 = vmatpush1.msra.mxu0 %v2085
    %3047 = vmatprep.subr.mxu0 0.0
    %3048 = vmatpush1.msra.mxu0 %v2088
    %3049 = vmatprep.subr.mxu0 0.0
    %3050 = vmatpush1.msra.mxu0 %v2091
    %3051 = vmatprep.subr.mxu0 0.0
    %3052 = vmatpush1.msra.mxu0 %v2094
    %3053 = vmatprep.subr.mxu0 0.0
    %3054 = vmatpush1.msra.mxu0 %v2097
    %3055 = vmatprep.subr.mxu0 0.0
    %3056 = vmatpush1.msra.mxu0 %v2100
    %3057 = vmatprep.subr.mxu0 0.0
    %3058 = vmatpush1.msra.mxu0 %v2103
    %3059 = vmatprep.subr.mxu0 0.0
    %3060 = vmatpush1.msra.mxu0 %v2106
    %3061 = vmatprep.subr.mxu0 0.0
    %3062 = vmatpush1.msra.mxu0 %v2109
    %3063 = vmatprep.subr.mxu0 0.0
    %3064 = vmatpush1.msra.mxu0 %v2112
    %3065 = vmatprep.subr.mxu0 0.0
    %3066 = vmatpush1.msra.mxu0 %v2115
    %3067 = vmatprep.subr.mxu0 0.0
    %3068 = vmatpush1.msra.mxu0 %v2118
    %3069 = vmatprep.subr.mxu0 0.0
    %3070 = vmatpush1.msra.mxu0 %v2121
    %3071 = vmatprep.subr.mxu0 0.0
    %3072 = vmatpush1.msra.mxu0 %v2124
    %3073 = vmatprep.subr.mxu0 0.0
    %3074 = vmatpush1.msra.mxu0 0.0
    %3075 = vmatprep.subr.mxu0 0.0
    %3076 = vmatpush1.msra.mxu0 0.0
    %3077 = vmatprep.subr.mxu0 0.0
    %3078 = vmatpush1.msra.mxu0 0.0
    %3079 = vmatprep.subr.mxu0 0.0
    %3080 = vmatpush1.msra.mxu0 0.0
    %3081 = vmatprep.subr.mxu0 0.0
    %3082 = vmatpush1.msra.mxu0 0.0
    %3083 = vmatprep.subr.mxu0 0.0
    %3084 = vmatpush1.msra.mxu0 0.0
    %3085 = vmatprep.subr.mxu0 0.0
    %3086 = vmatpush1.msra.mxu0 0.0
    %3087 = vmatprep.subr.mxu0 0.0
    %3088 = vmatpush1.msra.mxu0 0.0
    %3089 = vmatprep.subr.mxu0 0.0
    %3090 = vmatpush1.msra.mxu0 0.0
    %3091 = vmatprep.subr.mxu0 0.0
    %3092 = vmatpush1.msra.mxu0 0.0
    %3093 = vmatprep.subr.mxu0 0.0
    %3094 = vmatpush1.msra.mxu0 0.0
    %3095 = vmatprep.subr.mxu0 0.0
    %3096 = vmatpush1.msra.mxu0 0.0
    %3097 = vmatprep.subr.mxu0 0.0
    %3098 = vmatpush1.msra.mxu0 0.0
    %3099 = vmatprep.subr.mxu0 0.0
    %3100 = vmatpush1.msra.mxu0 0.0
    %3101 = vmatprep.subr.mxu0 0.0
    %3102 = vmatpush1.msra.mxu0 0.0
    %3103 = vmatprep.subr.mxu0 0.0
    %3104 = vmatpush1.msra.mxu0 0.0
    %3105 = vmatprep.mubr.f32.mxu0 0.0
    %3106 = vmatmul.mubr.f32.gmra.mrb[0].mxu0 %v2965
    %v3107 = vpop.f32.mrb[0].mxu0
    %v3108 = vadd.f32 0.0, %v3107
    %v3109 = vpop.f32.mrb[0].mxu0
    %3110 = vdwg.mxu0
    %v3111 = vadd.f32 %v2967, %v3037
    %v3112 = vxor.u32 %v3111, 2147483648
    %v3113 = vmul.f32 %v3112, 1.442695
    %v3114 = vpow.pop %v3113
    %v3115 = vadd.f32 %v3114, 1.0
    %v3116 = vrcp.pop %v3115
    %v3117 = vmul.f32 1.0, %v3116
    %v3118 = vadd.f32 %v2968, %v3039
    %v3119 = vxor.u32 %v3118, 2147483648
    %v3120 = vmul.f32 %v3119, 1.442695
    %v3121 = vpow.pop %v3120
    %v3122 = vadd.f32 %v3121, 1.0
    %v3123 = vrcp.pop %v3122
    %v3124 = vmul.f32 1.0, %v3123
    %v3125 = vadd.f32 %v3108, %v2288
    %v3126 = vmul.f32 %v3117, %v3125
    %v3127 = vadd.f32 %v2969, %v3126
    %v3128 = vtanh.pop %v3127
    %v3129 = vsub.f32 1.0, %v3124
    %v3130 = vmul.f32 %v3129, %v3128
    %v3131 = vmul.f32 %v3124, %v2965
    %v3132 = vadd.f32 %v3130, %v3131
    %3133 = vst [vmem:[%s9 + $0x28] sm:$0xff] %v3132
    %v3134 = vld [vmem:[#allocation2 + $0x90] sm:$0xff]
    %v3135 = vld [vmem:[#allocation2 + $0x98] sm:$0xff]
    %v3136 = vld [vmem:[#allocation2 + $0xa0] sm:$0xff]
    %3137 = vmatprep.subr.mxu0 %v2078
    %3138 = vmatpush1.msra.mxu0 %v2077
    %3139 = vmatprep.subr.mxu0 %v2081
    %3140 = vmatpush1.msra.mxu0 %v2080
    %3141 = vmatprep.subr.mxu0 %v2084
    %3142 = vmatpush1.msra.mxu0 %v2083
    %3143 = vmatprep.subr.mxu0 %v2087
    %3144 = vmatpush1.msra.mxu0 %v2086
    %3145 = vmatprep.subr.mxu0 %v2090
    %3146 = vmatpush1.msra.mxu0 %v2089
    %3147 = vmatprep.subr.mxu0 %v2093
    %3148 = vmatpush1.msra.mxu0 %v2092
    %3149 = vmatprep.subr.mxu0 %v2096
    %3150 = vmatpush1.msra.mxu0 %v2095
    %3151 = vmatprep.subr.mxu0 %v2099
    %3152 = vmatpush1.msra.mxu0 %v2098
    %3153 = vmatprep.subr.mxu0 %v2102
    %3154 = vmatpush1.msra.mxu0 %v2101
    %3155 = vmatprep.subr.mxu0 %v2105
    %3156 = vmatpush1.msra.mxu0 %v2104
    %3157 = vmatprep.subr.mxu0 %v2108
    %3158 = vmatpush1.msra.mxu0 %v2107
    %3159 = vmatprep.subr.mxu0 %v2111
    %3160 = vmatpush1.msra.mxu0 %v2110
    %3161 = vmatprep.subr.mxu0 %v2114
    %3162 = vmatpush1.msra.mxu0 %v2113
    %3163 = vmatprep.subr.mxu0 %v2117
    %3164 = vmatpush1.msra.mxu0 %v2116
    %3165 = vmatprep.subr.mxu0 %v2120
    %3166 = vmatpush1.msra.mxu0 %v2119
    %3167 = vmatprep.subr.mxu0 %v2123
    %3168 = vmatpush1.msra.mxu0 %v2122
    %3169 = vmatprep.subr.mxu0 0.0
    %3170 = vmatpush1.msra.mxu0 0.0
    %3171 = vmatprep.subr.mxu0 0.0
    %3172 = vmatpush1.msra.mxu0 0.0
    %3173 = vmatprep.subr.mxu0 0.0
    %3174 = vmatpush1.msra.mxu0 0.0
    %3175 = vmatprep.subr.mxu0 0.0
    %3176 = vmatpush1.msra.mxu0 0.0
    %3177 = vmatprep.subr.mxu0 0.0
    %3178 = vmatpush1.msra.mxu0 0.0
    %3179 = vmatprep.subr.mxu0 0.0
    %3180 = vmatpush1.msra.mxu0 0.0
    %3181 = vmatprep.subr.mxu0 0.0
    %3182 = vmatpush1.msra.mxu0 0.0
    %3183 = vmatprep.subr.mxu0 0.0
    %3184 = vmatpush1.msra.mxu0 0.0
    %3185 = vmatprep.subr.mxu0 0.0
    %3186 = vmatpush1.msra.mxu0 0.0
    %3187 = vmatprep.subr.mxu0 0.0
    %3188 = vmatpush1.msra.mxu0 0.0
    %3189 = vmatprep.subr.mxu0 0.0
    %3190 = vmatpush1.msra.mxu0 0.0
    %3191 = vmatprep.subr.mxu0 0.0
    %3192 = vmatpush1.msra.mxu0 0.0
    %3193 = vmatprep.subr.mxu0 0.0
    %3194 = vmatpush1.msra.mxu0 0.0
    %3195 = vmatprep.subr.mxu0 0.0
    %3196 = vmatpush1.msra.mxu0 0.0
    %3197 = vmatprep.subr.mxu0 0.0
    %3198 = vmatpush1.msra.mxu0 0.0
    %3199 = vmatprep.subr.mxu0 0.0
    %3200 = vmatpush1.msra.mxu0 0.0
    %3201 = vmatprep.mubr.f32.mxu0 0.0
    %3202 = vmatmul.mubr.f32.gmra.mrb[0].mxu0 %v3132
    %v3203 = vpop.f32.mrb[0].mxu0
    %v3204 = vadd.f32 0.0, %v3203
    %v3205 = vpop.f32.mrb[0].mxu0
    %v3206 = vadd.f32 0.0, %v3205
    %3207 = vdwg.mxu0
    %3208 = vmatprep.subr.mxu0 0.0
    %3209 = vmatpush1.msra.mxu0 %v2079
    %3210 = vmatprep.subr.mxu0 0.0
    %3211 = vmatpush1.msra.mxu0 %v2082
    %3212 = vmatprep.subr.mxu0 0.0
    %3213 = vmatpush1.msra.mxu0 %v2085
    %3214 = vmatprep.subr.mxu0 0.0
    %3215 = vmatpush1.msra.mxu0 %v2088
    %3216 = vmatprep.subr.mxu0 0.0
    %3217 = vmatpush1.msra.mxu0 %v2091
    %3218 = vmatprep.subr.mxu0 0.0
    %3219 = vmatpush1.msra.mxu0 %v2094
    %3220 = vmatprep.subr.mxu0 0.0
    %3221 = vmatpush1.msra.mxu0 %v2097
    %3222 = vmatprep.subr.mxu0 0.0
    %3223 = vmatpush1.msra.mxu0 %v2100
    %3224 = vmatprep.subr.mxu0 0.0
    %3225 = vmatpush1.msra.mxu0 %v2103
    %3226 = vmatprep.subr.mxu0 0.0
    %3227 = vmatpush1.msra.mxu0 %v2106
    %3228 = vmatprep.subr.mxu0 0.0
    %3229 = vmatpush1.msra.mxu0 %v2109
    %3230 = vmatprep.subr.mxu0 0.0
    %3231 = vmatpush1.msra.mxu0 %v2112
    %3232 = vmatprep.subr.mxu0 0.0
    %3233 = vmatpush1.msra.mxu0 %v2115
    %3234 = vmatprep.subr.mxu0 0.0
    %3235 = vmatpush1.msra.mxu0 %v2118
    %3236 = vmatprep.subr.mxu0 0.0
    %3237 = vmatpush1.msra.mxu0 %v2121
    %3238 = vmatprep.subr.mxu0 0.0
    %3239 = vmatpush1.msra.mxu0 %v2124
    %3240 = vmatprep.subr.mxu0 0.0
    %3241 = vmatpush1.msra.mxu0 0.0
    %3242 = vmatprep.subr.mxu0 0.0
    %3243 = vmatpush1.msra.mxu0 0.0
    %3244 = vmatprep.subr.mxu0 0.0
    %3245 = vmatpush1.msra.mxu0 0.0
    %3246 = vmatprep.subr.mxu0 0.0
    %3247 = vmatpush1.msra.mxu0 0.0
    %3248 = vmatprep.subr.mxu0 0.0
    %3249 = vmatpush1.msra.mxu0 0.0
    %3250 = vmatprep.subr.mxu0 0.0
    %3251 = vmatpush1.msra.mxu0 0.0
    %3252 = vmatprep.subr.mxu0 0.0
    %3253 = vmatpush1.msra.mxu0 0.0
    %3254 = vmatprep.subr.mxu0 0.0
    %3255 = vmatpush1.msra.mxu0 0.0
    %3256 = vmatprep.subr.mxu0 0.0
    %3257 = vmatpush1.msra.mxu0 0.0
    %3258 = vmatprep.subr.mxu0 0.0
    %3259 = vmatpush1.msra.mxu0 0.0
    %3260 = vmatprep.subr.mxu0 0.0
    %3261 = vmatpush1.msra.mxu0 0.0
    %3262 = vmatprep.subr.mxu0 0.0
    %3263 = vmatpush1.msra.mxu0 0.0
    %3264 = vmatprep.subr.mxu0 0.0
    %3265 = vmatpush1.msra.mxu0 0.0
    %3266 = vmatprep.subr.mxu0 0.0
    %3267 = vmatpush1.msra.mxu0 0.0
    %3268 = vmatprep.subr.mxu0 0.0
    %3269 = vmatpush1.msra.mxu0 0.0
    %3270 = vmatprep.subr.mxu0 0.0
    %3271 = vmatpush1.msra.mxu0 0.0
    %3272 = vmatprep.mubr.f32.mxu0 0.0
    %3273 = vmatmul.mubr.f32.gmra.mrb[0].mxu0 %v3132
    %v3274 = vpop.f32.mrb[0].mxu0
    %v3275 = vadd.f32 0.0, %v3274
    %v3276 = vpop.f32.mrb[0].mxu0
    %3277 = vdwg.mxu0
    %v3278 = vadd.f32 %v3134, %v3204
    %v3279 = vxor.u32 %v3278, 2147483648
    %v3280 = vmul.f32 %v3279, 1.442695
    %v3281 = vpow.pop %v3280
    %v3282 = vadd.f32 %v3281, 1.0
    %v3283 = vrcp.pop %v3282
    %v3284 = vmul.f32 1.0, %v3283
    %v3285 = vadd.f32 %v3135, %v3206
    %v3286 = vxor.u32 %v3285, 2147483648
    %v3287 = vmul.f32 %v3286, 1.442695
    %v3288 = vpow.pop %v3287
    %v3289 = vadd.f32 %v3288, 1.0
    %v3290 = vrcp.pop %v3289
    %v3291 = vmul.f32 1.0, %v3290
    %v3292 = vadd.f32 %v3275, %v2288
    %v3293 = vmul.f32 %v3284, %v3292
    %v3294 = vadd.f32 %v3136, %v3293
    %v3295 = vtanh.pop %v3294
    %v3296 = vsub.f32 1.0, %v3291
    %v3297 = vmul.f32 %v3296, %v3295
    %v3298 = vmul.f32 %v3291, %v3132
    %v3299 = vadd.f32 %v3297, %v3298
    %3300 = vst [vmem:[%s9 + $0x30] sm:$0xff] %v3299
    %v3301 = vld [vmem:[#allocation2 + $0xa8] sm:$0xff]
    %v3302 = vld [vmem:[#allocation2 + $0xb0] sm:$0xff]
    %v3303 = vld [vmem:[#allocation2 + $0xb8] sm:$0xff]
    %3304 = vmatprep.subr.mxu0 %v2078
    %3305 = vmatpush1.msra.mxu0 %v2077
    %3306 = vmatprep.subr.mxu0 %v2081
    %3307 = vmatpush1.msra.mxu0 %v2080
    %3308 = vmatprep.subr.mxu0 %v2084
    %3309 = vmatpush1.msra.mxu0 %v2083
    %3310 = vmatprep.subr.mxu0 %v2087
    %3311 = vmatpush1.msra.mxu0 %v2086
    %3312 = vmatprep.subr.mxu0 %v2090
    %3313 = vmatpush1.msra.mxu0 %v2089
    %3314 = vmatprep.subr.mxu0 %v2093
    %3315 = vmatpush1.msra.mxu0 %v2092
    %3316 = vmatprep.subr.mxu0 %v2096
    %3317 = vmatpush1.msra.mxu0 %v2095
    %3318 = vmatprep.subr.mxu0 %v2099
    %3319 = vmatpush1.msra.mxu0 %v2098
    %3320 = vmatprep.subr.mxu0 %v2102
    %3321 = vmatpush1.msra.mxu0 %v2101
    %3322 = vmatprep.subr.mxu0 %v2105
    %3323 = vmatpush1.msra.mxu0 %v2104
    %3324 = vmatprep.subr.mxu0 %v2108
    %3325 = vmatpush1.msra.mxu0 %v2107
    %3326 = vmatprep.subr.mxu0 %v2111
    %3327 = vmatpush1.msra.mxu0 %v2110
    %3328 = vmatprep.subr.mxu0 %v2114
    %3329 = vmatpush1.msra.mxu0 %v2113
    %3330 = vmatprep.subr.mxu0 %v2117
    %3331 = vmatpush1.msra.mxu0 %v2116
    %3332 = vmatprep.subr.mxu0 %v2120
    %3333 = vmatpush1.msra.mxu0 %v2119
    %3334 = vmatprep.subr.mxu0 %v2123
    %3335 = vmatpush1.msra.mxu0 %v2122
    %3336 = vmatprep.subr.mxu0 0.0
    %3337 = vmatpush1.msra.mxu0 0.0
    %3338 = vmatprep.subr.mxu0 0.0
    %3339 = vmatpush1.msra.mxu0 0.0
    %3340 = vmatprep.subr.mxu0 0.0
    %3341 = vmatpush1.msra.mxu0 0.0
    %3342 = vmatprep.subr.mxu0 0.0
    %3343 = vmatpush1.msra.mxu0 0.0
    %3344 = vmatprep.subr.mxu0 0.0
    %3345 = vmatpush1.msra.mxu0 0.0
    %3346 = vmatprep.subr.mxu0 0.0
    %3347 = vmatpush1.msra.mxu0 0.0
    %3348 = vmatprep.subr.mxu0 0.0
    %3349 = vmatpush1.msra.mxu0 0.0
    %3350 = vmatprep.subr.mxu0 0.0
    %3351 = vmatpush1.msra.mxu0 0.0
    %3352 = vmatprep.subr.mxu0 0.0
    %3353 = vmatpush1.msra.mxu0 0.0
    %3354 = vmatprep.subr.mxu0 0.0
    %3355 = vmatpush1.msra.mxu0 0.0
    %3356 = vmatprep.subr.mxu0 0.0
    %3357 = vmatpush1.msra.mxu0 0.0
    %3358 = vmatprep.subr.mxu0 0.0
    %3359 = vmatpush1.msra.mxu0 0.0
    %3360 = vmatprep.subr.mxu0 0.0
    %3361 = vmatpush1.msra.mxu0 0.0
    %3362 = vmatprep.subr.mxu0 0.0
    %3363 = vmatpush1.msra.mxu0 0.0
    %3364 = vmatprep.subr.mxu0 0.0
    %3365 = vmatpush1.msra.mxu0 0.0
    %3366 = vmatprep.subr.mxu0 0.0
    %3367 = vmatpush1.msra.mxu0 0.0
    %3368 = vmatprep.mubr.f32.mxu0 0.0
    %3369 = vmatmul.mubr.f32.gmra.mrb[0].mxu0 %v3299
    %v3370 = vpop.f32.mrb[0].mxu0
    %v3371 = vadd.f32 0.0, %v3370
    %v3372 = vpop.f32.mrb[0].mxu0
    %v3373 = vadd.f32 0.0, %v3372
    %3374 = vdwg.mxu0
    %3375 = vmatprep.subr.mxu0 0.0
    %3376 = vmatpush1.msra.mxu0 %v2079
    %3377 = vmatprep.subr.mxu0 0.0
    %3378 = vmatpush1.msra.mxu0 %v2082
    %3379 = vmatprep.subr.mxu0 0.0
    %3380 = vmatpush1.msra.mxu0 %v2085
    %3381 = vmatprep.subr.mxu0 0.0
    %3382 = vmatpush1.msra.mxu0 %v2088
    %3383 = vmatprep.subr.mxu0 0.0
    %3384 = vmatpush1.msra.mxu0 %v2091
    %3385 = vmatprep.subr.mxu0 0.0
    %3386 = vmatpush1.msra.mxu0 %v2094
    %3387 = vmatprep.subr.mxu0 0.0
    %3388 = vmatpush1.msra.mxu0 %v2097
    %3389 = vmatprep.subr.mxu0 0.0
    %3390 = vmatpush1.msra.mxu0 %v2100
    %3391 = vmatprep.subr.mxu0 0.0
    %3392 = vmatpush1.msra.mxu0 %v2103
    %3393 = vmatprep.subr.mxu0 0.0
    %3394 = vmatpush1.msra.mxu0 %v2106
    %3395 = vmatprep.subr.mxu0 0.0
    %3396 = vmatpush1.msra.mxu0 %v2109
    %3397 = vmatprep.subr.mxu0 0.0
    %3398 = vmatpush1.msra.mxu0 %v2112
    %3399 = vmatprep.subr.mxu0 0.0
    %3400 = vmatpush1.msra.mxu0 %v2115
    %3401 = vmatprep.subr.mxu0 0.0
    %3402 = vmatpush1.msra.mxu0 %v2118
    %3403 = vmatprep.subr.mxu0 0.0
    %3404 = vmatpush1.msra.mxu0 %v2121
    %3405 = vmatprep.subr.mxu0 0.0
    %3406 = vmatpush1.msra.mxu0 %v2124
    %3407 = vmatprep.subr.mxu0 0.0
    %3408 = vmatpush1.msra.mxu0 0.0
    %3409 = vmatprep.subr.mxu0 0.0
    %3410 = vmatpush1.msra.mxu0 0.0
    %3411 = vmatprep.subr.mxu0 0.0
    %3412 = vmatpush1.msra.mxu0 0.0
    %3413 = vmatprep.subr.mxu0 0.0
    %3414 = vmatpush1.msra.mxu0 0.0
    %3415 = vmatprep.subr.mxu0 0.0
    %3416 = vmatpush1.msra.mxu0 0.0
    %3417 = vmatprep.subr.mxu0 0.0
    %3418 = vmatpush1.msra.mxu0 0.0
    %3419 = vmatprep.subr.mxu0 0.0
    %3420 = vmatpush1.msra.mxu0 0.0
    %3421 = vmatprep.subr.mxu0 0.0
    %3422 = vmatpush1.msra.mxu0 0.0
    %3423 = vmatprep.subr.mxu0 0.0
    %3424 = vmatpush1.msra.mxu0 0.0
    %3425 = vmatprep.subr.mxu0 0.0
    %3426 = vmatpush1.msra.mxu0 0.0
    %3427 = vmatprep.subr.mxu0 0.0
    %3428 = vmatpush1.msra.mxu0 0.0
    %3429 = vmatprep.subr.mxu0 0.0
    %3430 = vmatpush1.msra.mxu0 0.0
    %3431 = vmatprep.subr.mxu0 0.0
    %3432 = vmatpush1.msra.mxu0 0.0
    %3433 = vmatprep.subr.mxu0 0.0
    %3434 = vmatpush1.msra.mxu0 0.0
    %3435 = vmatprep.subr.mxu0 0.0
    %3436 = vmatpush1.msra.mxu0 0.0
    %3437 = vmatprep.subr.mxu0 0.0
    %3438 = vmatpush1.msra.mxu0 0.0
    %3439 = vmatprep.mubr.f32.mxu0 0.0
    %3440 = vmatmul.mubr.f32.gmra.mrb[0].mxu0 %v3299
    %v3441 = vpop.f32.mrb[0].mxu0
    %v3442 = vadd.f32 0.0, %v3441
    %v3443 = vpop.f32.mrb[0].mxu0
    %3444 = vdwg.mxu0
    %v3445 = vadd.f32 %v3301, %v3371
    %v3446 = vxor.u32 %v3445, 2147483648
    %v3447 = vmul.f32 %v3446, 1.442695
    %v3448 = vpow.pop %v3447
    %v3449 = vadd.f32 %v3448, 1.0
    %v3450 = vrcp.pop %v3449
    %v3451 = vmul.f32 1.0, %v3450
    %v3452 = vadd.f32 %v3302, %v3373
    %v3453 = vxor.u32 %v3452, 2147483648
    %v3454 = vmul.f32 %v3453, 1.442695
    %v3455 = vpow.pop %v3454
    %v3456 = vadd.f32 %v3455, 1.0
    %v3457 = vrcp.pop %v3456
    %v3458 = vmul.f32 1.0, %v3457
    %v3459 = vadd.f32 %v3442, %v2288
    %v3460 = vmul.f32 %v3451, %v3459
    %v3461 = vadd.f32 %v3303, %v3460
    %v3462 = vtanh.pop %v3461
    %v3463 = vsub.f32 1.0, %v3458
    %v3464 = vmul.f32 %v3463, %v3462
    %v3465 = vmul.f32 %v3458, %v3299
    %v3466 = vadd.f32 %v3464, %v3465
    %3467 = vst [vmem:[%s9 + $0x38] sm:$0xff] %v3466
    // Predicated region
    $region50: #{decoder_forward.1} parent=1 // pred_check
      _
    $region51: #{decoder_forward.1} parent=1 // pred_check_branch
      %3469 = sbr.rel (0) target = $region53
    $region52: #{decoder_forward.1} parent=1 // pred_region
      _
    $region53: #{decoder_forward.1} parent=1 // pred_fallthru
      _
    // Predicated region
    $region54: #{decoder_forward.1} parent=1 // pred_check
      _
    $region55: #{decoder_forward.1} parent=1 // pred_check_branch
      %3471 = sbr.rel (0) target = $region57
    $region56: #{decoder_forward.1} parent=1 // pred_region
      _
    $region57: #{decoder_forward.1} parent=1 // pred_fallthru
      _
    %3472 = vsyncpa [#allocation5], 1
    %3473 = vsyncpa [#allocation7], 1

</llo_original>
